<compile_context>
chip_gen: v7x
topology: tpu7x:2x2x1
jax: 0.10.0
libtpu: 0.0.40
codegen_flags: <defaults>
</compile_context>

<pallas_src>
import math
from functools import partial

import jax
import jax.numpy as jnp
from jax import lax
from jax.experimental import pallas as pl
from jax.experimental.pallas import tpu as pltpu

EPS = 1e-6      # partial(nn.LayerNorm, eps=1e-06)
LANE = 128      # fused-QKV output columns padded to a lane multiple


# ---------------------------------------------------------------------------
# small in-kernel helpers
# ---------------------------------------------------------------------------
def _layernorm(x, w, b):
    mean = jnp.mean(x, axis=-1, keepdims=True)
    var = jnp.mean((x - mean) ** 2, axis=-1, keepdims=True)
    return (x - mean) * lax.rsqrt(var + EPS) * w + b


def _erf(x):
    # Exact-GELU needs erf; A&S 7.1.26 rational approximation (|err| < 1.5e-7).
    a1, a2, a3, a4, a5 = (0.254829592, -0.284496736, 1.421413741,
                          -1.453152027, 1.061405429)
    p = 0.3275911
    s = jnp.where(x < 0.0, -1.0, 1.0)
    z = jnp.abs(x)
    t = 1.0 / (1.0 + p * z)
    poly = ((((a5 * t + a4) * t + a3) * t + a2) * t + a1) * t
    return s * (1.0 - poly * jnp.exp(-z * z))


def _gelu_exact(x):
    return 0.5 * x * (1.0 + _erf(x * (1.0 / math.sqrt(2.0))))


def _softmax_rows(s):
    # Exact denominator: attention probabilities are returned as outputs.
    s = s - jnp.max(s, axis=-1, keepdims=True)
    e = jnp.exp(s)
    return e / jnp.sum(e, axis=-1, keepdims=True)


# ---------------------------------------------------------------------------
# kernel A: maxpool + 1x1 conv + token assembly + LN1 + QKV + softmax + (attn@V)^T
# ---------------------------------------------------------------------------
def _embed_attn1_kernel(x4_ref, g_ref, cls_ref, wemb_ref, ln1w_ref, ln1b_ref,
                        wqkv_ref, yT_ref, attn_ref, *, scale, c_dim, c_pad):
    # 2x2 maxpool: element-wise max of the four pooling quarters (row 0 is a
    # dummy zero row that will be replaced by the CLS token below).
    pooled = jnp.maximum(jnp.maximum(x4_ref[0, 0], x4_ref[0, 1]),
                         jnp.maximum(x4_ref[0, 2], x4_ref[0, 3]))        # [N, Cin]
    # 1x1 conv as matmul; wemb is zero-padded to full width C, so the embed
    # channels land in lanes [0, Cd) and the gender lanes stay 0.
    emb = jnp.dot(pooled, wemb_ref[...],
                  preferred_element_type=jnp.float32)                    # [N, C]
    n_tok = emb.shape[0]
    # row 0 <- cls token (also zero-padded to width C), rows 1.. <- patch embed
    row0 = lax.broadcasted_iota(jnp.int32, (n_tok, c_dim), 0) == 0
    left = jnp.where(row0, jnp.broadcast_to(cls_ref[...], (n_tok, c_dim)), emb)
    # gender channels (zeros in the first Cd lanes) added to every token
    tok = left + jnp.broadcast_to(g_ref[0], (n_tok, c_dim))              # [N, C]

    # block1 attention (first half)
    h = _layernorm(tok, ln1w_ref[...], ln1b_ref[...])
    qkv = jnp.dot(h, wqkv_ref[...],
                  preferred_element_type=jnp.float32)                    # [N, 3*c_pad]
    q = qkv[:, 0:c_pad]
    k = qkv[:, c_pad:2 * c_pad]
    v = qkv[:, 2 * c_pad:3 * c_pad]
    s = lax.dot_general(q, k, (((1,), (1,)), ((), ())),
                        preferred_element_type=jnp.float32) * scale      # [N, N]
    p = _softmax_rows(s)
    attn_ref[0] = p[0:1, 1:]                                             # CLS row, patches only
    # (p @ v)^T computed directly on the MXU (contracting dim 0 of v); no
    # transpose needed in-kernel or between kernels.
    yT = lax.dot_general(v, p, (((0,), (1,)), ((), ())),
                         preferred_element_type=jnp.float32)             # [c_pad, N]
    yT_ref[0] = yT[0:c_dim, :]                                           # [C, N]


# ---------------------------------------------------------------------------
# kernel B: block1 tail + block2 attention + CLS-only block2 tail + norm + head
# ---------------------------------------------------------------------------
def _tail1_attn2_head_kernel(y_ref, wproj_ref, bproj_ref, ln2w_ref, ln2b_ref,
                             wfc1_ref, bfc1_ref, wfc2_ref, bfc2_ref,
                             ln1w_ref, ln1b_ref, wqk_ref, wv0_ref,
                             nw_ref, nb_ref, wh_ref, bh_ref,
                             attn_ref, logit_ref, *, scale, c_dim, c_pad):
    y = y_ref[0]                                                # [N, C] (scrambled)

    def block_tail(z):
        # Attention.proj  +  Block: x = attn_out; x = x + drop_path(x)  (== 2x)
        a = jnp.dot(z, wproj_ref[...],
                    preferred_element_type=jnp.float32) + bproj_ref[...]
        xr = a + a
        h = _layernorm(xr, ln2w_ref[...], ln2b_ref[...])
        m = _gelu_exact(jnp.dot(h, wfc1_ref[...],
                                preferred_element_type=jnp.float32) + bfc1_ref[...])
        m = jnp.dot(m, wfc2_ref[...],
                    preferred_element_type=jnp.float32) + bfc2_ref[...]
        return xr + m

    x1 = block_tail(y)                                          # block1 output [N, C]

    # "block2" attention (ViT.forward calls block1 twice; weights are shared).
    # Only the q|k weight is needed: v's CLS-relevant column comes from wv0.
    h2 = _layernorm(x1, ln1w_ref[...], ln1b_ref[...])
    qk = jnp.dot(h2, wqk_ref[...], preferred_element_type=jnp.float32)   # [N, 2*c_pad]
    q = qk[:, 0:c_pad]
    k = qk[:, c_pad:2 * c_pad]
    s = lax.dot_general(q, k, (((1,), (1,)), ((), ())),
                        preferred_element_type=jnp.float32) * scale      # [N, N]
    p = _softmax_rows(s)
    attn_ref[0] = p[0:1, 1:]                                             # CLS row, patches only

    # Only the CLS row of the scrambled (attn @ v) survives downstream:
    #   scr[0, j] = (attn @ v)[j, 0]  for j < C.
    # v[:, 0] as a ROW = wv0 @ h2^T, then r = vrow @ attn^T (A @ B^T matmuls only).
    vrow = lax.dot_general(wv0_ref[...], h2, (((1,), (1,)), ((), ())),
                           preferred_element_type=jnp.float32)           # [1, N]
    r = lax.dot_general(vrow, p, (((1,), (1,)), ((), ())),
                        preferred_element_type=jnp.float32)              # [1, N]
    r_cls = r[:, 0:c_dim]                                                # [1, C]

    x2 = block_tail(r_cls)                                               # [1, C]
    hn = _layernorm(x2, nw_ref[...], nb_ref[...])
    logit_ref[0] = jnp.tanh(
        jnp.dot(hn, wh_ref[...], preferred_element_type=jnp.float32) + bh_ref[...])


# ---------------------------------------------------------------------------
# one-time weight packing (hoisted out of the per-call jitted trace)
# ---------------------------------------------------------------------------
def pack_params(params):
    w_emb = params["w_emb"]                        # [Cin, Cd]
    Cd = w_emb.shape[1]
    bp = params["block1"]
    C = bp["wq"].shape[0]                          # cat_embed_dim
    c_pad = LANE
    padw = lambda w: jnp.pad(w, ((0, 0), (0, c_pad - C)))
    return {
        "w_emb_wide": jnp.pad(w_emb, ((0, 0), (0, C - Cd))),        # [Cin, C]
        "cls_wide": jnp.pad(params["cls_token"].reshape(1, Cd),
                            ((0, 0), (0, C - Cd))),                 # [1, C]
        "wqkv": jnp.concatenate([padw(bp["wq"]), padw(bp["wk"]),
                                 padw(bp["wv"])], axis=1),          # [C, 3*128]
        "wqk": jnp.concatenate([padw(bp["wq"]), padw(bp["wk"])],
                               axis=1),                             # [C, 2*128]
        "wv0": bp["wv"][:, 0:1].T,                                  # [1, C]
        "ln1_w": bp["ln1_w"], "ln1_b": bp["ln1_b"],
        "w_proj": bp["w_proj"], "b_proj": bp["b_proj"],
        "ln2_w": bp["ln2_w"], "ln2_b": bp["ln2_b"],
        "w_fc1": bp["w_fc1"], "b_fc1": bp["b_fc1"],
        "w_fc2": bp["w_fc2"], "b_fc2": bp["b_fc2"],
        "norm_w": params["norm_w"], "norm_b": params["norm_b"],
        "w_head": params["w_head"], "b_head": params["b_head"],
    }


# ---------------------------------------------------------------------------
# full ViT forward (2 pallas_calls + only free/input-dependent XLA glue)
# ---------------------------------------------------------------------------
def vit_forward(packed, x, gender_encode):
    B, Cin, H, W = x.shape
    Hp, Wp = H // 2, W // 2
    P = Hp * Wp
    N = P + 1

    C = packed["ln1_w"].shape[1]                   # cat_embed_dim
    G = gender_encode.shape[1]                     # 32 gender channels
    Cd = C - G                                     # embed_dim
    Hm = packed["w_fc1"].shape[1]
    R = packed["w_head"].shape[1]
    c_pad = LANE
    scale = float(C) ** -0.5                       # Attention.scale = dim**-0.5

    # ---- input-dependent layout glue ----
    # 2x2 maxpool quarters in token-major order, plus a dummy zero row for CLS.
    x4 = (x.reshape(B, Cin, Hp, 2, Wp, 2)
            .transpose(0, 3, 5, 2, 4, 1)
            .reshape(B, 4, P, Cin))
    x4 = jnp.pad(x4, ((0, 0), (0, 0), (1, 0), (0, 0)))          # [B, 4, N, Cin]
    g_wide = jnp.pad(gender_encode, ((0, 0), (Cd, 0)))[:, None, :]   # [B, 1, C]

    def per_b(shape):
        nd = len(shape)
        return pl.BlockSpec(shape, lambda b, _nd=nd: (b,) + (0,) * (_nd - 1))

    def w2(shape):
        return pl.BlockSpec(shape, lambda b: (0, 0))

    # ---- kernel A ----
    y1T, attn1 = pl.pallas_call(
        partial(_embed_attn1_kernel, scale=scale, c_dim=C, c_pad=c_pad),
        out_shape=(jax.ShapeDtypeStruct((B, C, N), jnp.float32),
                   jax.ShapeDtypeStruct((B, 1, N - 1), jnp.float32)),
        grid=(B,),
        in_specs=[per_b((1, 4, N, Cin)),
                  per_b((1, 1, C)),
                  w2((1, C)),
                  w2((Cin, C)),
                  w2((1, C)), w2((1, C)),
                  w2((C, 3 * c_pad))],
        out_specs=(per_b((1, C, N)), per_b((1, 1, N - 1))),
        compiler_params=pltpu.CompilerParams(dimension_semantics=("parallel",)),
    )(x4, g_wide, packed["cls_wide"], packed["w_emb_wide"],
      packed["ln1_w"], packed["ln1_b"], packed["wqkv"])

    # PyTorch `(attn @ v).transpose(1, 2).reshape(B, N, C)` scramble: kernel A
    # already emitted the transposed [C, N] buffer, so this is a free reshape.
    y1_scr = y1T.reshape(B, N, C)

    # ---- kernel B ----
    attn2, logits = pl.pallas_call(
        partial(_tail1_attn2_head_kernel, scale=scale, c_dim=C, c_pad=c_pad),
        out_shape=(jax.ShapeDtypeStruct((B, 1, N - 1), jnp.float32),
                   jax.ShapeDtypeStruct((B, 1, R), jnp.float32)),
        grid=(B,),
        in_specs=[per_b((1, N, C)),
                  w2((C, C)), w2((1, C)),
                  w2((1, C)), w2((1, C)),
                  w2((C, Hm)), w2((1, Hm)),
                  w2((Hm, C)), w2((1, C)),
                  w2((1, C)), w2((1, C)),
                  w2((C, 2 * c_pad)), w2((1, C)),
                  w2((1, C)), w2((1, C)),
                  w2((C, R)), w2((1, R))],
        out_specs=(per_b((1, 1, N - 1)), per_b((1, 1, R))),
        compiler_params=pltpu.CompilerParams(dimension_semantics=("parallel",)),
    )(y1_scr, packed["w_proj"], packed["b_proj"], packed["ln2_w"], packed["ln2_b"],
      packed["w_fc1"], packed["b_fc1"], packed["w_fc2"], packed["b_fc2"],
      packed["ln1_w"], packed["ln1_b"], packed["wqk"], packed["wv0"],
      packed["norm_w"], packed["norm_b"], packed["w_head"], packed["b_head"])

    attn_size = int(math.isqrt(N - 1))
    token_attn1 = attn1.reshape(B, 1, attn_size, attn_size)     # free reshape
    token_attn2 = attn2.reshape(B, 1, attn_size, attn_size)     # free reshape
    return logits.reshape(B, R), token_attn1, token_attn2


# ---------------------------------------------------------------------------
# deterministic synthetic parameter init (mirrors _init_vit_weights shapes)
# ---------------------------------------------------------------------------
def init_params(key, *, img_size=16, in_c=8, linear_ratio=2,
                representation_ratio=2, mlp_ratio=4.0):
    embed_dim = in_c // linear_ratio
    cat_dim = embed_dim + 32
    mlp_hidden = int(cat_dim * mlp_ratio)
    rep_dim = in_c * representation_ratio

    keys = jax.random.split(key, 8)

    def tn(k, shape, std):  # trunc_normal_(std=...)
        return (std * jax.random.truncated_normal(k, -2.0, 2.0, shape)
                ).astype(jnp.float32)

    # Conv2d 1x1: kaiming_normal_(mode='fan_out') -> std = sqrt(2 / fan_out)
    w_conv = (math.sqrt(2.0 / embed_dim) *
              jax.random.normal(keys[0], (embed_dim, in_c))).astype(jnp.float32)

    qkv = tn(keys[3], (3 * cat_dim, cat_dim), 0.01)       # torch [out, in]
    block1 = {
        "ln1_w": jnp.ones((1, cat_dim), jnp.float32),
        "ln1_b": jnp.zeros((1, cat_dim), jnp.float32),
        "wq": qkv[0 * cat_dim:1 * cat_dim].T,
        "wk": qkv[1 * cat_dim:2 * cat_dim].T,
        "wv": qkv[2 * cat_dim:3 * cat_dim].T,
        "w_proj": tn(keys[4], (cat_dim, cat_dim), 0.01).T,
        "b_proj": jnp.zeros((1, cat_dim), jnp.float32),
        "ln2_w": jnp.ones((1, cat_dim), jnp.float32),
        "ln2_b": jnp.zeros((1, cat_dim), jnp.float32),
        "w_fc1": tn(keys[5], (mlp_hidden, cat_dim), 0.01).T,
        "b_fc1": jnp.zeros((1, mlp_hidden), jnp.float32),
        "w_fc2": tn(keys[6], (cat_dim, mlp_hidden), 0.01).T,
        "b_fc2": jnp.zeros((1, cat_dim), jnp.float32),
    }
    return {
        "w_emb": w_conv.T,                                # [in_c, embed_dim]
        "cls_token": tn(keys[1], (1, 1, embed_dim), 0.02),
        "norm_w": jnp.ones((1, cat_dim), jnp.float32),
        "norm_b": jnp.zeros((1, cat_dim), jnp.float32),
        "w_head": tn(keys[2], (rep_dim, cat_dim), 0.01).T,  # [cat_dim, rep_dim]
        "b_head": jnp.zeros((1, rep_dim), jnp.float32),
        "block1": block1,
    }


if __name__ == "__main__":
    B, in_c, img_size = 2, 8, 16        # small shapes consistent with the module
    key = jax.random.PRNGKey(0)
    kp, kx, kg = jax.random.split(key, 3)

    params = init_params(kp, img_size=img_size, in_c=in_c)
    packed = pack_params(params)        # one-time weight packing (outside jit)
    x = jax.random.normal(kx, (B, in_c, img_size, img_size), jnp.float32)  # NCHW
    gender = jax.random.normal(kg, (B, 32), jnp.float32)

    logits, ta1, ta2 = jax.jit(vit_forward)(packed, x, gender)
    jax.block_until_ready((logits, ta1, ta2))

    assert logits.shape == (B, in_c * 2)                       # [B, representation_dim]
    assert ta1.shape == (B, 1, img_size // 2, img_size // 2)   # token_attn1
    assert ta2.shape == (B, 1, img_size // 2, img_size // 2)   # token_attn2
    print("KERNEL_OK")
</pallas_src>

<mosaic_0001>
module attributes {stable_mosaic.version = 11 : i64} {
  func.func @_embed_attn1_kernel(%arg0: i32, %arg1: memref<1x4x65x8xf32, #tpu.memory_space<vmem>>, %arg2: memref<1x1x36xf32, #tpu.memory_space<vmem>>, %arg3: memref<1x36xf32, #tpu.memory_space<vmem>>, %arg4: memref<8x36xf32, #tpu.memory_space<vmem>>, %arg5: memref<1x36xf32, #tpu.memory_space<vmem>>, %arg6: memref<1x36xf32, #tpu.memory_space<vmem>>, %arg7: memref<36x384xf32, #tpu.memory_space<vmem>>, %arg8: memref<1x36x65xf32, #tpu.memory_space<vmem>>, %arg9: memref<1x1x64xf32, #tpu.memory_space<vmem>>) attributes {dimension_semantics = [#tpu.dimension_semantics<parallel>], iteration_bounds = array<i64: 2>, scalar_prefetch = 0 : i64, scratch_operands = 0 : i64, tpu.core_type = #tpu.core_type<tc>, window_params = [{transform_indices = @transform_0, window_bounds = array<i64: 1, 4, 65, 8>}, {transform_indices = @transform_1, window_bounds = array<i64: 1, 1, 36>}, {pipeline_mode = #tpu.pipeline_mode<synchronous>, transform_indices = @transform_2, window_bounds = array<i64: 1, 36>}, {pipeline_mode = #tpu.pipeline_mode<synchronous>, transform_indices = @transform_3, window_bounds = array<i64: 8, 36>}, {pipeline_mode = #tpu.pipeline_mode<synchronous>, transform_indices = @transform_4, window_bounds = array<i64: 1, 36>}, {pipeline_mode = #tpu.pipeline_mode<synchronous>, transform_indices = @transform_5, window_bounds = array<i64: 1, 36>}, {pipeline_mode = #tpu.pipeline_mode<synchronous>, transform_indices = @transform_6, window_bounds = array<i64: 36, 384>}, {transform_indices = @transform_7, window_bounds = array<i64: 1, 36, 65>}, {transform_indices = @transform_8, window_bounds = array<i64: 1, 1, 64>}]} {
    %c0 = arith.constant 0 : index
    %c0_0 = arith.constant 0 : index
    %c0_1 = arith.constant 0 : index
    %c0_2 = arith.constant 0 : index
    %0 = vector.load %arg1[%c0, %c0_0, %c0_1, %c0_2] : memref<1x4x65x8xf32, #tpu.memory_space<vmem>>, vector<1x1x65x8xf32>
    %1 = vector.shape_cast %0 : vector<1x1x65x8xf32> to vector<65x8xf32>
    %c0_3 = arith.constant 0 : index
    %c1 = arith.constant 1 : index
    %c0_4 = arith.constant 0 : index
    %c0_5 = arith.constant 0 : index
    %2 = vector.load %arg1[%c0_3, %c1, %c0_4, %c0_5] : memref<1x4x65x8xf32, #tpu.memory_space<vmem>>, vector<1x1x65x8xf32>
    %3 = vector.shape_cast %2 : vector<1x1x65x8xf32> to vector<65x8xf32>
    %4 = arith.maximumf %1, %3 : vector<65x8xf32>
    %c0_6 = arith.constant 0 : index
    %c2 = arith.constant 2 : index
    %c0_7 = arith.constant 0 : index
    %c0_8 = arith.constant 0 : index
    %5 = vector.load %arg1[%c0_6, %c2, %c0_7, %c0_8] : memref<1x4x65x8xf32, #tpu.memory_space<vmem>>, vector<1x1x65x8xf32>
    %6 = vector.shape_cast %5 : vector<1x1x65x8xf32> to vector<65x8xf32>
    %c0_9 = arith.constant 0 : index
    %c3 = arith.constant 3 : index
    %c0_10 = arith.constant 0 : index
    %c0_11 = arith.constant 0 : index
    %7 = vector.load %arg1[%c0_9, %c3, %c0_10, %c0_11] : memref<1x4x65x8xf32, #tpu.memory_space<vmem>>, vector<1x1x65x8xf32>
    %8 = vector.shape_cast %7 : vector<1x1x65x8xf32> to vector<65x8xf32>
    %9 = arith.maximumf %6, %8 : vector<65x8xf32>
    %10 = arith.maximumf %4, %9 : vector<65x8xf32>
    %c0_12 = arith.constant 0 : index
    %c0_13 = arith.constant 0 : index
    %11 = vector.load %arg4[%c0_12, %c0_13] : memref<8x36xf32, #tpu.memory_space<vmem>>, vector<8x36xf32>
    %cst = arith.constant dense<0.000000e+00> : vector<65x36xf32>
    %12 = tpu.matmul %10, %11, %cst {dimension_numbers = #tpu.dot_dimension_numbers<[1], [0], [0], [1], [0, 0, 1, 1], [], []>} : vector<65x8xf32>, vector<8x36xf32>, vector<65x36xf32> -> vector<65x36xf32>
    %13 = tpu.iota {dimensions = array<i32: 0>} : vector<65x36xi32>
    %c0_i32 = arith.constant 0 : i32
    %14 = vector.broadcast %c0_i32 : i32 to vector<65x36xi32>
    %15 = arith.cmpi eq, %13, %14 : vector<65x36xi32>
    %c0_14 = arith.constant 0 : index
    %c0_15 = arith.constant 0 : index
    %16 = vector.load %arg3[%c0_14, %c0_15] : memref<1x36xf32, #tpu.memory_space<vmem>>, vector<1x36xf32>
    %17 = vector.shape_cast %16 : vector<1x36xf32> to vector<1x36xf32>
    %18 = vector.broadcast %17 : vector<1x36xf32> to vector<65x36xf32>
    %19 = arith.select %15, %18, %12 : vector<65x36xi1>, vector<65x36xf32>
    %c0_16 = arith.constant 0 : index
    %c0_17 = arith.constant 0 : index
    %c0_18 = arith.constant 0 : index
    %20 = vector.load %arg2[%c0_16, %c0_17, %c0_18] : memref<1x1x36xf32, #tpu.memory_space<vmem>>, vector<1x1x36xf32>
    %21 = vector.shape_cast %20 : vector<1x1x36xf32> to vector<1x36xf32>
    %22 = vector.shape_cast %21 : vector<1x36xf32> to vector<1x36xf32>
    %23 = vector.broadcast %22 : vector<1x36xf32> to vector<65x36xf32>
    %24 = arith.addf %19, %23 : vector<65x36xf32>
    %c0_19 = arith.constant 0 : index
    %c0_20 = arith.constant 0 : index
    %25 = vector.load %arg5[%c0_19, %c0_20] : memref<1x36xf32, #tpu.memory_space<vmem>>, vector<1x36xf32>
    %c0_21 = arith.constant 0 : index
    %c0_22 = arith.constant 0 : index
    %26 = vector.load %arg6[%c0_21, %c0_22] : memref<1x36xf32, #tpu.memory_space<vmem>>, vector<1x36xf32>
    %cst_23 = arith.constant dense<0.000000e+00> : vector<65xf32>
    %27 = vector.multi_reduction <add>, %24, %cst_23 [1] : vector<65x36xf32> to vector<65xf32>
    %28 = vector.shape_cast %27 : vector<65xf32> to vector<65x1xf32>
    %cst_24 = arith.constant 3.600000e+01 : f32
    %29 = vector.broadcast %cst_24 : f32 to vector<65x1xf32>
    %30 = arith.divf %28, %29 : vector<65x1xf32>
    %31 = vector.broadcast %30 : vector<65x1xf32> to vector<65x36xf32>
    %32 = arith.subf %24, %31 : vector<65x36xf32>
    %33 = arith.mulf %32, %32 : vector<65x36xf32>
    %cst_25 = arith.constant dense<0.000000e+00> : vector<65xf32>
    %34 = vector.multi_reduction <add>, %33, %cst_25 [1] : vector<65x36xf32> to vector<65xf32>
    %35 = vector.shape_cast %34 : vector<65xf32> to vector<65x1xf32>
    %cst_26 = arith.constant 3.600000e+01 : f32
    %36 = vector.broadcast %cst_26 : f32 to vector<65x1xf32>
    %37 = arith.divf %35, %36 : vector<65x1xf32>
    %38 = vector.broadcast %30 : vector<65x1xf32> to vector<65x36xf32>
    %39 = arith.subf %24, %38 : vector<65x36xf32>
    %cst_27 = arith.constant 9.99999997E-7 : f32
    %40 = vector.broadcast %cst_27 : f32 to vector<65x1xf32>
    %41 = arith.addf %37, %40 : vector<65x1xf32>
    %42 = math.rsqrt %41 : vector<65x1xf32>
    %43 = vector.broadcast %42 : vector<65x1xf32> to vector<65x36xf32>
    %44 = arith.mulf %39, %43 : vector<65x36xf32>
    %45 = vector.broadcast %25 : vector<1x36xf32> to vector<65x36xf32>
    %46 = arith.mulf %44, %45 : vector<65x36xf32>
    %47 = vector.broadcast %26 : vector<1x36xf32> to vector<65x36xf32>
    %48 = arith.addf %46, %47 : vector<65x36xf32>
    %c0_28 = arith.constant 0 : index
    %c0_29 = arith.constant 0 : index
    %49 = vector.load %arg7[%c0_28, %c0_29] : memref<36x384xf32, #tpu.memory_space<vmem>>, vector<36x384xf32>
    %cst_30 = arith.constant dense<0.000000e+00> : vector<65x384xf32>
    %50 = tpu.matmul %48, %49, %cst_30 {dimension_numbers = #tpu.dot_dimension_numbers<[1], [0], [0], [1], [0, 0, 1, 1], [], []>} : vector<65x36xf32>, vector<36x384xf32>, vector<65x384xf32> -> vector<65x384xf32>
    %51 = vector.extract_strided_slice %50 {offsets = [0, 0], sizes = [65, 128], strides = [1, 1]} : vector<65x384xf32> to vector<65x128xf32>
    %52 = vector.extract_strided_slice %50 {offsets = [0, 128], sizes = [65, 128], strides = [1, 1]} : vector<65x384xf32> to vector<65x128xf32>
    %53 = vector.extract_strided_slice %50 {offsets = [0, 256], sizes = [65, 128], strides = [1, 1]} : vector<65x384xf32> to vector<65x128xf32>
    %cst_31 = arith.constant dense<0.000000e+00> : vector<65x65xf32>
    %54 = tpu.matmul %51, %52, %cst_31 {dimension_numbers = #tpu.dot_dimension_numbers<[1], [1], [0], [0], [0, 0, 1, 0], [], []>} : vector<65x128xf32>, vector<65x128xf32>, vector<65x65xf32> -> vector<65x65xf32>
    %cst_32 = arith.constant 0.166666672 : f32
    %55 = vector.broadcast %cst_32 : f32 to vector<65x65xf32>
    %56 = arith.mulf %54, %55 : vector<65x65xf32>
    %cst_33 = arith.constant dense<0xFF800000> : vector<65xf32>
    %57 = vector.multi_reduction <maximumf>, %56, %cst_33 [1] : vector<65x65xf32> to vector<65xf32>
    %58 = vector.shape_cast %57 : vector<65xf32> to vector<65x1xf32>
    %59 = vector.broadcast %58 : vector<65x1xf32> to vector<65x65xf32>
    %60 = arith.subf %56, %59 : vector<65x65xf32>
    %61 = math.exp %60 : vector<65x65xf32>
    %cst_34 = arith.constant dense<0.000000e+00> : vector<65xf32>
    %62 = vector.multi_reduction <add>, %61, %cst_34 [1] : vector<65x65xf32> to vector<65xf32>
    %63 = vector.shape_cast %62 : vector<65xf32> to vector<65x1xf32>
    %64 = vector.broadcast %63 : vector<65x1xf32> to vector<65x65xf32>
    %65 = arith.divf %61, %64 : vector<65x65xf32>
    %66 = vector.extract_strided_slice %65 {offsets = [0, 1], sizes = [1, 64], strides = [1, 1]} : vector<65x65xf32> to vector<1x64xf32>
    %c0_35 = arith.constant 0 : index
    %c0_36 = arith.constant 0 : index
    %c0_37 = arith.constant 0 : index
    %67 = vector.load %arg9[%c0_35, %c0_36, %c0_37] : memref<1x1x64xf32, #tpu.memory_space<vmem>>, vector<1x1x64xf32>
    %68 = vector.shape_cast %67 : vector<1x1x64xf32> to vector<1x64xf32>
    %69 = vector.shape_cast %66 : vector<1x64xf32> to vector<1x1x64xf32>
    tpu.vector_store %arg9[%c0_35, %c0_36, %c0_37], %69 {strides = array<i32>} : memref<1x1x64xf32, #tpu.memory_space<vmem>>, vector<1x1x64xf32>,
    %cst_38 = arith.constant dense<0.000000e+00> : vector<128x65xf32>
    %70 = tpu.matmul %53, %65, %cst_38 {dimension_numbers = #tpu.dot_dimension_numbers<[0], [1], [1], [0], [0, 1, 1, 0], [], []>} : vector<65x128xf32>, vector<65x65xf32>, vector<128x65xf32> -> vector<128x65xf32>
    %71 = vector.extract_strided_slice %70 {offsets = [0, 0], sizes = [36, 65], strides = [1, 1]} : vector<128x65xf32> to vector<36x65xf32>
    %c0_39 = arith.constant 0 : index
    %c0_40 = arith.constant 0 : index
    %c0_41 = arith.constant 0 : index
    %72 = vector.load %arg8[%c0_39, %c0_40, %c0_41] : memref<1x36x65xf32, #tpu.memory_space<vmem>>, vector<1x36x65xf32>
    %73 = vector.shape_cast %72 : vector<1x36x65xf32> to vector<36x65xf32>
    %74 = vector.shape_cast %71 : vector<36x65xf32> to vector<1x36x65xf32>
    tpu.vector_store %arg8[%c0_39, %c0_40, %c0_41], %74 {strides = array<i32>} : memref<1x36x65xf32, #tpu.memory_space<vmem>>, vector<1x36x65xf32>,
    return
  }
  func.func @transform_0(%arg0: i32) -> (i32, i32, i32, i32) {
    %c0_i32 = arith.constant 0 : i32
    %c0_i32_0 = arith.constant 0 : i32
    %c0_i32_1 = arith.constant 0 : i32
    %c0_i32_2 = arith.constant 0 : i32
    return %arg0, %c0_i32, %c0_i32_0, %c0_i32_1 : i32, i32, i32, i32
  }
  func.func @transform_1(%arg0: i32) -> (i32, i32, i32) {
    %c0_i32 = arith.constant 0 : i32
    %c0_i32_0 = arith.constant 0 : i32
    %c0_i32_1 = arith.constant 0 : i32
    return %arg0, %c0_i32, %c0_i32_0 : i32, i32, i32
  }
  func.func @transform_2(%arg0: i32) -> (i32, i32) {
    %c0_i32 = arith.constant 0 : i32
    %c0_i32_0 = arith.constant 0 : i32
    %c0_i32_1 = arith.constant 0 : i32
    return %c0_i32, %c0_i32_0 : i32, i32
  }
  func.func @transform_3(%arg0: i32) -> (i32, i32) {
    %c0_i32 = arith.constant 0 : i32
    %c0_i32_0 = arith.constant 0 : i32
    %c0_i32_1 = arith.constant 0 : i32
    return %c0_i32, %c0_i32_0 : i32, i32
  }
  func.func @transform_4(%arg0: i32) -> (i32, i32) {
    %c0_i32 = arith.constant 0 : i32
    %c0_i32_0 = arith.constant 0 : i32
    %c0_i32_1 = arith.constant 0 : i32
    return %c0_i32, %c0_i32_0 : i32, i32
  }
  func.func @transform_5(%arg0: i32) -> (i32, i32) {
    %c0_i32 = arith.constant 0 : i32
    %c0_i32_0 = arith.constant 0 : i32
    %c0_i32_1 = arith.constant 0 : i32
    return %c0_i32, %c0_i32_0 : i32, i32
  }
  func.func @transform_6(%arg0: i32) -> (i32, i32) {
    %c0_i32 = arith.constant 0 : i32
    %c0_i32_0 = arith.constant 0 : i32
    %c0_i32_1 = arith.constant 0 : i32
    return %c0_i32, %c0_i32_0 : i32, i32
  }
  func.func @transform_7(%arg0: i32) -> (i32, i32, i32) {
    %c0_i32 = arith.constant 0 : i32
    %c0_i32_0 = arith.constant 0 : i32
    %c0_i32_1 = arith.constant 0 : i32
    return %arg0, %c0_i32, %c0_i32_0 : i32, i32, i32
  }
  func.func @transform_8(%arg0: i32) -> (i32, i32, i32) {
    %c0_i32 = arith.constant 0 : i32
    %c0_i32_0 = arith.constant 0 : i32
    %c0_i32_1 = arith.constant 0 : i32
    return %arg0, %c0_i32, %c0_i32_0 : i32, i32, i32
  }
}

module attributes {stable_mosaic.version = 11 : i64} {
  func.func @_tail1_attn2_head_kernel(%arg0: i32, %arg1: memref<1x65x36xf32, #tpu.memory_space<vmem>>, %arg2: memref<36x36xf32, #tpu.memory_space<vmem>>, %arg3: memref<1x36xf32, #tpu.memory_space<vmem>>, %arg4: memref<1x36xf32, #tpu.memory_space<vmem>>, %arg5: memref<1x36xf32, #tpu.memory_space<vmem>>, %arg6: memref<36x144xf32, #tpu.memory_space<vmem>>, %arg7: memref<1x144xf32, #tpu.memory_space<vmem>>, %arg8: memref<144x36xf32, #tpu.memory_space<vmem>>, %arg9: memref<1x36xf32, #tpu.memory_space<vmem>>, %arg10: memref<1x36xf32, #tpu.memory_space<vmem>>, %arg11: memref<1x36xf32, #tpu.memory_space<vmem>>, %arg12: memref<36x256xf32, #tpu.memory_space<vmem>>, %arg13: memref<1x36xf32, #tpu.memory_space<vmem>>, %arg14: memref<1x36xf32, #tpu.memory_space<vmem>>, %arg15: memref<1x36xf32, #tpu.memory_space<vmem>>, %arg16: memref<36x16xf32, #tpu.memory_space<vmem>>, %arg17: memref<1x16xf32, #tpu.memory_space<vmem>>, %arg18: memref<1x1x64xf32, #tpu.memory_space<vmem>>, %arg19: memref<1x1x16xf32, #tpu.memory_space<vmem>>) attributes {dimension_semantics = [#tpu.dimension_semantics<parallel>], iteration_bounds = array<i64: 2>, scalar_prefetch = 0 : i64, scratch_operands = 0 : i64, tpu.core_type = #tpu.core_type<tc>, window_params = [{transform_indices = @transform_0, window_bounds = array<i64: 1, 65, 36>}, {pipeline_mode = #tpu.pipeline_mode<synchronous>, transform_indices = @transform_1, window_bounds = array<i64: 36, 36>}, {pipeline_mode = #tpu.pipeline_mode<synchronous>, transform_indices = @transform_2, window_bounds = array<i64: 1, 36>}, {pipeline_mode = #tpu.pipeline_mode<synchronous>, transform_indices = @transform_3, window_bounds = array<i64: 1, 36>}, {pipeline_mode = #tpu.pipeline_mode<synchronous>, transform_indices = @transform_4, window_bounds = array<i64: 1, 36>}, {pipeline_mode = #tpu.pipeline_mode<synchronous>, transform_indices = @transform_5, window_bounds = array<i64: 36, 144>}, {pipeline_mode = #tpu.pipeline_mode<synchronous>, transform_indices = @transform_6, window_bounds = array<i64: 1, 144>}, {pipeline_mode = #tpu.pipeline_mode<synchronous>, transform_indices = @transform_7, window_bounds = array<i64: 144, 36>}, {pipeline_mode = #tpu.pipeline_mode<synchronous>, transform_indices = @transform_8, window_bounds = array<i64: 1, 36>}, {pipeline_mode = #tpu.pipeline_mode<synchronous>, transform_indices = @transform_9, window_bounds = array<i64: 1, 36>}, {pipeline_mode = #tpu.pipeline_mode<synchronous>, transform_indices = @transform_10, window_bounds = array<i64: 1, 36>}, {pipeline_mode = #tpu.pipeline_mode<synchronous>, transform_indices = @transform_11, window_bounds = array<i64: 36, 256>}, {pipeline_mode = #tpu.pipeline_mode<synchronous>, transform_indices = @transform_12, window_bounds = array<i64: 1, 36>}, {pipeline_mode = #tpu.pipeline_mode<synchronous>, transform_indices = @transform_13, window_bounds = array<i64: 1, 36>}, {pipeline_mode = #tpu.pipeline_mode<synchronous>, transform_indices = @transform_14, window_bounds = array<i64: 1, 36>}, {pipeline_mode = #tpu.pipeline_mode<synchronous>, transform_indices = @transform_15, window_bounds = array<i64: 36, 16>}, {pipeline_mode = #tpu.pipeline_mode<synchronous>, transform_indices = @transform_16, window_bounds = array<i64: 1, 16>}, {transform_indices = @transform_17, window_bounds = array<i64: 1, 1, 64>}, {transform_indices = @transform_18, window_bounds = array<i64: 1, 1, 16>}]} {
    %c0 = arith.constant 0 : index
    %c0_0 = arith.constant 0 : index
    %c0_1 = arith.constant 0 : index
    %0 = vector.load %arg1[%c0, %c0_0, %c0_1] : memref<1x65x36xf32, #tpu.memory_space<vmem>>, vector<1x65x36xf32>
    %1 = vector.shape_cast %0 : vector<1x65x36xf32> to vector<65x36xf32>
    %c0_2 = arith.constant 0 : index
    %c0_3 = arith.constant 0 : index
    %2 = vector.load %arg2[%c0_2, %c0_3] : memref<36x36xf32, #tpu.memory_space<vmem>>, vector<36x36xf32>
    %cst = arith.constant dense<0.000000e+00> : vector<65x36xf32>
    %3 = tpu.matmul %1, %2, %cst {dimension_numbers = #tpu.dot_dimension_numbers<[1], [0], [0], [1], [0, 0, 1, 1], [], []>} : vector<65x36xf32>, vector<36x36xf32>, vector<65x36xf32> -> vector<65x36xf32>
    %c0_4 = arith.constant 0 : index
    %c0_5 = arith.constant 0 : index
    %4 = vector.load %arg3[%c0_4, %c0_5] : memref<1x36xf32, #tpu.memory_space<vmem>>, vector<1x36xf32>
    %5 = vector.broadcast %4 : vector<1x36xf32> to vector<65x36xf32>
    %6 = arith.addf %3, %5 : vector<65x36xf32>
    %7 = arith.addf %6, %6 : vector<65x36xf32>
    %c0_6 = arith.constant 0 : index
    %c0_7 = arith.constant 0 : index
    %8 = vector.load %arg4[%c0_6, %c0_7] : memref<1x36xf32, #tpu.memory_space<vmem>>, vector<1x36xf32>
    %c0_8 = arith.constant 0 : index
    %c0_9 = arith.constant 0 : index
    %9 = vector.load %arg5[%c0_8, %c0_9] : memref<1x36xf32, #tpu.memory_space<vmem>>, vector<1x36xf32>
    %cst_10 = arith.constant dense<0.000000e+00> : vector<65xf32>
    %10 = vector.multi_reduction <add>, %7, %cst_10 [1] : vector<65x36xf32> to vector<65xf32>
    %11 = vector.shape_cast %10 : vector<65xf32> to vector<65x1xf32>
    %cst_11 = arith.constant 3.600000e+01 : f32
    %12 = vector.broadcast %cst_11 : f32 to vector<65x1xf32>
    %13 = arith.divf %11, %12 : vector<65x1xf32>
    %14 = vector.broadcast %13 : vector<65x1xf32> to vector<65x36xf32>
    %15 = arith.subf %7, %14 : vector<65x36xf32>
    %16 = arith.mulf %15, %15 : vector<65x36xf32>
    %cst_12 = arith.constant dense<0.000000e+00> : vector<65xf32>
    %17 = vector.multi_reduction <add>, %16, %cst_12 [1] : vector<65x36xf32> to vector<65xf32>
    %18 = vector.shape_cast %17 : vector<65xf32> to vector<65x1xf32>
    %cst_13 = arith.constant 3.600000e+01 : f32
    %19 = vector.broadcast %cst_13 : f32 to vector<65x1xf32>
    %20 = arith.divf %18, %19 : vector<65x1xf32>
    %21 = vector.broadcast %13 : vector<65x1xf32> to vector<65x36xf32>
    %22 = arith.subf %7, %21 : vector<65x36xf32>
    %cst_14 = arith.constant 9.99999997E-7 : f32
    %23 = vector.broadcast %cst_14 : f32 to vector<65x1xf32>
    %24 = arith.addf %20, %23 : vector<65x1xf32>
    %25 = math.rsqrt %24 : vector<65x1xf32>
    %26 = vector.broadcast %25 : vector<65x1xf32> to vector<65x36xf32>
    %27 = arith.mulf %22, %26 : vector<65x36xf32>
    %28 = vector.broadcast %8 : vector<1x36xf32> to vector<65x36xf32>
    %29 = arith.mulf %27, %28 : vector<65x36xf32>
    %30 = vector.broadcast %9 : vector<1x36xf32> to vector<65x36xf32>
    %31 = arith.addf %29, %30 : vector<65x36xf32>
    %c0_15 = arith.constant 0 : index
    %c0_16 = arith.constant 0 : index
    %32 = vector.load %arg6[%c0_15, %c0_16] : memref<36x144xf32, #tpu.memory_space<vmem>>, vector<36x144xf32>
    %cst_17 = arith.constant dense<0.000000e+00> : vector<65x144xf32>
    %33 = tpu.matmul %31, %32, %cst_17 {dimension_numbers = #tpu.dot_dimension_numbers<[1], [0], [0], [1], [0, 0, 1, 1], [], []>} : vector<65x36xf32>, vector<36x144xf32>, vector<65x144xf32> -> vector<65x144xf32>
    %c0_18 = arith.constant 0 : index
    %c0_19 = arith.constant 0 : index
    %34 = vector.load %arg7[%c0_18, %c0_19] : memref<1x144xf32, #tpu.memory_space<vmem>>, vector<1x144xf32>
    %35 = vector.broadcast %34 : vector<1x144xf32> to vector<65x144xf32>
    %36 = arith.addf %33, %35 : vector<65x144xf32>
    %cst_20 = arith.constant 5.000000e-01 : f32
    %37 = vector.broadcast %cst_20 : f32 to vector<65x144xf32>
    %38 = arith.mulf %37, %36 : vector<65x144xf32>
    %cst_21 = arith.constant 0.707106769 : f32
    %39 = vector.broadcast %cst_21 : f32 to vector<65x144xf32>
    %40 = arith.mulf %36, %39 : vector<65x144xf32>
    %cst_22 = arith.constant 0.000000e+00 : f32
    %41 = vector.broadcast %cst_22 : f32 to vector<65x144xf32>
    %42 = arith.cmpf olt, %40, %41 : vector<65x144xf32>
    %cst_23 = arith.constant -1.000000e+00 : f32
    %cst_24 = arith.constant 1.000000e+00 : f32
    %43 = vector.broadcast %cst_23 : f32 to vector<65x144xf32>
    %44 = vector.broadcast %cst_24 : f32 to vector<65x144xf32>
    %45 = arith.select %42, %43, %44 : vector<65x144xi1>, vector<65x144xf32>
    %46 = math.absf %40 : vector<65x144xf32>
    %cst_25 = arith.constant 0.327591091 : f32
    %47 = vector.broadcast %cst_25 : f32 to vector<65x144xf32>
    %48 = arith.mulf %47, %46 : vector<65x144xf32>
    %cst_26 = arith.constant 1.000000e+00 : f32
    %49 = vector.broadcast %cst_26 : f32 to vector<65x144xf32>
    %50 = arith.addf %49, %48 : vector<65x144xf32>
    %cst_27 = arith.constant 1.000000e+00 : f32
    %51 = vector.broadcast %cst_27 : f32 to vector<65x144xf32>
    %52 = arith.divf %51, %50 : vector<65x144xf32>
    %cst_28 = arith.constant 1.06140542 : f32
    %53 = vector.broadcast %cst_28 : f32 to vector<65x144xf32>
    %54 = arith.mulf %53, %52 : vector<65x144xf32>
    %cst_29 = arith.constant -1.45315206 : f32
    %55 = vector.broadcast %cst_29 : f32 to vector<65x144xf32>
    %56 = arith.addf %54, %55 : vector<65x144xf32>
    %57 = arith.mulf %56, %52 : vector<65x144xf32>
    %cst_30 = arith.constant 1.42141378 : f32
    %58 = vector.broadcast %cst_30 : f32 to vector<65x144xf32>
    %59 = arith.addf %57, %58 : vector<65x144xf32>
    %60 = arith.mulf %59, %52 : vector<65x144xf32>
    %cst_31 = arith.constant -0.284496725 : f32
    %61 = vector.broadcast %cst_31 : f32 to vector<65x144xf32>
    %62 = arith.addf %60, %61 : vector<65x144xf32>
    %63 = arith.mulf %62, %52 : vector<65x144xf32>
    %cst_32 = arith.constant 0.254829586 : f32
    %64 = vector.broadcast %cst_32 : f32 to vector<65x144xf32>
    %65 = arith.addf %63, %64 : vector<65x144xf32>
    %66 = arith.mulf %65, %52 : vector<65x144xf32>
    %cst_33 = arith.constant 0.000000e+00 : f32
    %67 = vector.broadcast %cst_33 : f32 to vector<65x144xf32>
    %68 = arith.subf %67, %46 : vector<65x144xf32>
    %69 = arith.mulf %68, %46 : vector<65x144xf32>
    %70 = math.exp %69 : vector<65x144xf32>
    %71 = arith.mulf %66, %70 : vector<65x144xf32>
    %cst_34 = arith.constant 1.000000e+00 : f32
    %72 = vector.broadcast %cst_34 : f32 to vector<65x144xf32>
    %73 = arith.subf %72, %71 : vector<65x144xf32>
    %74 = arith.mulf %45, %73 : vector<65x144xf32>
    %cst_35 = arith.constant 1.000000e+00 : f32
    %75 = vector.broadcast %cst_35 : f32 to vector<65x144xf32>
    %76 = arith.addf %75, %74 : vector<65x144xf32>
    %77 = arith.mulf %38, %76 : vector<65x144xf32>
    %c0_36 = arith.constant 0 : index
    %c0_37 = arith.constant 0 : index
    %78 = vector.load %arg8[%c0_36, %c0_37] : memref<144x36xf32, #tpu.memory_space<vmem>>, vector<144x36xf32>
    %cst_38 = arith.constant dense<0.000000e+00> : vector<65x36xf32>
    %79 = tpu.matmul %77, %78, %cst_38 {dimension_numbers = #tpu.dot_dimension_numbers<[1], [0], [0], [1], [0, 0, 1, 1], [], []>} : vector<65x144xf32>, vector<144x36xf32>, vector<65x36xf32> -> vector<65x36xf32>
    %c0_39 = arith.constant 0 : index
    %c0_40 = arith.constant 0 : index
    %80 = vector.load %arg9[%c0_39, %c0_40] : memref<1x36xf32, #tpu.memory_space<vmem>>, vector<1x36xf32>
    %81 = vector.broadcast %80 : vector<1x36xf32> to vector<65x36xf32>
    %82 = arith.addf %79, %81 : vector<65x36xf32>
    %83 = arith.addf %7, %82 : vector<65x36xf32>
    %c0_41 = arith.constant 0 : index
    %c0_42 = arith.constant 0 : index
    %84 = vector.load %arg10[%c0_41, %c0_42] : memref<1x36xf32, #tpu.memory_space<vmem>>, vector<1x36xf32>
    %c0_43 = arith.constant 0 : index
    %c0_44 = arith.constant 0 : index
    %85 = vector.load %arg11[%c0_43, %c0_44] : memref<1x36xf32, #tpu.memory_space<vmem>>, vector<1x36xf32>
    %cst_45 = arith.constant dense<0.000000e+00> : vector<65xf32>
    %86 = vector.multi_reduction <add>, %83, %cst_45 [1] : vector<65x36xf32> to vector<65xf32>
    %87 = vector.shape_cast %86 : vector<65xf32> to vector<65x1xf32>
    %cst_46 = arith.constant 3.600000e+01 : f32
    %88 = vector.broadcast %cst_46 : f32 to vector<65x1xf32>
    %89 = arith.divf %87, %88 : vector<65x1xf32>
    %90 = vector.broadcast %89 : vector<65x1xf32> to vector<65x36xf32>
    %91 = arith.subf %83, %90 : vector<65x36xf32>
    %92 = arith.mulf %91, %91 : vector<65x36xf32>
    %cst_47 = arith.constant dense<0.000000e+00> : vector<65xf32>
    %93 = vector.multi_reduction <add>, %92, %cst_47 [1] : vector<65x36xf32> to vector<65xf32>
    %94 = vector.shape_cast %93 : vector<65xf32> to vector<65x1xf32>
    %cst_48 = arith.constant 3.600000e+01 : f32
    %95 = vector.broadcast %cst_48 : f32 to vector<65x1xf32>
    %96 = arith.divf %94, %95 : vector<65x1xf32>
    %97 = vector.broadcast %89 : vector<65x1xf32> to vector<65x36xf32>
    %98 = arith.subf %83, %97 : vector<65x36xf32>
    %cst_49 = arith.constant 9.99999997E-7 : f32
    %99 = vector.broadcast %cst_49 : f32 to vector<65x1xf32>
    %100 = arith.addf %96, %99 : vector<65x1xf32>
    %101 = math.rsqrt %100 : vector<65x1xf32>
    %102 = vector.broadcast %101 : vector<65x1xf32> to vector<65x36xf32>
    %103 = arith.mulf %98, %102 : vector<65x36xf32>
    %104 = vector.broadcast %84 : vector<1x36xf32> to vector<65x36xf32>
    %105 = arith.mulf %103, %104 : vector<65x36xf32>
    %106 = vector.broadcast %85 : vector<1x36xf32> to vector<65x36xf32>
    %107 = arith.addf %105, %106 : vector<65x36xf32>
    %c0_50 = arith.constant 0 : index
    %c0_51 = arith.constant 0 : index
    %108 = vector.load %arg12[%c0_50, %c0_51] : memref<36x256xf32, #tpu.memory_space<vmem>>, vector<36x256xf32>
    %cst_52 = arith.constant dense<0.000000e+00> : vector<65x256xf32>
    %109 = tpu.matmul %107, %108, %cst_52 {dimension_numbers = #tpu.dot_dimension_numbers<[1], [0], [0], [1], [0, 0, 1, 1], [], []>} : vector<65x36xf32>, vector<36x256xf32>, vector<65x256xf32> -> vector<65x256xf32>
    %110 = vector.extract_strided_slice %109 {offsets = [0, 0], sizes = [65, 128], strides = [1, 1]} : vector<65x256xf32> to vector<65x128xf32>
    %111 = vector.extract_strided_slice %109 {offsets = [0, 128], sizes = [65, 128], strides = [1, 1]} : vector<65x256xf32> to vector<65x128xf32>
    %cst_53 = arith.constant dense<0.000000e+00> : vector<65x65xf32>
    %112 = tpu.matmul %110, %111, %cst_53 {dimension_numbers = #tpu.dot_dimension_numbers<[1], [1], [0], [0], [0, 0, 1, 0], [], []>} : vector<65x128xf32>, vector<65x128xf32>, vector<65x65xf32> -> vector<65x65xf32>
    %cst_54 = arith.constant 0.166666672 : f32
    %113 = vector.broadcast %cst_54 : f32 to vector<65x65xf32>
    %114 = arith.mulf %112, %113 : vector<65x65xf32>
    %cst_55 = arith.constant dense<0xFF800000> : vector<65xf32>
    %115 = vector.multi_reduction <maximumf>, %114, %cst_55 [1] : vector<65x65xf32> to vector<65xf32>
    %116 = vector.shape_cast %115 : vector<65xf32> to vector<65x1xf32>
    %117 = vector.broadcast %116 : vector<65x1xf32> to vector<65x65xf32>
    %118 = arith.subf %114, %117 : vector<65x65xf32>
    %119 = math.exp %118 : vector<65x65xf32>
    %cst_56 = arith.constant dense<0.000000e+00> : vector<65xf32>
    %120 = vector.multi_reduction <add>, %119, %cst_56 [1] : vector<65x65xf32> to vector<65xf32>
    %121 = vector.shape_cast %120 : vector<65xf32> to vector<65x1xf32>
    %122 = vector.broadcast %121 : vector<65x1xf32> to vector<65x65xf32>
    %123 = arith.divf %119, %122 : vector<65x65xf32>
    %124 = vector.extract_strided_slice %123 {offsets = [0, 1], sizes = [1, 64], strides = [1, 1]} : vector<65x65xf32> to vector<1x64xf32>
    %c0_57 = arith.constant 0 : index
    %c0_58 = arith.constant 0 : index
    %c0_59 = arith.constant 0 : index
    %125 = vector.load %arg18[%c0_57, %c0_58, %c0_59] : memref<1x1x64xf32, #tpu.memory_space<vmem>>, vector<1x1x64xf32>
    %126 = vector.shape_cast %125 : vector<1x1x64xf32> to vector<1x64xf32>
    %127 = vector.shape_cast %124 : vector<1x64xf32> to vector<1x1x64xf32>
    tpu.vector_store %arg18[%c0_57, %c0_58, %c0_59], %127 {strides = array<i32>} : memref<1x1x64xf32, #tpu.memory_space<vmem>>, vector<1x1x64xf32>,
    %c0_60 = arith.constant 0 : index
    %c0_61 = arith.constant 0 : index
    %128 = vector.load %arg13[%c0_60, %c0_61] : memref<1x36xf32, #tpu.memory_space<vmem>>, vector<1x36xf32>
    %cst_62 = arith.constant dense<0.000000e+00> : vector<1x65xf32>
    %129 = tpu.matmul %128, %107, %cst_62 {dimension_numbers = #tpu.dot_dimension_numbers<[1], [1], [0], [0], [0, 0, 1, 0], [], []>} : vector<1x36xf32>, vector<65x36xf32>, vector<1x65xf32> -> vector<1x65xf32>
    %cst_63 = arith.constant dense<0.000000e+00> : vector<1x65xf32>
    %130 = tpu.matmul %129, %123, %cst_63 {dimension_numbers = #tpu.dot_dimension_numbers<[1], [1], [0], [0], [0, 0, 1, 0], [], []>} : vector<1x65xf32>, vector<65x65xf32>, vector<1x65xf32> -> vector<1x65xf32>
    %131 = vector.extract_strided_slice %130 {offsets = [0, 0], sizes = [1, 36], strides = [1, 1]} : vector<1x65xf32> to vector<1x36xf32>
    %c0_64 = arith.constant 0 : index
    %c0_65 = arith.constant 0 : index
    %132 = vector.load %arg2[%c0_64, %c0_65] : memref<36x36xf32, #tpu.memory_space<vmem>>, vector<36x36xf32>
    %cst_66 = arith.constant dense<0.000000e+00> : vector<1x36xf32>
    %133 = tpu.matmul %131, %132, %cst_66 {dimension_numbers = #tpu.dot_dimension_numbers<[1], [0], [0], [1], [0, 0, 1, 1], [], []>} : vector<1x36xf32>, vector<36x36xf32>, vector<1x36xf32> -> vector<1x36xf32>
    %c0_67 = arith.constant 0 : index
    %c0_68 = arith.constant 0 : index
    %134 = vector.load %arg3[%c0_67, %c0_68] : memref<1x36xf32, #tpu.memory_space<vmem>>, vector<1x36xf32>
    %135 = arith.addf %133, %134 : vector<1x36xf32>
    %136 = arith.addf %135, %135 : vector<1x36xf32>
    %c0_69 = arith.constant 0 : index
    %c0_70 = arith.constant 0 : index
    %137 = vector.load %arg4[%c0_69, %c0_70] : memref<1x36xf32, #tpu.memory_space<vmem>>, vector<1x36xf32>
    %c0_71 = arith.constant 0 : index
    %c0_72 = arith.constant 0 : index
    %138 = vector.load %arg5[%c0_71, %c0_72] : memref<1x36xf32, #tpu.memory_space<vmem>>, vector<1x36xf32>
    %cst_73 = arith.constant dense<0.000000e+00> : vector<1xf32>
    %139 = vector.multi_reduction <add>, %136, %cst_73 [1] : vector<1x36xf32> to vector<1xf32>
    %140 = vector.shape_cast %139 : vector<1xf32> to vector<1x1xf32>
    %cst_74 = arith.constant 3.600000e+01 : f32
    %141 = vector.broadcast %cst_74 : f32 to vector<1x1xf32>
    %142 = arith.divf %140, %141 : vector<1x1xf32>
    %143 = vector.broadcast %142 : vector<1x1xf32> to vector<1x36xf32>
    %144 = arith.subf %136, %143 : vector<1x36xf32>
    %145 = arith.mulf %144, %144 : vector<1x36xf32>
    %cst_75 = arith.constant dense<0.000000e+00> : vector<1xf32>
    %146 = vector.multi_reduction <add>, %145, %cst_75 [1] : vector<1x36xf32> to vector<1xf32>
    %147 = vector.shape_cast %146 : vector<1xf32> to vector<1x1xf32>
    %cst_76 = arith.constant 3.600000e+01 : f32
    %148 = vector.broadcast %cst_76 : f32 to vector<1x1xf32>
    %149 = arith.divf %147, %148 : vector<1x1xf32>
    %150 = vector.broadcast %142 : vector<1x1xf32> to vector<1x36xf32>
    %151 = arith.subf %136, %150 : vector<1x36xf32>
    %cst_77 = arith.constant 9.99999997E-7 : f32
    %152 = vector.broadcast %cst_77 : f32 to vector<1x1xf32>
    %153 = arith.addf %149, %152 : vector<1x1xf32>
    %154 = math.rsqrt %153 : vector<1x1xf32>
    %155 = vector.broadcast %154 : vector<1x1xf32> to vector<1x36xf32>
    %156 = arith.mulf %151, %155 : vector<1x36xf32>
    %157 = arith.mulf %156, %137 : vector<1x36xf32>
    %158 = arith.addf %157, %138 : vector<1x36xf32>
    %c0_78 = arith.constant 0 : index
    %c0_79 = arith.constant 0 : index
    %159 = vector.load %arg6[%c0_78, %c0_79] : memref<36x144xf32, #tpu.memory_space<vmem>>, vector<36x144xf32>
    %cst_80 = arith.constant dense<0.000000e+00> : vector<1x144xf32>
    %160 = tpu.matmul %158, %159, %cst_80 {dimension_numbers = #tpu.dot_dimension_numbers<[1], [0], [0], [1], [0, 0, 1, 1], [], []>} : vector<1x36xf32>, vector<36x144xf32>, vector<1x144xf32> -> vector<1x144xf32>
    %c0_81 = arith.constant 0 : index
    %c0_82 = arith.constant 0 : index
    %161 = vector.load %arg7[%c0_81, %c0_82] : memref<1x144xf32, #tpu.memory_space<vmem>>, vector<1x144xf32>
    %162 = arith.addf %160, %161 : vector<1x144xf32>
    %cst_83 = arith.constant 5.000000e-01 : f32
    %163 = vector.broadcast %cst_83 : f32 to vector<1x144xf32>
    %164 = arith.mulf %163, %162 : vector<1x144xf32>
    %cst_84 = arith.constant 0.707106769 : f32
    %165 = vector.broadcast %cst_84 : f32 to vector<1x144xf32>
    %166 = arith.mulf %162, %165 : vector<1x144xf32>
    %cst_85 = arith.constant 0.000000e+00 : f32
    %167 = vector.broadcast %cst_85 : f32 to vector<1x144xf32>
    %168 = arith.cmpf olt, %166, %167 : vector<1x144xf32>
    %cst_86 = arith.constant -1.000000e+00 : f32
    %cst_87 = arith.constant 1.000000e+00 : f32
    %169 = vector.broadcast %cst_86 : f32 to vector<1x144xf32>
    %170 = vector.broadcast %cst_87 : f32 to vector<1x144xf32>
    %171 = arith.select %168, %169, %170 : vector<1x144xi1>, vector<1x144xf32>
    %172 = math.absf %166 : vector<1x144xf32>
    %cst_88 = arith.constant 0.327591091 : f32
    %173 = vector.broadcast %cst_88 : f32 to vector<1x144xf32>
    %174 = arith.mulf %173, %172 : vector<1x144xf32>
    %cst_89 = arith.constant 1.000000e+00 : f32
    %175 = vector.broadcast %cst_89 : f32 to vector<1x144xf32>
    %176 = arith.addf %175, %174 : vector<1x144xf32>
    %cst_90 = arith.constant 1.000000e+00 : f32
    %177 = vector.broadcast %cst_90 : f32 to vector<1x144xf32>
    %178 = arith.divf %177, %176 : vector<1x144xf32>
    %cst_91 = arith.constant 1.06140542 : f32
    %179 = vector.broadcast %cst_91 : f32 to vector<1x144xf32>
    %180 = arith.mulf %179, %178 : vector<1x144xf32>
    %cst_92 = arith.constant -1.45315206 : f32
    %181 = vector.broadcast %cst_92 : f32 to vector<1x144xf32>
    %182 = arith.addf %180, %181 : vector<1x144xf32>
    %183 = arith.mulf %182, %178 : vector<1x144xf32>
    %cst_93 = arith.constant 1.42141378 : f32
    %184 = vector.broadcast %cst_93 : f32 to vector<1x144xf32>
    %185 = arith.addf %183, %184 : vector<1x144xf32>
    %186 = arith.mulf %185, %178 : vector<1x144xf32>
    %cst_94 = arith.constant -0.284496725 : f32
    %187 = vector.broadcast %cst_94 : f32 to vector<1x144xf32>
    %188 = arith.addf %186, %187 : vector<1x144xf32>
    %189 = arith.mulf %188, %178 : vector<1x144xf32>
    %cst_95 = arith.constant 0.254829586 : f32
    %190 = vector.broadcast %cst_95 : f32 to vector<1x144xf32>
    %191 = arith.addf %189, %190 : vector<1x144xf32>
    %192 = arith.mulf %191, %178 : vector<1x144xf32>
    %cst_96 = arith.constant 0.000000e+00 : f32
    %193 = vector.broadcast %cst_96 : f32 to vector<1x144xf32>
    %194 = arith.subf %193, %172 : vector<1x144xf32>
    %195 = arith.mulf %194, %172 : vector<1x144xf32>
    %196 = math.exp %195 : vector<1x144xf32>
    %197 = arith.mulf %192, %196 : vector<1x144xf32>
    %cst_97 = arith.constant 1.000000e+00 : f32
    %198 = vector.broadcast %cst_97 : f32 to vector<1x144xf32>
    %199 = arith.subf %198, %197 : vector<1x144xf32>
    %200 = arith.mulf %171, %199 : vector<1x144xf32>
    %cst_98 = arith.constant 1.000000e+00 : f32
    %201 = vector.broadcast %cst_98 : f32 to vector<1x144xf32>
    %202 = arith.addf %201, %200 : vector<1x144xf32>
    %203 = arith.mulf %164, %202 : vector<1x144xf32>
    %c0_99 = arith.constant 0 : index
    %c0_100 = arith.constant 0 : index
    %204 = vector.load %arg8[%c0_99, %c0_100] : memref<144x36xf32, #tpu.memory_space<vmem>>, vector<144x36xf32>
    %cst_101 = arith.constant dense<0.000000e+00> : vector<1x36xf32>
    %205 = tpu.matmul %203, %204, %cst_101 {dimension_numbers = #tpu.dot_dimension_numbers<[1], [0], [0], [1], [0, 0, 1, 1], [], []>} : vector<1x144xf32>, vector<144x36xf32>, vector<1x36xf32> -> vector<1x36xf32>
    %c0_102 = arith.constant 0 : index
    %c0_103 = arith.constant 0 : index
    %206 = vector.load %arg9[%c0_102, %c0_103] : memref<1x36xf32, #tpu.memory_space<vmem>>, vector<1x36xf32>
    %207 = arith.addf %205, %206 : vector<1x36xf32>
    %208 = arith.addf %136, %207 : vector<1x36xf32>
    %c0_104 = arith.constant 0 : index
    %c0_105 = arith.constant 0 : index
    %209 = vector.load %arg14[%c0_104, %c0_105] : memref<1x36xf32, #tpu.memory_space<vmem>>, vector<1x36xf32>
    %c0_106 = arith.constant 0 : index
    %c0_107 = arith.constant 0 : index
    %210 = vector.load %arg15[%c0_106, %c0_107] : memref<1x36xf32, #tpu.memory_space<vmem>>, vector<1x36xf32>
    %cst_108 = arith.constant dense<0.000000e+00> : vector<1xf32>
    %211 = vector.multi_reduction <add>, %208, %cst_108 [1] : vector<1x36xf32> to vector<1xf32>
    %212 = vector.shape_cast %211 : vector<1xf32> to vector<1x1xf32>
    %cst_109 = arith.constant 3.600000e+01 : f32
    %213 = vector.broadcast %cst_109 : f32 to vector<1x1xf32>
    %214 = arith.divf %212, %213 : vector<1x1xf32>
    %215 = vector.broadcast %214 : vector<1x1xf32> to vector<1x36xf32>
    %216 = arith.subf %208, %215 : vector<1x36xf32>
    %217 = arith.mulf %216, %216 : vector<1x36xf32>
    %cst_110 = arith.constant dense<0.000000e+00> : vector<1xf32>
    %218 = vector.multi_reduction <add>, %217, %cst_110 [1] : vector<1x36xf32> to vector<1xf32>
    %219 = vector.shape_cast %218 : vector<1xf32> to vector<1x1xf32>
    %cst_111 = arith.constant 3.600000e+01 : f32
    %220 = vector.broadcast %cst_111 : f32 to vector<1x1xf32>
    %221 = arith.divf %219, %220 : vector<1x1xf32>
    %222 = vector.broadcast %214 : vector<1x1xf32> to vector<1x36xf32>
    %223 = arith.subf %208, %222 : vector<1x36xf32>
    %cst_112 = arith.constant 9.99999997E-7 : f32
    %224 = vector.broadcast %cst_112 : f32 to vector<1x1xf32>
    %225 = arith.addf %221, %224 : vector<1x1xf32>
    %226 = math.rsqrt %225 : vector<1x1xf32>
    %227 = vector.broadcast %226 : vector<1x1xf32> to vector<1x36xf32>
    %228 = arith.mulf %223, %227 : vector<1x36xf32>
    %229 = arith.mulf %228, %209 : vector<1x36xf32>
    %230 = arith.addf %229, %210 : vector<1x36xf32>
    %c0_113 = arith.constant 0 : index
    %c0_114 = arith.constant 0 : index
    %231 = vector.load %arg16[%c0_113, %c0_114] : memref<36x16xf32, #tpu.memory_space<vmem>>, vector<36x16xf32>
    %cst_115 = arith.constant dense<0.000000e+00> : vector<1x16xf32>
    %232 = tpu.matmul %230, %231, %cst_115 {dimension_numbers = #tpu.dot_dimension_numbers<[1], [0], [0], [1], [0, 0, 1, 1], [], []>} : vector<1x36xf32>, vector<36x16xf32>, vector<1x16xf32> -> vector<1x16xf32>
    %c0_116 = arith.constant 0 : index
    %c0_117 = arith.constant 0 : index
    %233 = vector.load %arg17[%c0_116, %c0_117] : memref<1x16xf32, #tpu.memory_space<vmem>>, vector<1x16xf32>
    %234 = arith.addf %232, %233 : vector<1x16xf32>
    %235 = math.tanh %234 : vector<1x16xf32>
    %c0_118 = arith.constant 0 : index
    %c0_119 = arith.constant 0 : index
    %c0_120 = arith.constant 0 : index
    %236 = vector.load %arg19[%c0_118, %c0_119, %c0_120] : memref<1x1x16xf32, #tpu.memory_space<vmem>>, vector<1x1x16xf32>
    %237 = vector.shape_cast %236 : vector<1x1x16xf32> to vector<1x16xf32>
    %238 = vector.shape_cast %235 : vector<1x16xf32> to vector<1x1x16xf32>
    tpu.vector_store %arg19[%c0_118, %c0_119, %c0_120], %238 {strides = array<i32>} : memref<1x1x16xf32, #tpu.memory_space<vmem>>, vector<1x1x16xf32>,
    return
  }
  func.func @transform_0(%arg0: i32) -> (i32, i32, i32) {
    %c0_i32 = arith.constant 0 : i32
    %c0_i32_0 = arith.constant 0 : i32
    %c0_i32_1 = arith.constant 0 : i32
    return %arg0, %c0_i32, %c0_i32_0 : i32, i32, i32
  }
  func.func @transform_1(%arg0: i32) -> (i32, i32) {
    %c0_i32 = arith.constant 0 : i32
    %c0_i32_0 = arith.constant 0 : i32
    %c0_i32_1 = arith.constant 0 : i32
    return %c0_i32, %c0_i32_0 : i32, i32
  }
  func.func @transform_2(%arg0: i32) -> (i32, i32) {
    %c0_i32 = arith.constant 0 : i32
    %c0_i32_0 = arith.constant 0 : i32
    %c0_i32_1 = arith.constant 0 : i32
    return %c0_i32, %c0_i32_0 : i32, i32
  }
  func.func @transform_3(%arg0: i32) -> (i32, i32) {
    %c0_i32 = arith.constant 0 : i32
    %c0_i32_0 = arith.constant 0 : i32
    %c0_i32_1 = arith.constant 0 : i32
    return %c0_i32, %c0_i32_0 : i32, i32
  }
  func.func @transform_4(%arg0: i32) -> (i32, i32) {
    %c0_i32 = arith.constant 0 : i32
    %c0_i32_0 = arith.constant 0 : i32
    %c0_i32_1 = arith.constant 0 : i32
    return %c0_i32, %c0_i32_0 : i32, i32
  }
  func.func @transform_5(%arg0: i32) -> (i32, i32) {
    %c0_i32 = arith.constant 0 : i32
    %c0_i32_0 = arith.constant 0 : i32
    %c0_i32_1 = arith.constant 0 : i32
    return %c0_i32, %c0_i32_0 : i32, i32
  }
  func.func @transform_6(%arg0: i32) -> (i32, i32) {
    %c0_i32 = arith.constant 0 : i32
    %c0_i32_0 = arith.constant 0 : i32
    %c0_i32_1 = arith.constant 0 : i32
    return %c0_i32, %c0_i32_0 : i32, i32
  }
  func.func @transform_7(%arg0: i32) -> (i32, i32) {
    %c0_i32 = arith.constant 0 : i32
    %c0_i32_0 = arith.constant 0 : i32
    %c0_i32_1 = arith.constant 0 : i32
    return %c0_i32, %c0_i32_0 : i32, i32
  }
  func.func @transform_8(%arg0: i32) -> (i32, i32) {
    %c0_i32 = arith.constant 0 : i32
    %c0_i32_0 = arith.constant 0 : i32
    %c0_i32_1 = arith.constant 0 : i32
    return %c0_i32, %c0_i32_0 : i32, i32
  }
  func.func @transform_9(%arg0: i32) -> (i32, i32) {
    %c0_i32 = arith.constant 0 : i32
    %c0_i32_0 = arith.constant 0 : i32
    %c0_i32_1 = arith.constant 0 : i32
    return %c0_i32, %c0_i32_0 : i32, i32
  }
  func.func @transform_10(%arg0: i32) -> (i32, i32) {
    %c0_i32 = arith.constant 0 : i32
    %c0_i32_0 = arith.constant 0 : i32
    %c0_i32_1 = arith.constant 0 : i32
    return %c0_i32, %c0_i32_0 : i32, i32
  }
  func.func @transform_11(%arg0: i32) -> (i32, i32) {
    %c0_i32 = arith.constant 0 : i32
    %c0_i32_0 = arith.constant 0 : i32
    %c0_i32_1 = arith.constant 0 : i32
    return %c0_i32, %c0_i32_0 : i32, i32
  }
  func.func @transform_12(%arg0: i32) -> (i32, i32) {
    %c0_i32 = arith.constant 0 : i32
    %c0_i32_0 = arith.constant 0 : i32
    %c0_i32_1 = arith.constant 0 : i32
    return %c0_i32, %c0_i32_0 : i32, i32
  }
  func.func @transform_13(%arg0: i32) -> (i32, i32) {
    %c0_i32 = arith.constant 0 : i32
    %c0_i32_0 = arith.constant 0 : i32
    %c0_i32_1 = arith.constant 0 : i32
    return %c0_i32, %c0_i32_0 : i32, i32
  }
  func.func @transform_14(%arg0: i32) -> (i32, i32) {
    %c0_i32 = arith.constant 0 : i32
    %c0_i32_0 = arith.constant 0 : i32
    %c0_i32_1 = arith.constant 0 : i32
    return %c0_i32, %c0_i32_0 : i32, i32
  }
  func.func @transform_15(%arg0: i32) -> (i32, i32) {
    %c0_i32 = arith.constant 0 : i32
    %c0_i32_0 = arith.constant 0 : i32
    %c0_i32_1 = arith.constant 0 : i32
    return %c0_i32, %c0_i32_0 : i32, i32
  }
  func.func @transform_16(%arg0: i32) -> (i32, i32) {
    %c0_i32 = arith.constant 0 : i32
    %c0_i32_0 = arith.constant 0 : i32
    %c0_i32_1 = arith.constant 0 : i32
    return %c0_i32, %c0_i32_0 : i32, i32
  }
  func.func @transform_17(%arg0: i32) -> (i32, i32, i32) {
    %c0_i32 = arith.constant 0 : i32
    %c0_i32_0 = arith.constant 0 : i32
    %c0_i32_1 = arith.constant 0 : i32
    return %arg0, %c0_i32, %c0_i32_0 : i32, i32, i32
  }
  func.func @transform_18(%arg0: i32) -> (i32, i32, i32) {
    %c0_i32 = arith.constant 0 : i32
    %c0_i32_0 = arith.constant 0 : i32
    %c0_i32_1 = arith.constant 0 : i32
    return %arg0, %c0_i32, %c0_i32_0 : i32, i32, i32
  }
}

</mosaic_0001>

<llo_original>
// kernel: vit_forward.2
$region0: #{vit_forward.2}
  #allocation0 [shape = 'u32[]', space=smem, size = 0x4, offset = 0x4, fixed_abs, tag = 'smem constant byte address 0x4 - core index']
  #allocation1 [shape = 'u32[144,128]{1,0:T(1,128)}', space=vmem, size = 0x12000, scoped, tag = 'internal scratch']
  %s0 = inlined_call_operand.vmem [shape: f32[2,4,65,8], index: 0, kind: input, shape index: {}]
  %s1 = inlined_call_operand.vmem [shape: f32[2,1,36], index: 1, kind: input, shape index: {}]
  %s2 = inlined_call_operand.vmem [shape: f32[1,36], index: 2, kind: input, shape index: {}]
  %s3 = inlined_call_operand.vmem [shape: f32[8,36], index: 3, kind: input, shape index: {}]
  %s4 = inlined_call_operand.vmem [shape: f32[1,36], index: 4, kind: input, shape index: {}]
  %s5 = inlined_call_operand.vmem [shape: f32[1,36], index: 5, kind: input, shape index: {}]
  %s6 = inlined_call_operand.vmem [shape: f32[36,384], index: 6, kind: input, shape index: {}]
  %s7 = inlined_call_operand.vmem [shape: f32[2,36,65], index: 7, kind: output, shape index: {0}]
  %s8 = inlined_call_operand.vmem [shape: f32[2,1,64], index: 8, kind: output, shape index: {1}]
  %9 = xla_tuple %s7, %s8
  %s10 = sld [smem:[#allocation0]]
  $region69: #{vit_forward.2} parent=0
    _
  %s12 = ssub.s32 1, %s10
  %s13 = scalar_select 0, %s12, %s10
  loop: start=0, step=1, limit=4
  $region2: #{vit_forward.2} parent=0 // loop_pre_header
    _
  $region3: #{vit_forward.2} parent=0 // loop_header
    %s15 = sphi 0, %s19
    %p16 = scmp.ge.s32.totalorder %s15, 4
    %s25 = sphi 0, %s27
    %s28 = sphi 0, %s25
    %s29 = sphi 0, %s28
    %s45 = sphi 0, %s29
    %s51 = sphi 0, %s53
    %s54 = sphi 0, %s51
    %s55 = sphi 0, %s54
    %s71 = sphi 0, %s55
    %s75 = sphi 0, %s75
    %s77 = sphi 0, %s75
    %s78 = sphi 0, %s77
    %s92 = sphi 0, %s78
    %s96 = sphi 0, %s96
    %s98 = sphi 0, %s96
    %s99 = sphi 0, %s98
    %s113 = sphi 0, %s99
    %s117 = sphi 0, %s117
    %s119 = sphi 0, %s117
    %s120 = sphi 0, %s119
    %s134 = sphi 0, %s120
    %s138 = sphi 0, %s138
    %s140 = sphi 0, %s138
    %s141 = sphi 0, %s140
    %s155 = sphi 0, %s141
    %s159 = sphi 0, %s159
    %s161 = sphi 0, %s159
    %s162 = sphi 0, %s161
    %s176 = sphi 0, %s162
    %s182 = sphi 0, %s184
    %s185 = sphi 0, %s182
    %s186 = sphi 0, %s185
    %s202 = sphi 0, %s186
    %s208 = sphi 0, %s210
    %s211 = sphi 0, %s208
    %s212 = sphi 0, %s211
    %s228 = sphi 0, %s212
  $region4: #{vit_forward.2} parent=0 // loop_header_branch
    %18 = sbr.rel (%p16) target = $region8
  $region5: #{vit_forward.2} parent=0 // loop_body
    %s20 = ssub.s32 %s15, 1
    %s21 = ssub.s32 %s15, 2
    %s22 = sadd.s32 %s15, 1
    %s23 = ssub.s32 %s15, %s22
    %p24 = scmp.eq.s32.totalorder %s23, 0
    %s26 = sadd.s32 %s25, 1
    %s27 = scalar_select %p24, %s25, %s26
    %p30 = pneg %p24
    %p31 = scmp.eq.s32.totalorder %s15, 1
    %p32 = por %p30, %p31
    %p33 = scmp.ne.s32.totalorder %s25, %s28
    %p34 = scmp.eq.s32.totalorder %s15, 0
    %p35 = por %p33, %p34
    %p36 = scmp.ne.s32.totalorder %s25, %s28
    %p37 = scmp.eq.s32.totalorder %s20, 1
    %p38 = por %p36, %p37
    %p39 = scmp.ne.s32.totalorder %s28, %s29
    %p40 = scmp.eq.s32.totalorder %s20, 0
    %p41 = por %p39, %p40
    %p42 = scmp.ne.s32.totalorder %s28, %s29
    %p43 = scmp.eq.s32.totalorder %s21, 1
    %p44 = por %p42, %p43
    %p46 = scmp.ne.s32.totalorder %s29, %s45
    %p47 = scmp.eq.s32.totalorder %s21, 0
    %p48 = por %p46, %p47
    %s49 = ssub.s32 %s15, %s22
    %p50 = scmp.eq.s32.totalorder %s49, 0
    %s52 = sadd.s32 %s51, 1
    %s53 = scalar_select %p50, %s51, %s52
    %p56 = pneg %p50
    %p57 = scmp.eq.s32.totalorder %s15, 1
    %p58 = por %p56, %p57
    %p59 = scmp.ne.s32.totalorder %s51, %s54
    %p60 = scmp.eq.s32.totalorder %s15, 0
    %p61 = por %p59, %p60
    %p62 = scmp.ne.s32.totalorder %s51, %s54
    %p63 = scmp.eq.s32.totalorder %s20, 1
    %p64 = por %p62, %p63
    %p65 = scmp.ne.s32.totalorder %s54, %s55
    %p66 = scmp.eq.s32.totalorder %s20, 0
    %p67 = por %p65, %p66
    %p68 = scmp.ne.s32.totalorder %s54, %s55
    %p69 = scmp.eq.s32.totalorder %s21, 1
    %p70 = por %p68, %p69
    %p72 = scmp.ne.s32.totalorder %s55, %s71
    %p73 = scmp.eq.s32.totalorder %s21, 0
    %p74 = por %p72, %p73
    %s76 = sadd.s32 %s75, 1
    %p79 = scmp.eq.s32.totalorder %s15, 1
    %p80 = scmp.ne.s32.totalorder %s75, %s77
    %p81 = scmp.eq.s32.totalorder %s15, 0
    %p82 = por %p80, %p81
    %p83 = scmp.ne.s32.totalorder %s75, %s77
    %p84 = scmp.eq.s32.totalorder %s20, 1
    %p85 = por %p83, %p84
    %p86 = scmp.ne.s32.totalorder %s77, %s78
    %p87 = scmp.eq.s32.totalorder %s20, 0
    %p88 = por %p86, %p87
    %p89 = scmp.ne.s32.totalorder %s77, %s78
    %p90 = scmp.eq.s32.totalorder %s21, 1
    %p91 = por %p89, %p90
    %p93 = scmp.ne.s32.totalorder %s78, %s92
    %p94 = scmp.eq.s32.totalorder %s21, 0
    %p95 = por %p93, %p94
    %s97 = sadd.s32 %s96, 1
    %p100 = scmp.eq.s32.totalorder %s15, 1
    %p101 = scmp.ne.s32.totalorder %s96, %s98
    %p102 = scmp.eq.s32.totalorder %s15, 0
    %p103 = por %p101, %p102
    %p104 = scmp.ne.s32.totalorder %s96, %s98
    %p105 = scmp.eq.s32.totalorder %s20, 1
    %p106 = por %p104, %p105
    %p107 = scmp.ne.s32.totalorder %s98, %s99
    %p108 = scmp.eq.s32.totalorder %s20, 0
    %p109 = por %p107, %p108
    %p110 = scmp.ne.s32.totalorder %s98, %s99
    %p111 = scmp.eq.s32.totalorder %s21, 1
    %p112 = por %p110, %p111
    %p114 = scmp.ne.s32.totalorder %s99, %s113
    %p115 = scmp.eq.s32.totalorder %s21, 0
    %p116 = por %p114, %p115
    %s118 = sadd.s32 %s117, 1
    %p121 = scmp.eq.s32.totalorder %s15, 1
    %p122 = scmp.ne.s32.totalorder %s117, %s119
    %p123 = scmp.eq.s32.totalorder %s15, 0
    %p124 = por %p122, %p123
    %p125 = scmp.ne.s32.totalorder %s117, %s119
    %p126 = scmp.eq.s32.totalorder %s20, 1
    %p127 = por %p125, %p126
    %p128 = scmp.ne.s32.totalorder %s119, %s120
    %p129 = scmp.eq.s32.totalorder %s20, 0
    %p130 = por %p128, %p129
    %p131 = scmp.ne.s32.totalorder %s119, %s120
    %p132 = scmp.eq.s32.totalorder %s21, 1
    %p133 = por %p131, %p132
    %p135 = scmp.ne.s32.totalorder %s120, %s134
    %p136 = scmp.eq.s32.totalorder %s21, 0
    %p137 = por %p135, %p136
    %s139 = sadd.s32 %s138, 1
    %p142 = scmp.eq.s32.totalorder %s15, 1
    %p143 = scmp.ne.s32.totalorder %s138, %s140
    %p144 = scmp.eq.s32.totalorder %s15, 0
    %p145 = por %p143, %p144
    %p146 = scmp.ne.s32.totalorder %s138, %s140
    %p147 = scmp.eq.s32.totalorder %s20, 1
    %p148 = por %p146, %p147
    %p149 = scmp.ne.s32.totalorder %s140, %s141
    %p150 = scmp.eq.s32.totalorder %s20, 0
    %p151 = por %p149, %p150
    %p152 = scmp.ne.s32.totalorder %s140, %s141
    %p153 = scmp.eq.s32.totalorder %s21, 1
    %p154 = por %p152, %p153
    %p156 = scmp.ne.s32.totalorder %s141, %s155
    %p157 = scmp.eq.s32.totalorder %s21, 0
    %p158 = por %p156, %p157
    %s160 = sadd.s32 %s159, 1
    %p163 = scmp.eq.s32.totalorder %s15, 1
    %p164 = scmp.ne.s32.totalorder %s159, %s161
    %p165 = scmp.eq.s32.totalorder %s15, 0
    %p166 = por %p164, %p165
    %p167 = scmp.ne.s32.totalorder %s159, %s161
    %p168 = scmp.eq.s32.totalorder %s20, 1
    %p169 = por %p167, %p168
    %p170 = scmp.ne.s32.totalorder %s161, %s162
    %p171 = scmp.eq.s32.totalorder %s20, 0
    %p172 = por %p170, %p171
    %p173 = scmp.ne.s32.totalorder %s161, %s162
    %p174 = scmp.eq.s32.totalorder %s21, 1
    %p175 = por %p173, %p174
    %p177 = scmp.ne.s32.totalorder %s162, %s176
    %p178 = scmp.eq.s32.totalorder %s21, 0
    %p179 = por %p177, %p178
    %s180 = ssub.s32 %s15, %s22
    %p181 = scmp.eq.s32.totalorder %s180, 0
    %s183 = sadd.s32 %s182, 1
    %s184 = scalar_select %p181, %s182, %s183
    %p187 = pneg %p181
    %p188 = scmp.eq.s32.totalorder %s15, 1
    %p189 = por %p187, %p188
    %p190 = scmp.ne.s32.totalorder %s182, %s185
    %p191 = scmp.eq.s32.totalorder %s15, 0
    %p192 = por %p190, %p191
    %p193 = scmp.ne.s32.totalorder %s182, %s185
    %p194 = scmp.eq.s32.totalorder %s20, 1
    %p195 = por %p193, %p194
    %p196 = scmp.ne.s32.totalorder %s185, %s186
    %p197 = scmp.eq.s32.totalorder %s20, 0
    %p198 = por %p196, %p197
    %p199 = scmp.ne.s32.totalorder %s185, %s186
    %p200 = scmp.eq.s32.totalorder %s21, 1
    %p201 = por %p199, %p200
    %p203 = scmp.ne.s32.totalorder %s186, %s202
    %p204 = scmp.eq.s32.totalorder %s21, 0
    %p205 = por %p203, %p204
    %s206 = ssub.s32 %s15, %s22
    %p207 = scmp.eq.s32.totalorder %s206, 0
    %s209 = sadd.s32 %s208, 1
    %s210 = scalar_select %p207, %s208, %s209
    %p213 = pneg %p207
    %p214 = scmp.eq.s32.totalorder %s15, 1
    %p215 = por %p213, %p214
    %p216 = scmp.ne.s32.totalorder %s208, %s211
    %p217 = scmp.eq.s32.totalorder %s15, 0
    %p218 = por %p216, %p217
    %p219 = scmp.ne.s32.totalorder %s208, %s211
    %p220 = scmp.eq.s32.totalorder %s20, 1
    %p221 = por %p219, %p220
    %p222 = scmp.ne.s32.totalorder %s211, %s212
    %p223 = scmp.eq.s32.totalorder %s20, 0
    %p224 = por %p222, %p223
    %p225 = scmp.ne.s32.totalorder %s211, %s212
    %p226 = scmp.eq.s32.totalorder %s21, 1
    %p227 = por %p225, %p226
    %p229 = scmp.ne.s32.totalorder %s212, %s228
    %p230 = scmp.eq.s32.totalorder %s21, 0
    %p231 = por %p229, %p230
    %p232 = scmp.le.s32.totalorder 1, %s15
    %p233 = scmp.lt.s32.totalorder %s15, 3
    %p234 = pnand %p232, %p233
    %p235 = pneg %p234
    // Predicated region
    $region9: #{vit_forward.2} parent=5 // pred_check
      _
    $region10: #{vit_forward.2} parent=5 // pred_check_branch
      %237 = sbr.rel (%p234) target = $region12
    $region11: #{vit_forward.2} parent=5 // pred_region
      %s238 = ssub.s32 %s15, 1
      // Predicated region
      $region13: #{vit_forward.2} parent=11 // pred_check
        %p239 = pneg %p88
      $region14: #{vit_forward.2} parent=11 // pred_check_branch
        %241 = sbr.rel (%p239) target = $region16
      $region15: #{vit_forward.2} parent=11 // pred_region
        _
      $region16: #{vit_forward.2} parent=11 // pred_fallthru
        _
      // Predicated region
      $region17: #{vit_forward.2} parent=11 // pred_check
        %p242 = pneg %p109
      $region18: #{vit_forward.2} parent=11 // pred_check_branch
        %244 = sbr.rel (%p242) target = $region20
      $region19: #{vit_forward.2} parent=11 // pred_region
        _
      $region20: #{vit_forward.2} parent=11 // pred_fallthru
        _
      // Predicated region
      $region21: #{vit_forward.2} parent=11 // pred_check
        %p245 = pneg %p130
      $region22: #{vit_forward.2} parent=11 // pred_check_branch
        %247 = sbr.rel (%p245) target = $region24
      $region23: #{vit_forward.2} parent=11 // pred_region
        _
      $region24: #{vit_forward.2} parent=11 // pred_fallthru
        _
      // Predicated region
      $region25: #{vit_forward.2} parent=11 // pred_check
        %p248 = pneg %p151
      $region26: #{vit_forward.2} parent=11 // pred_check_branch
        %250 = sbr.rel (%p248) target = $region28
      $region27: #{vit_forward.2} parent=11 // pred_region
        _
      $region28: #{vit_forward.2} parent=11 // pred_fallthru
        _
      // Predicated region
      $region29: #{vit_forward.2} parent=11 // pred_check
        %p251 = pneg %p172
      $region30: #{vit_forward.2} parent=11 // pred_check_branch
        %253 = sbr.rel (%p251) target = $region32
      $region31: #{vit_forward.2} parent=11 // pred_region
        _
      $region32: #{vit_forward.2} parent=11 // pred_fallthru
        _
    $region12: #{vit_forward.2} parent=5 // pred_fallthru
      _
    %p254 = scmp.lt.s32.totalorder %s15, 2
    // Predicated region
    $region33: #{vit_forward.2} parent=5 // pred_check
      %p255 = pneg %p254
    $region34: #{vit_forward.2} parent=5 // pred_check_branch
      %257 = sbr.rel (%p255) target = $region36
    $region35: #{vit_forward.2} parent=5 // pred_region
      // Predicated region
      $region37: #{vit_forward.2} parent=35 // pred_check
        %p258 = pneg %p35
      $region38: #{vit_forward.2} parent=35 // pred_check_branch
        %260 = sbr.rel (%p258) target = $region40
      $region39: #{vit_forward.2} parent=35 // pred_region
        %p261 = scmp.lt.s32.totalorder %s15, 1
        %s262 = scalar_select %p261, %s15, 1
        %s263 = smul.addr %s262, 36
        %s264 = smul.addr %s263, 8
        %s265 = scalar_lea.vmem %s0, %s264
      $region40: #{vit_forward.2} parent=35 // pred_fallthru
        _
      // Predicated region
      $region41: #{vit_forward.2} parent=35 // pred_check
        %p266 = pneg %p61
      $region42: #{vit_forward.2} parent=35 // pred_check_branch
        %268 = sbr.rel (%p266) target = $region44
      $region43: #{vit_forward.2} parent=35 // pred_region
        %p269 = scmp.lt.s32.totalorder %s15, 1
        %s270 = scalar_select %p269, %s15, 1
        %s271 = scalar_lea.vmem %s1, %s270
      $region44: #{vit_forward.2} parent=35 // pred_fallthru
        _
    $region36: #{vit_forward.2} parent=5 // pred_fallthru
      _
    %p272 = scmp.le.s32.totalorder 1, %s15
    %p273 = scmp.lt.s32.totalorder %s15, 3
    %p274 = pnand %p272, %p273
    %p275 = pneg %p274
    // Predicated region
    $region45: #{vit_forward.2} parent=5 // pred_check
      _
    $region46: #{vit_forward.2} parent=5 // pred_check_branch
      %277 = sbr.rel (%p274) target = $region48
    $region47: #{vit_forward.2} parent=5 // pred_region
      %s278 = ssub.s32 %s15, 1
      %p279 = scmp.lt.s32.totalorder %s20, 1
      %s280 = scalar_select %p279, %s20, 1
      %s281 = smul.addr %s280, 36
      %s282 = smul.addr %s281, 8
      %s283 = scalar_lea.vmem %s0, %s282
      %p284 = pneg %p41
      %p285 = pneg %p38
      %p286 = scmp.lt.s32.totalorder %s20, 1
      %s287 = scalar_select %p286, %s20, 1
      %s288 = scalar_lea.vmem %s1, %s287
      %p289 = pneg %p67
      %p290 = pneg %p64
      %p291 = pneg %p88
      %p292 = pneg %p85
      %p293 = pneg %p109
      %p294 = pneg %p106
      %p295 = pneg %p130
      %p296 = pneg %p127
      %p297 = pneg %p151
      %p298 = pneg %p148
      %p299 = pneg %p172
      %p300 = pneg %p169
      %p301 = pneg %p198
      %p302 = pneg %p195
      %p303 = scmp.lt.s32.totalorder %s20, 1
      %s304 = scalar_select %p303, %s20, 1
      %s305 = smul.addr %s304, 5
      %s306 = smul.addr %s305, 8
      %s307 = scalar_lea.vmem %s7, %s306
      %p308 = pneg %p224
      %p309 = pneg %p221
      %p310 = scmp.lt.s32.totalorder %s20, 1
      %s311 = scalar_select %p310, %s20, 1
      %s312 = scalar_lea.vmem %s8, %s311
      %p313 = scmp.lt.s32.totalorder %s20, 1
      %s314 = scalar_select %p313, %s20, 1
      %s315 = smul.addr %s314, 36
      %s316 = smul.addr %s315, 8
      %s317 = scalar_lea.vmem %s0, %s316
      %p318 = scmp.lt.s32.totalorder %s20, 1
      %s319 = scalar_select %p318, %s20, 1
      %s320 = scalar_lea.vmem %s1, %s319
      %p321 = scmp.lt.s32.totalorder %s20, 1
      %s322 = scalar_select %p321, %s20, 1
      %s323 = smul.addr %s322, 5
      %s324 = smul.addr %s323, 8
      %s325 = scalar_lea.vmem %s7, %s324
      %p326 = scmp.lt.s32.totalorder %s20, 1
      %s327 = scalar_select %p326, %s20, 1
      %s328 = scalar_lea.vmem %s8, %s327
      %v329 = vld [vmem:[%s317] sm:$0xff]
      %v330 = vld [vmem:[%s317 + $0x8] sm:$0xff]
      %v331 = vld [vmem:[%s317 + $0x10] sm:$0xff]
      %v332 = vld [vmem:[%s317 + $0x18] sm:$0xff]
      %v333 = vld [vmem:[%s317 + $0x20] sm:$0xff]
      %v334 = vld [vmem:[%s317 + $0x28] sm:$0xff]
      %v335 = vld [vmem:[%s317 + $0x30] sm:$0xff]
      %v336 = vld [vmem:[%s317 + $0x38] sm:$0xff]
      %v337 = vld [vmem:[%s317 + $0x40] sm:$0x1]
      %s338 = scalar_lea.vmem %s317, 72
      %v339 = vld [vmem:[%s338] sm:$0xff]
      %v340 = vld [vmem:[%s338 + $0x8] sm:$0xff]
      %v341 = vld [vmem:[%s338 + $0x10] sm:$0xff]
      %v342 = vld [vmem:[%s338 + $0x18] sm:$0xff]
      %v343 = vld [vmem:[%s338 + $0x20] sm:$0xff]
      %v344 = vld [vmem:[%s338 + $0x28] sm:$0xff]
      %v345 = vld [vmem:[%s338 + $0x30] sm:$0xff]
      %v346 = vld [vmem:[%s338 + $0x38] sm:$0xff]
      %v347 = vld [vmem:[%s338 + $0x40] sm:$0x1]
      %v348 = vmax.f32 %v329, %v339
      %v349 = vmax.f32 %v330, %v340
      %v350 = vmax.f32 %v331, %v341
      %v351 = vmax.f32 %v332, %v342
      %v352 = vmax.f32 %v333, %v343
      %v353 = vmax.f32 %v334, %v344
      %v354 = vmax.f32 %v335, %v345
      %v355 = vmax.f32 %v336, %v346
      %v356 = vmax.f32 %v337, %v347
      %s357 = scalar_lea.vmem %s317, 144
      %v358 = vld [vmem:[%s357] sm:$0xff]
      %v359 = vld [vmem:[%s357 + $0x8] sm:$0xff]
      %v360 = vld [vmem:[%s357 + $0x10] sm:$0xff]
      %v361 = vld [vmem:[%s357 + $0x18] sm:$0xff]
      %v362 = vld [vmem:[%s357 + $0x20] sm:$0xff]
      %v363 = vld [vmem:[%s357 + $0x28] sm:$0xff]
      %v364 = vld [vmem:[%s357 + $0x30] sm:$0xff]
      %v365 = vld [vmem:[%s357 + $0x38] sm:$0xff]
      %v366 = vld [vmem:[%s357 + $0x40] sm:$0x1]
      %s367 = scalar_lea.vmem %s317, 216
      %v368 = vld [vmem:[%s367] sm:$0xff]
      %v369 = vld [vmem:[%s367 + $0x8] sm:$0xff]
      %v370 = vld [vmem:[%s367 + $0x10] sm:$0xff]
      %v371 = vld [vmem:[%s367 + $0x18] sm:$0xff]
      %v372 = vld [vmem:[%s367 + $0x20] sm:$0xff]
      %v373 = vld [vmem:[%s367 + $0x28] sm:$0xff]
      %v374 = vld [vmem:[%s367 + $0x30] sm:$0xff]
      %v375 = vld [vmem:[%s367 + $0x38] sm:$0xff]
      %v376 = vld [vmem:[%s367 + $0x40] sm:$0x1]
      %v377 = vmax.f32 %v358, %v368
      %v378 = vmax.f32 %v359, %v369
      %v379 = vmax.f32 %v360, %v370
      %v380 = vmax.f32 %v361, %v371
      %v381 = vmax.f32 %v362, %v372
      %v382 = vmax.f32 %v363, %v373
      %v383 = vmax.f32 %v364, %v374
      %v384 = vmax.f32 %v365, %v375
      %v385 = vmax.f32 %v366, %v376
      %v386 = vmax.f32 %v348, %v377
      %v387 = vmax.f32 %v349, %v378
      %v388 = vmax.f32 %v350, %v379
      %v389 = vmax.f32 %v351, %v380
      %v390 = vmax.f32 %v352, %v381
      %v391 = vmax.f32 %v353, %v382
      %v392 = vmax.f32 %v354, %v383
      %v393 = vmax.f32 %v355, %v384
      %v394 = vmax.f32 %v356, %v385
      %v395 = vld [vmem:[%s3] sm:$0xff]
      %vm396 = vcmask 64512
      %v398 = vsel %vm396, %v386, 0
      %v401 = vsel %vm396, %v387, 0
      %v404 = vsel %vm396, %v388, 0
      %v407 = vsel %vm396, %v389, 0
      %v410 = vsel %vm396, %v390, 0
      %v413 = vsel %vm396, %v391, 0
      %v416 = vsel %vm396, %v392, 0
      %v419 = vsel %vm396, %v393, 0
      %v422 = vsel %vm396, %v394, 0
      %424 = vmatprep.subr.mxu0 0.0
      %425 = vmatpush1.msra.mxu0 %v395
      %426 = vmatprep.subr.mxu0 0.0
      %427 = vmatpush1.msra.mxu0 0.0
      %428 = vmatprep.subr.mxu0 0.0
      %429 = vmatpush1.msra.mxu0 0.0
      %430 = vmatprep.subr.mxu0 0.0
      %431 = vmatpush1.msra.mxu0 0.0
      %432 = vmatprep.subr.mxu0 0.0
      %433 = vmatpush1.msra.mxu0 0.0
      %434 = vmatprep.subr.mxu0 0.0
      %435 = vmatpush1.msra.mxu0 0.0
      %436 = vmatprep.subr.mxu0 0.0
      %437 = vmatpush1.msra.mxu0 0.0
      %438 = vmatprep.subr.mxu0 0.0
      %439 = vmatpush1.msra.mxu0 0.0
      %440 = vmatprep.subr.mxu0 0.0
      %441 = vmatpush1.msra.mxu0 0.0
      %442 = vmatprep.subr.mxu0 0.0
      %443 = vmatpush1.msra.mxu0 0.0
      %444 = vmatprep.subr.mxu0 0.0
      %445 = vmatpush1.msra.mxu0 0.0
      %446 = vmatprep.subr.mxu0 0.0
      %447 = vmatpush1.msra.mxu0 0.0
      %448 = vmatprep.subr.mxu0 0.0
      %449 = vmatpush1.msra.mxu0 0.0
      %450 = vmatprep.subr.mxu0 0.0
      %451 = vmatpush1.msra.mxu0 0.0
      %452 = vmatprep.subr.mxu0 0.0
      %453 = vmatpush1.msra.mxu0 0.0
      %454 = vmatprep.subr.mxu0 0.0
      %455 = vmatpush1.msra.mxu0 0.0
      %456 = vmatprep.subr.mxu0 0.0
      %457 = vmatpush1.msra.mxu0 0.0
      %458 = vmatprep.subr.mxu0 0.0
      %459 = vmatpush1.msra.mxu0 0.0
      %460 = vmatprep.subr.mxu0 0.0
      %461 = vmatpush1.msra.mxu0 0.0
      %462 = vmatprep.subr.mxu0 0.0
      %463 = vmatpush1.msra.mxu0 0.0
      %464 = vmatprep.subr.mxu0 0.0
      %465 = vmatpush1.msra.mxu0 0.0
      %466 = vmatprep.subr.mxu0 0.0
      %467 = vmatpush1.msra.mxu0 0.0
      %468 = vmatprep.subr.mxu0 0.0
      %469 = vmatpush1.msra.mxu0 0.0
      %470 = vmatprep.subr.mxu0 0.0
      %471 = vmatpush1.msra.mxu0 0.0
      %472 = vmatprep.subr.mxu0 0.0
      %473 = vmatpush1.msra.mxu0 0.0
      %474 = vmatprep.subr.mxu0 0.0
      %475 = vmatpush1.msra.mxu0 0.0
      %476 = vmatprep.subr.mxu0 0.0
      %477 = vmatpush1.msra.mxu0 0.0
      %478 = vmatprep.subr.mxu0 0.0
      %479 = vmatpush1.msra.mxu0 0.0
      %480 = vmatprep.subr.mxu0 0.0
      %481 = vmatpush1.msra.mxu0 0.0
      %482 = vmatprep.subr.mxu0 0.0
      %483 = vmatpush1.msra.mxu0 0.0
      %484 = vmatprep.subr.mxu0 0.0
      %485 = vmatpush1.msra.mxu0 0.0
      %486 = vmatprep.subr.mxu0 0.0
      %487 = vmatpush1.msra.mxu0 0.0
      %488 = vmatprep.mubr.f32.mxu0 0.0
      %489 = vmatmul.mubr.f32.gmra.mrb[0].mxu0 %v398
      %v490 = vpop.f32.mrb[0].mxu0
      %v491 = vadd.f32 0.0, %v490
      %v492 = vpop.f32.mrb[0].mxu0
      %493 = vmatprep.mubr.f32.mxu0 0.0
      %494 = vmatmul.mubr.f32.gmra.mrb[0].mxu0 %v401
      %v495 = vpop.f32.mrb[0].mxu0
      %v496 = vadd.f32 0.0, %v495
      %v497 = vpop.f32.mrb[0].mxu0
      %498 = vmatprep.mubr.f32.mxu0 0.0
      %499 = vmatmul.mubr.f32.gmra.mrb[0].mxu0 %v404
      %v500 = vpop.f32.mrb[0].mxu0
      %v501 = vadd.f32 0.0, %v500
      %v502 = vpop.f32.mrb[0].mxu0
      %503 = vmatprep.mubr.f32.mxu0 0.0
      %504 = vmatmul.mubr.f32.gmra.mrb[0].mxu0 %v407
      %v505 = vpop.f32.mrb[0].mxu0
      %v506 = vadd.f32 0.0, %v505
      %v507 = vpop.f32.mrb[0].mxu0
      %508 = vmatprep.mubr.f32.mxu0 0.0
      %509 = vmatmul.mubr.f32.gmra.mrb[0].mxu0 %v410
      %v510 = vpop.f32.mrb[0].mxu0
      %v511 = vadd.f32 0.0, %v510
      %v512 = vpop.f32.mrb[0].mxu0
      %513 = vmatprep.mubr.f32.mxu0 0.0
      %514 = vmatmul.mubr.f32.gmra.mrb[0].mxu0 %v413
      %v515 = vpop.f32.mrb[0].mxu0
      %v516 = vadd.f32 0.0, %v515
      %v517 = vpop.f32.mrb[0].mxu0
      %518 = vmatprep.mubr.f32.mxu0 0.0
      %519 = vmatmul.mubr.f32.gmra.mrb[0].mxu0 %v416
      %v520 = vpop.f32.mrb[0].mxu0
      %v521 = vadd.f32 0.0, %v520
      %v522 = vpop.f32.mrb[0].mxu0
      %523 = vmatprep.mubr.f32.mxu0 0.0
      %524 = vmatmul.mubr.f32.gmra.mrb[0].mxu0 %v419
      %v525 = vpop.f32.mrb[0].mxu0
      %v526 = vadd.f32 0.0, %v525
      %v527 = vpop.f32.mrb[0].mxu0
      %528 = vmatprep.mubr.f32.mxu0 0.0
      %529 = vmatmul.mubr.f32.gmra.mrb[0].mxu0 %v422
      %v530 = vpop.f32.mrb[0].mxu0
      %v531 = vadd.f32 0.0, %v530
      %v532 = vpop.f32.mrb[0].mxu0
      %533 = vdwg.mxu0
      %v534 = vlaneseq
      %v535 = vshrl.u32 %v534, 7
      %v536 = vadd.s32 %v535, 8
      %v537 = vadd.s32 %v535, 16
      %v538 = vadd.s32 %v535, 24
      %v539 = vadd.s32 %v535, 32
      %v540 = vadd.s32 %v535, 40
      %v541 = vadd.s32 %v535, 48
      %v542 = vadd.s32 %v535, 56
      %v543 = vadd.s32 %v535, 64
      %vm544 = vcmp.eq.s32.totalorder %v535, 0
      %vm545 = vcmp.eq.s32.totalorder %v536, 0
      %vm546 = vcmp.eq.s32.totalorder %v537, 0
      %vm547 = vcmp.eq.s32.totalorder %v538, 0
      %vm548 = vcmp.eq.s32.totalorder %v539, 0
      %vm549 = vcmp.eq.s32.totalorder %v540, 0
      %vm550 = vcmp.eq.s32.totalorder %v541, 0
      %vm551 = vcmp.eq.s32.totalorder %v542, 0
      %vm552 = vcmp.eq.s32.totalorder %v543, 0
      %v553 = vld [vmem:[%s2] sm:$0x1]
      %v555 = vlaneseq
      %v556 = vshrl.u32 %v555, 7
      %v557 = vsub.s32 0, %v556
      %v558 = vrot.slane %v553, %v557
      %v560 = vsel %vm544, %v558, %v491
      %v561 = vsel %vm545, %v558, %v496
      %v562 = vsel %vm546, %v558, %v501
      %v563 = vsel %vm547, %v558, %v506
      %v564 = vsel %vm548, %v558, %v511
      %v565 = vsel %vm549, %v558, %v516
      %v566 = vsel %vm550, %v558, %v521
      %v567 = vsel %vm551, %v558, %v526
      %v568 = vsel %vm552, %v558, %v531
      %v569 = vld [vmem:[%s320] sm:$0x1]
      %v571 = vlaneseq
      %v572 = vshrl.u32 %v571, 7
      %v573 = vsub.s32 0, %v572
      %v574 = vrot.slane %v569, %v573
      %v576 = vadd.f32 %v560, %v574
      %v577 = vadd.f32 %v561, %v574
      %v578 = vadd.f32 %v562, %v574
      %v579 = vadd.f32 %v563, %v574
      %v580 = vadd.f32 %v564, %v574
      %v581 = vadd.f32 %v565, %v574
      %v582 = vadd.f32 %v566, %v574
      %v583 = vadd.f32 %v567, %v574
      %v584 = vadd.f32 %v568, %v574
      %v585 = vld [vmem:[%s4] sm:$0x1]
      %v586 = vld [vmem:[%s5] sm:$0x1]
      %vm587 = vcmask 293888
      %v588 = vsel %vm587, %v576, 0.0
      %589 = vadd.xlane.f32.xlu0 %v588
      %v590 = vpop.xlane.xlu0 %589
      %v591 = vsel %vm587, %v577, 0.0
      %592 = vadd.xlane.f32.xlu0 %v591
      %v593 = vpop.xlane.xlu0 %592
      %v594 = vsel %vm587, %v578, 0.0
      %595 = vadd.xlane.f32.xlu0 %v594
      %v596 = vpop.xlane.xlu0 %595
      %v597 = vsel %vm587, %v579, 0.0
      %598 = vadd.xlane.f32.xlu0 %v597
      %v599 = vpop.xlane.xlu0 %598
      %v600 = vsel %vm587, %v580, 0.0
      %601 = vadd.xlane.f32.xlu0 %v600
      %v602 = vpop.xlane.xlu0 %601
      %v603 = vsel %vm587, %v581, 0.0
      %604 = vadd.xlane.f32.xlu0 %v603
      %v605 = vpop.xlane.xlu0 %604
      %v606 = vsel %vm587, %v582, 0.0
      %607 = vadd.xlane.f32.xlu0 %v606
      %v608 = vpop.xlane.xlu0 %607
      %v609 = vsel %vm587, %v583, 0.0
      %610 = vadd.xlane.f32.xlu0 %v609
      %v611 = vpop.xlane.xlu0 %610
      %vm612 = vcmask 286720
      %v613 = vsel %vm612, %v584, 0.0
      %614 = vadd.xlane.f32.xlu0 %v613
      %v615 = vpop.xlane.xlu0 %614
      %v616 = vrcp.pop 36.0
      %v617 = vmul.f32 %v590, %v616
      %v618 = vmul.f32 %v593, %v616
      %v619 = vmul.f32 %v596, %v616
      %v620 = vmul.f32 %v599, %v616
      %v621 = vmul.f32 %v602, %v616
      %v622 = vmul.f32 %v605, %v616
      %v623 = vmul.f32 %v608, %v616
      %v624 = vmul.f32 %v611, %v616
      %v625 = vmul.f32 %v615, %v616
      %v626 = vsub.f32 %v576, %v617
      %v627 = vsub.f32 %v577, %v618
      %v628 = vsub.f32 %v578, %v619
      %v629 = vsub.f32 %v579, %v620
      %v630 = vsub.f32 %v580, %v621
      %v631 = vsub.f32 %v581, %v622
      %v632 = vsub.f32 %v582, %v623
      %v633 = vsub.f32 %v583, %v624
      %v634 = vsub.f32 %v584, %v625
      %v635 = vmul.f32 %v626, %v626
      %v636 = vmul.f32 %v627, %v627
      %v637 = vmul.f32 %v628, %v628
      %v638 = vmul.f32 %v629, %v629
      %v639 = vmul.f32 %v630, %v630
      %v640 = vmul.f32 %v631, %v631
      %v641 = vmul.f32 %v632, %v632
      %v642 = vmul.f32 %v633, %v633
      %v643 = vmul.f32 %v634, %v634
      %v644 = vsel %vm587, %v635, 0.0
      %645 = vadd.xlane.f32.xlu0 %v644
      %v646 = vpop.xlane.xlu0 %645
      %v647 = vsel %vm587, %v636, 0.0
      %648 = vadd.xlane.f32.xlu0 %v647
      %v649 = vpop.xlane.xlu0 %648
      %v650 = vsel %vm587, %v637, 0.0
      %651 = vadd.xlane.f32.xlu0 %v650
      %v652 = vpop.xlane.xlu0 %651
      %v653 = vsel %vm587, %v638, 0.0
      %654 = vadd.xlane.f32.xlu0 %v653
      %v655 = vpop.xlane.xlu0 %654
      %v656 = vsel %vm587, %v639, 0.0
      %657 = vadd.xlane.f32.xlu0 %v656
      %v658 = vpop.xlane.xlu0 %657
      %v659 = vsel %vm587, %v640, 0.0
      %660 = vadd.xlane.f32.xlu0 %v659
      %v661 = vpop.xlane.xlu0 %660
      %v662 = vsel %vm587, %v641, 0.0
      %663 = vadd.xlane.f32.xlu0 %v662
      %v664 = vpop.xlane.xlu0 %663
      %v665 = vsel %vm587, %v642, 0.0
      %666 = vadd.xlane.f32.xlu0 %v665
      %v667 = vpop.xlane.xlu0 %666
      %v668 = vsel %vm612, %v643, 0.0
      %669 = vadd.xlane.f32.xlu0 %v668
      %v670 = vpop.xlane.xlu0 %669
      %v671 = vmul.f32 %v646, %v616
      %v672 = vmul.f32 %v649, %v616
      %v673 = vmul.f32 %v652, %v616
      %v674 = vmul.f32 %v655, %v616
      %v675 = vmul.f32 %v658, %v616
      %v676 = vmul.f32 %v661, %v616
      %v677 = vmul.f32 %v664, %v616
      %v678 = vmul.f32 %v667, %v616
      %v679 = vmul.f32 %v670, %v616
      %v680 = vadd.f32 %v671, 1e-06
      %v681 = vadd.f32 %v672, 1e-06
      %v682 = vadd.f32 %v673, 1e-06
      %v683 = vadd.f32 %v674, 1e-06
      %v684 = vadd.f32 %v675, 1e-06
      %v685 = vadd.f32 %v676, 1e-06
      %v686 = vadd.f32 %v677, 1e-06
      %v687 = vadd.f32 %v678, 1e-06
      %v688 = vadd.f32 %v679, 1e-06
      %v689 = vrsqrt.pop %v680
      %v690 = vrsqrt.pop %v681
      %v691 = vrsqrt.pop %v682
      %v692 = vrsqrt.pop %v683
      %v693 = vrsqrt.pop %v684
      %v694 = vrsqrt.pop %v685
      %v695 = vrsqrt.pop %v686
      %v696 = vrsqrt.pop %v687
      %v697 = vrsqrt.pop %v688
      %v698 = vmul.f32 %v626, %v689
      %v699 = vmul.f32 %v627, %v690
      %v700 = vmul.f32 %v628, %v691
      %v701 = vmul.f32 %v629, %v692
      %v702 = vmul.f32 %v630, %v693
      %v703 = vmul.f32 %v631, %v694
      %v704 = vmul.f32 %v632, %v695
      %v705 = vmul.f32 %v633, %v696
      %v706 = vmul.f32 %v634, %v697
      %v708 = vlaneseq
      %v709 = vshrl.u32 %v708, 7
      %v710 = vsub.s32 0, %v709
      %v711 = vrot.slane %v585, %v710
      %v713 = vmul.f32 %v698, %v711
      %v714 = vmul.f32 %v699, %v711
      %v715 = vmul.f32 %v700, %v711
      %v716 = vmul.f32 %v701, %v711
      %v717 = vmul.f32 %v702, %v711
      %v718 = vmul.f32 %v703, %v711
      %v719 = vmul.f32 %v704, %v711
      %v720 = vmul.f32 %v705, %v711
      %v721 = vmul.f32 %v706, %v711
      %v723 = vlaneseq
      %v724 = vshrl.u32 %v723, 7
      %v725 = vsub.s32 0, %v724
      %v726 = vrot.slane %v586, %v725
      %v728 = vadd.f32 %v713, %v726
      %v729 = vadd.f32 %v714, %v726
      %v730 = vadd.f32 %v715, %v726
      %v731 = vadd.f32 %v716, %v726
      %v732 = vadd.f32 %v717, %v726
      %v733 = vadd.f32 %v718, %v726
      %v734 = vadd.f32 %v719, %v726
      %v735 = vadd.f32 %v720, %v726
      %v736 = vadd.f32 %v721, %v726
      %v737 = vld [vmem:[%s6] sm:$0xff]
      %v738 = vld [vmem:[%s6 + $0x8] sm:$0xff]
      %v739 = vld [vmem:[%s6 + $0x10] sm:$0xff]
      %v740 = vld [vmem:[%s6 + $0x18] sm:$0xff]
      %v741 = vld [vmem:[%s6 + $0x20] sm:$0xff]
      %v742 = vld [vmem:[%s6 + $0x28] sm:$0xff]
      %v743 = vld [vmem:[%s6 + $0x30] sm:$0xff]
      %v744 = vld [vmem:[%s6 + $0x38] sm:$0xff]
      %v745 = vld [vmem:[%s6 + $0x40] sm:$0xff]
      %v746 = vld [vmem:[%s6 + $0x48] sm:$0xff]
      %v747 = vld [vmem:[%s6 + $0x50] sm:$0xff]
      %v748 = vld [vmem:[%s6 + $0x58] sm:$0xff]
      %v749 = vld [vmem:[%s6 + $0x60] sm:$0xf]
      %v750 = vld [vmem:[%s6 + $0x68] sm:$0xf]
      %v751 = vld [vmem:[%s6 + $0x70] sm:$0xf]
      %v753 = vsel %vm587, %v728, 0
      %v756 = vsel %vm587, %v729, 0
      %v759 = vsel %vm587, %v730, 0
      %v762 = vsel %vm587, %v731, 0
      %v765 = vsel %vm587, %v732, 0
      %v768 = vsel %vm587, %v733, 0
      %v771 = vsel %vm587, %v734, 0
      %v774 = vsel %vm587, %v735, 0
      %v777 = vsel %vm587, %v736, 0
      %vm779 = vcmask 1043456
      %v781 = vsel %vm779, %v749, 0
      %v784 = vsel %vm779, %v750, 0
      %v787 = vsel %vm779, %v751, 0
      %789 = vmatprep.subr.mxu0 %v738
      %790 = vmatpush1.msra.mxu0 %v737
      %791 = vmatprep.subr.mxu0 %v741
      %792 = vmatpush1.msra.mxu0 %v740
      %793 = vmatprep.subr.mxu0 %v744
      %794 = vmatpush1.msra.mxu0 %v743
      %795 = vmatprep.subr.mxu0 %v747
      %796 = vmatpush1.msra.mxu0 %v746
      %797 = vmatprep.subr.mxu0 %v784
      %798 = vmatpush1.msra.mxu0 %v781
      %799 = vmatprep.subr.mxu0 0.0
      %800 = vmatpush1.msra.mxu0 0.0
      %801 = vmatprep.subr.mxu0 0.0
      %802 = vmatpush1.msra.mxu0 0.0
      %803 = vmatprep.subr.mxu0 0.0
      %804 = vmatpush1.msra.mxu0 0.0
      %805 = vmatprep.subr.mxu0 0.0
      %806 = vmatpush1.msra.mxu0 0.0
      %807 = vmatprep.subr.mxu0 0.0
      %808 = vmatpush1.msra.mxu0 0.0
      %809 = vmatprep.subr.mxu0 0.0
      %810 = vmatpush1.msra.mxu0 0.0
      %811 = vmatprep.subr.mxu0 0.0
      %812 = vmatpush1.msra.mxu0 0.0
      %813 = vmatprep.subr.mxu0 0.0
      %814 = vmatpush1.msra.mxu0 0.0
      %815 = vmatprep.subr.mxu0 0.0
      %816 = vmatpush1.msra.mxu0 0.0
      %817 = vmatprep.subr.mxu0 0.0
      %818 = vmatpush1.msra.mxu0 0.0
      %819 = vmatprep.subr.mxu0 0.0
      %820 = vmatpush1.msra.mxu0 0.0
      %821 = vmatprep.subr.mxu0 0.0
      %822 = vmatpush1.msra.mxu0 0.0
      %823 = vmatprep.subr.mxu0 0.0
      %824 = vmatpush1.msra.mxu0 0.0
      %825 = vmatprep.subr.mxu0 0.0
      %826 = vmatpush1.msra.mxu0 0.0
      %827 = vmatprep.subr.mxu0 0.0
      %828 = vmatpush1.msra.mxu0 0.0
      %829 = vmatprep.subr.mxu0 0.0
      %830 = vmatpush1.msra.mxu0 0.0
      %831 = vmatprep.subr.mxu0 0.0
      %832 = vmatpush1.msra.mxu0 0.0
      %833 = vmatprep.subr.mxu0 0.0
      %834 = vmatpush1.msra.mxu0 0.0
      %835 = vmatprep.subr.mxu0 0.0
      %836 = vmatpush1.msra.mxu0 0.0
      %837 = vmatprep.subr.mxu0 0.0
      %838 = vmatpush1.msra.mxu0 0.0
      %839 = vmatprep.subr.mxu0 0.0
      %840 = vmatpush1.msra.mxu0 0.0
      %841 = vmatprep.subr.mxu0 0.0
      %842 = vmatpush1.msra.mxu0 0.0
      %843 = vmatprep.subr.mxu0 0.0
      %844 = vmatpush1.msra.mxu0 0.0
      %845 = vmatprep.subr.mxu0 0.0
      %846 = vmatpush1.msra.mxu0 0.0
      %847 = vmatprep.subr.mxu0 0.0
      %848 = vmatpush1.msra.mxu0 0.0
      %849 = vmatprep.subr.mxu0 0.0
      %850 = vmatpush1.msra.mxu0 0.0
      %851 = vmatprep.subr.mxu0 0.0
      %852 = vmatpush1.msra.mxu0 0.0
      %853 = vmatprep.mubr.f32.mxu0 0.0
      %854 = vmatmul.mubr.f32.gmra.mrb[0].mxu0 %v753
      %v855 = vpop.f32.mrb[0].mxu0
      %v856 = vadd.f32 0.0, %v855
      %v857 = vpop.f32.mrb[0].mxu0
      %v858 = vadd.f32 0.0, %v857
      %859 = vmatprep.mubr.f32.mxu0 0.0
      %860 = vmatmul.mubr.f32.gmra.mrb[0].mxu0 %v756
      %v861 = vpop.f32.mrb[0].mxu0
      %v862 = vadd.f32 0.0, %v861
      %v863 = vpop.f32.mrb[0].mxu0
      %v864 = vadd.f32 0.0, %v863
      %865 = vmatprep.mubr.f32.mxu0 0.0
      %866 = vmatmul.mubr.f32.gmra.mrb[0].mxu0 %v759
      %v867 = vpop.f32.mrb[0].mxu0
      %v868 = vadd.f32 0.0, %v867
      %v869 = vpop.f32.mrb[0].mxu0
      %v870 = vadd.f32 0.0, %v869
      %871 = vmatprep.mubr.f32.mxu0 0.0
      %872 = vmatmul.mubr.f32.gmra.mrb[0].mxu0 %v762
      %v873 = vpop.f32.mrb[0].mxu0
      %v874 = vadd.f32 0.0, %v873
      %v875 = vpop.f32.mrb[0].mxu0
      %v876 = vadd.f32 0.0, %v875
      %877 = vmatprep.mubr.f32.mxu0 0.0
      %878 = vmatmul.mubr.f32.gmra.mrb[0].mxu0 %v765
      %v879 = vpop.f32.mrb[0].mxu0
      %v880 = vadd.f32 0.0, %v879
      %v881 = vpop.f32.mrb[0].mxu0
      %v882 = vadd.f32 0.0, %v881
      %883 = vmatprep.mubr.f32.mxu0 0.0
      %884 = vmatmul.mubr.f32.gmra.mrb[0].mxu0 %v768
      %v885 = vpop.f32.mrb[0].mxu0
      %v886 = vadd.f32 0.0, %v885
      %v887 = vpop.f32.mrb[0].mxu0
      %v888 = vadd.f32 0.0, %v887
      %889 = vmatprep.mubr.f32.mxu0 0.0
      %890 = vmatmul.mubr.f32.gmra.mrb[0].mxu0 %v771
      %v891 = vpop.f32.mrb[0].mxu0
      %v892 = vadd.f32 0.0, %v891
      %v893 = vpop.f32.mrb[0].mxu0
      %v894 = vadd.f32 0.0, %v893
      %895 = vmatprep.mubr.f32.mxu0 0.0
      %896 = vmatmul.mubr.f32.gmra.mrb[0].mxu0 %v774
      %v897 = vpop.f32.mrb[0].mxu0
      %v898 = vadd.f32 0.0, %v897
      %v899 = vpop.f32.mrb[0].mxu0
      %v900 = vadd.f32 0.0, %v899
      %901 = vmatprep.mubr.f32.mxu0 0.0
      %902 = vmatmul.mubr.f32.gmra.mrb[0].mxu0 %v777
      %v903 = vpop.f32.mrb[0].mxu0
      %v904 = vadd.f32 0.0, %v903
      %v905 = vpop.f32.mrb[0].mxu0
      %v906 = vadd.f32 0.0, %v905
      %907 = vdwg.mxu0
      %908 = vmatprep.subr.mxu0 0.0
      %909 = vmatpush1.msra.mxu0 %v739
      %910 = vmatprep.subr.mxu0 0.0
      %911 = vmatpush1.msra.mxu0 %v742
      %912 = vmatprep.subr.mxu0 0.0
      %913 = vmatpush1.msra.mxu0 %v745
      %914 = vmatprep.subr.mxu0 0.0
      %915 = vmatpush1.msra.mxu0 %v748
      %916 = vmatprep.subr.mxu0 0.0
      %917 = vmatpush1.msra.mxu0 %v787
      %918 = vmatprep.subr.mxu0 0.0
      %919 = vmatpush1.msra.mxu0 0.0
      %920 = vmatprep.subr.mxu0 0.0
      %921 = vmatpush1.msra.mxu0 0.0
      %922 = vmatprep.subr.mxu0 0.0
      %923 = vmatpush1.msra.mxu0 0.0
      %924 = vmatprep.subr.mxu0 0.0
      %925 = vmatpush1.msra.mxu0 0.0
      %926 = vmatprep.subr.mxu0 0.0
      %927 = vmatpush1.msra.mxu0 0.0
      %928 = vmatprep.subr.mxu0 0.0
      %929 = vmatpush1.msra.mxu0 0.0
      %930 = vmatprep.subr.mxu0 0.0
      %931 = vmatpush1.msra.mxu0 0.0
      %932 = vmatprep.subr.mxu0 0.0
      %933 = vmatpush1.msra.mxu0 0.0
      %934 = vmatprep.subr.mxu0 0.0
      %935 = vmatpush1.msra.mxu0 0.0
      %936 = vmatprep.subr.mxu0 0.0
      %937 = vmatpush1.msra.mxu0 0.0
      %938 = vmatprep.subr.mxu0 0.0
      %939 = vmatpush1.msra.mxu0 0.0
      %940 = vmatprep.subr.mxu0 0.0
      %941 = vmatpush1.msra.mxu0 0.0
      %942 = vmatprep.subr.mxu0 0.0
      %943 = vmatpush1.msra.mxu0 0.0
      %944 = vmatprep.subr.mxu0 0.0
      %945 = vmatpush1.msra.mxu0 0.0
      %946 = vmatprep.subr.mxu0 0.0
      %947 = vmatpush1.msra.mxu0 0.0
      %948 = vmatprep.subr.mxu0 0.0
      %949 = vmatpush1.msra.mxu0 0.0
      %950 = vmatprep.subr.mxu0 0.0
      %951 = vmatpush1.msra.mxu0 0.0
      %952 = vmatprep.subr.mxu0 0.0
      %953 = vmatpush1.msra.mxu0 0.0
      %954 = vmatprep.subr.mxu0 0.0
      %955 = vmatpush1.msra.mxu0 0.0
      %956 = vmatprep.subr.mxu0 0.0
      %957 = vmatpush1.msra.mxu0 0.0
      %958 = vmatprep.subr.mxu0 0.0
      %959 = vmatpush1.msra.mxu0 0.0
      %960 = vmatprep.subr.mxu0 0.0
      %961 = vmatpush1.msra.mxu0 0.0
      %962 = vmatprep.subr.mxu0 0.0
      %963 = vmatpush1.msra.mxu0 0.0
      %964 = vmatprep.subr.mxu0 0.0
      %965 = vmatpush1.msra.mxu0 0.0
      %966 = vmatprep.subr.mxu0 0.0
      %967 = vmatpush1.msra.mxu0 0.0
      %968 = vmatprep.subr.mxu0 0.0
      %969 = vmatpush1.msra.mxu0 0.0
      %970 = vmatprep.subr.mxu0 0.0
      %971 = vmatpush1.msra.mxu0 0.0
      %972 = vmatprep.mubr.f32.mxu0 0.0
      %973 = vmatmul.mubr.f32.gmra.mrb[0].mxu0 %v753
      %v974 = vpop.f32.mrb[0].mxu0
      %v975 = vadd.f32 0.0, %v974
      %v976 = vpop.f32.mrb[0].mxu0
      %977 = vmatprep.mubr.f32.mxu0 0.0
      %978 = vmatmul.mubr.f32.gmra.mrb[0].mxu0 %v756
      %v979 = vpop.f32.mrb[0].mxu0
      %v980 = vadd.f32 0.0, %v979
      %v981 = vpop.f32.mrb[0].mxu0
      %982 = vmatprep.mubr.f32.mxu0 0.0
      %983 = vmatmul.mubr.f32.gmra.mrb[0].mxu0 %v759
      %v984 = vpop.f32.mrb[0].mxu0
      %v985 = vadd.f32 0.0, %v984
      %v986 = vpop.f32.mrb[0].mxu0
      %987 = vmatprep.mubr.f32.mxu0 0.0
      %988 = vmatmul.mubr.f32.gmra.mrb[0].mxu0 %v762
      %v989 = vpop.f32.mrb[0].mxu0
      %v990 = vadd.f32 0.0, %v989
      %v991 = vpop.f32.mrb[0].mxu0
      %992 = vmatprep.mubr.f32.mxu0 0.0
      %993 = vmatmul.mubr.f32.gmra.mrb[0].mxu0 %v765
      %v994 = vpop.f32.mrb[0].mxu0
      %v995 = vadd.f32 0.0, %v994
      %v996 = vpop.f32.mrb[0].mxu0
      %997 = vmatprep.mubr.f32.mxu0 0.0
      %998 = vmatmul.mubr.f32.gmra.mrb[0].mxu0 %v768
      %v999 = vpop.f32.mrb[0].mxu0
      %v1000 = vadd.f32 0.0, %v999
      %v1001 = vpop.f32.mrb[0].mxu0
      %1002 = vmatprep.mubr.f32.mxu0 0.0
      %1003 = vmatmul.mubr.f32.gmra.mrb[0].mxu0 %v771
      %v1004 = vpop.f32.mrb[0].mxu0
      %v1005 = vadd.f32 0.0, %v1004
      %v1006 = vpop.f32.mrb[0].mxu0
      %1007 = vmatprep.mubr.f32.mxu0 0.0
      %1008 = vmatmul.mubr.f32.gmra.mrb[0].mxu0 %v774
      %v1009 = vpop.f32.mrb[0].mxu0
      %v1010 = vadd.f32 0.0, %v1009
      %v1011 = vpop.f32.mrb[0].mxu0
      %1012 = vmatprep.mubr.f32.mxu0 0.0
      %1013 = vmatmul.mubr.f32.gmra.mrb[0].mxu0 %v777
      %v1014 = vpop.f32.mrb[0].mxu0
      %v1015 = vadd.f32 0.0, %v1014
      %v1016 = vpop.f32.mrb[0].mxu0
      %1017 = vdwg.mxu0
      %1018 = vmatprep.subr.mxu0 0.0
      %1019 = vmatpush1.xpose.msra.mxu0 %v858
      %1020 = vmatprep.subr.mxu0 0.0
      %1021 = vmatpush1.xpose.msra.mxu0 %v864
      %1022 = vmatprep.subr.mxu0 0.0
      %1023 = vmatpush1.xpose.msra.mxu0 %v870
      %1024 = vmatprep.subr.mxu0 0.0
      %1025 = vmatpush1.xpose.msra.mxu0 %v876
      %1026 = vmatprep.subr.mxu0 0.0
      %1027 = vmatpush1.xpose.msra.mxu0 %v882
      %1028 = vmatprep.subr.mxu0 0.0
      %1029 = vmatpush1.xpose.msra.mxu0 %v888
      %1030 = vmatprep.subr.mxu0 0.0
      %1031 = vmatpush1.xpose.msra.mxu0 %v894
      %1032 = vmatprep.subr.mxu0 0.0
      %1033 = vmatpush1.xpose.msra.mxu0 %v900
      %1034 = vmatprep.subr.mxu0 0.0
      %1035 = vmatpush1.xpose.msra.mxu0 %v906
      %1036 = vmatprep.subr.mxu0 0.0
      %1037 = vmatpush1.xpose.msra.mxu0 0.0
      %1038 = vmatprep.subr.mxu0 0.0
      %1039 = vmatpush1.xpose.msra.mxu0 0.0
      %1040 = vmatprep.subr.mxu0 0.0
      %1041 = vmatpush1.xpose.msra.mxu0 0.0
      %1042 = vmatprep.subr.mxu0 0.0
      %1043 = vmatpush1.xpose.msra.mxu0 0.0
      %1044 = vmatprep.subr.mxu0 0.0
      %1045 = vmatpush1.xpose.msra.mxu0 0.0
      %1046 = vmatprep.subr.mxu0 0.0
      %1047 = vmatpush1.xpose.msra.mxu0 0.0
      %1048 = vmatprep.subr.mxu0 0.0
      %1049 = vmatpush1.xpose.msra.mxu0 0.0
      %1050 = vmatprep.subr.mxu0 0.0
      %1051 = vmatpush1.xpose.msra.mxu0 0.0
      %1052 = vmatprep.subr.mxu0 0.0
      %1053 = vmatpush1.xpose.msra.mxu0 0.0
      %1054 = vmatprep.subr.mxu0 0.0
      %1055 = vmatpush1.xpose.msra.mxu0 0.0
      %1056 = vmatprep.subr.mxu0 0.0
      %1057 = vmatpush1.xpose.msra.mxu0 0.0
      %1058 = vmatprep.subr.mxu0 0.0
      %1059 = vmatpush1.xpose.msra.mxu0 0.0
      %1060 = vmatprep.subr.mxu0 0.0
      %1061 = vmatpush1.xpose.msra.mxu0 0.0
      %1062 = vmatprep.subr.mxu0 0.0
      %1063 = vmatpush1.xpose.msra.mxu0 0.0
      %1064 = vmatprep.subr.mxu0 0.0
      %1065 = vmatpush1.xpose.msra.mxu0 0.0
      %1066 = vmatprep.subr.mxu0 0.0
      %1067 = vmatpush1.xpose.msra.mxu0 0.0
      %1068 = vmatprep.subr.mxu0 0.0
      %1069 = vmatpush1.xpose.msra.mxu0 0.0
      %1070 = vmatprep.subr.mxu0 0.0
      %1071 = vmatpush1.xpose.msra.mxu0 0.0
      %1072 = vmatprep.subr.mxu0 0.0
      %1073 = vmatpush1.xpose.msra.mxu0 0.0
      %1074 = vmatprep.subr.mxu0 0.0
      %1075 = vmatpush1.xpose.msra.mxu0 0.0
      %1076 = vmatprep.subr.mxu0 0.0
      %1077 = vmatpush1.xpose.msra.mxu0 0.0
      %1078 = vmatprep.subr.mxu0 0.0
      %1079 = vmatpush1.xpose.msra.mxu0 0.0
      %1080 = vmatprep.subr.mxu0 0.0
      %1081 = vmatpush1.xpose.msra.mxu0 0.0
      %1082 = vmatprep.mubr.f32.mxu0 0.0
      %1083 = vmatmul.mubr.f32.gmra.mrb[0].mxu0 %v856
      %v1084 = vpop.f32.mrb[0].mxu0
      %v1085 = vadd.f32 0.0, %v1084
      %v1086 = vpop.f32.mrb[0].mxu0
      %1087 = vmatprep.mubr.f32.mxu0 0.0
      %1088 = vmatmul.mubr.f32.gmra.mrb[0].mxu0 %v862
      %v1089 = vpop.f32.mrb[0].mxu0
      %v1090 = vadd.f32 0.0, %v1089
      %v1091 = vpop.f32.mrb[0].mxu0
      %1092 = vmatprep.mubr.f32.mxu0 0.0
      %1093 = vmatmul.mubr.f32.gmra.mrb[0].mxu0 %v868
      %v1094 = vpop.f32.mrb[0].mxu0
      %v1095 = vadd.f32 0.0, %v1094
      %v1096 = vpop.f32.mrb[0].mxu0
      %1097 = vmatprep.mubr.f32.mxu0 0.0
      %1098 = vmatmul.mubr.f32.gmra.mrb[0].mxu0 %v874
      %v1099 = vpop.f32.mrb[0].mxu0
      %v1100 = vadd.f32 0.0, %v1099
      %v1101 = vpop.f32.mrb[0].mxu0
      %1102 = vmatprep.mubr.f32.mxu0 0.0
      %1103 = vmatmul.mubr.f32.gmra.mrb[0].mxu0 %v880
      %v1104 = vpop.f32.mrb[0].mxu0
      %v1105 = vadd.f32 0.0, %v1104
      %v1106 = vpop.f32.mrb[0].mxu0
      %1107 = vmatprep.mubr.f32.mxu0 0.0
      %1108 = vmatmul.mubr.f32.gmra.mrb[0].mxu0 %v886
      %v1109 = vpop.f32.mrb[0].mxu0
      %v1110 = vadd.f32 0.0, %v1109
      %v1111 = vpop.f32.mrb[0].mxu0
      %1112 = vmatprep.mubr.f32.mxu0 0.0
      %1113 = vmatmul.mubr.f32.gmra.mrb[0].mxu0 %v892
      %v1114 = vpop.f32.mrb[0].mxu0
      %v1115 = vadd.f32 0.0, %v1114
      %v1116 = vpop.f32.mrb[0].mxu0
      %1117 = vmatprep.mubr.f32.mxu0 0.0
      %1118 = vmatmul.mubr.f32.gmra.mrb[0].mxu0 %v898
      %v1119 = vpop.f32.mrb[0].mxu0
      %v1120 = vadd.f32 0.0, %v1119
      %v1121 = vpop.f32.mrb[0].mxu0
      %1122 = vmatprep.mubr.f32.mxu0 0.0
      %1123 = vmatmul.mubr.f32.gmra.mrb[0].mxu0 %v904
      %v1124 = vpop.f32.mrb[0].mxu0
      %v1125 = vadd.f32 0.0, %v1124
      %v1126 = vpop.f32.mrb[0].mxu0
      %1127 = vdwg.mxu0
      %v1128 = vmul.f32 %v1085, 0.16666667
      %v1129 = vmul.f32 %v1090, 0.16666667
      %v1130 = vmul.f32 %v1095, 0.16666667
      %v1131 = vmul.f32 %v1100, 0.16666667
      %v1132 = vmul.f32 %v1105, 0.16666667
      %v1133 = vmul.f32 %v1110, 0.16666667
      %v1134 = vmul.f32 %v1115, 0.16666667
      %v1135 = vmul.f32 %v1120, 0.16666667
      %v1136 = vmul.f32 %v1125, 0.16666667
      %vm1137 = vcmask 531456
      %v1138 = vsel %vm1137, %v1128, -inf
      %1139 = vmax.xlane.f32.xlu0 %v1138
      %v1140 = vpop.xlane.xlu0 %1139
      %v1141 = vsel %vm1137, %v1129, -inf
      %1142 = vmax.xlane.f32.xlu0 %v1141
      %v1143 = vpop.xlane.xlu0 %1142
      %v1144 = vsel %vm1137, %v1130, -inf
      %1145 = vmax.xlane.f32.xlu0 %v1144
      %v1146 = vpop.xlane.xlu0 %1145
      %v1147 = vsel %vm1137, %v1131, -inf
      %1148 = vmax.xlane.f32.xlu0 %v1147
      %v1149 = vpop.xlane.xlu0 %1148
      %v1150 = vsel %vm1137, %v1132, -inf
      %1151 = vmax.xlane.f32.xlu0 %v1150
      %v1152 = vpop.xlane.xlu0 %1151
      %v1153 = vsel %vm1137, %v1133, -inf
      %1154 = vmax.xlane.f32.xlu0 %v1153
      %v1155 = vpop.xlane.xlu0 %1154
      %v1156 = vsel %vm1137, %v1134, -inf
      %1157 = vmax.xlane.f32.xlu0 %v1156
      %v1158 = vpop.xlane.xlu0 %1157
      %v1159 = vsel %vm1137, %v1135, -inf
      %1160 = vmax.xlane.f32.xlu0 %v1159
      %v1161 = vpop.xlane.xlu0 %1160
      %vm1162 = vcmask 524288
      %v1163 = vsel %vm1162, %v1136, -inf
      %1164 = vmax.xlane.f32.xlu0 %v1163
      %v1165 = vpop.xlane.xlu0 %1164
      %v1166 = vsub.f32 %v1128, %v1140
      %v1167 = vsub.f32 %v1129, %v1143
      %v1168 = vsub.f32 %v1130, %v1146
      %v1169 = vsub.f32 %v1131, %v1149
      %v1170 = vsub.f32 %v1132, %v1152
      %v1171 = vsub.f32 %v1133, %v1155
      %v1172 = vsub.f32 %v1134, %v1158
      %v1173 = vsub.f32 %v1135, %v1161
      %v1174 = vsub.f32 %v1136, %v1165
      %v1175 = vmul.f32 %v1166, 1.442695
      %v1176 = vpow.pop %v1175
      %v1177 = vmul.f32 %v1167, 1.442695
      %v1178 = vpow.pop %v1177
      %v1179 = vmul.f32 %v1168, 1.442695
      %v1180 = vpow.pop %v1179
      %v1181 = vmul.f32 %v1169, 1.442695
      %v1182 = vpow.pop %v1181
      %v1183 = vmul.f32 %v1170, 1.442695
      %v1184 = vpow.pop %v1183
      %v1185 = vmul.f32 %v1171, 1.442695
      %v1186 = vpow.pop %v1185
      %v1187 = vmul.f32 %v1172, 1.442695
      %v1188 = vpow.pop %v1187
      %v1189 = vmul.f32 %v1173, 1.442695
      %v1190 = vpow.pop %v1189
      %v1191 = vmul.f32 %v1174, 1.442695
      %v1192 = vpow.pop %v1191
      %v1193 = vsel %vm1137, %v1176, 0.0
      %1194 = vadd.xlane.f32.xlu0 %v1193
      %v1195 = vpop.xlane.xlu0 %1194
      %v1196 = vsel %vm1137, %v1178, 0.0
      %1197 = vadd.xlane.f32.xlu0 %v1196
      %v1198 = vpop.xlane.xlu0 %1197
      %v1199 = vsel %vm1137, %v1180, 0.0
      %1200 = vadd.xlane.f32.xlu0 %v1199
      %v1201 = vpop.xlane.xlu0 %1200
      %v1202 = vsel %vm1137, %v1182, 0.0
      %1203 = vadd.xlane.f32.xlu0 %v1202
      %v1204 = vpop.xlane.xlu0 %1203
      %v1205 = vsel %vm1137, %v1184, 0.0
      %1206 = vadd.xlane.f32.xlu0 %v1205
      %v1207 = vpop.xlane.xlu0 %1206
      %v1208 = vsel %vm1137, %v1186, 0.0
      %1209 = vadd.xlane.f32.xlu0 %v1208
      %v1210 = vpop.xlane.xlu0 %1209
      %v1211 = vsel %vm1137, %v1188, 0.0
      %1212 = vadd.xlane.f32.xlu0 %v1211
      %v1213 = vpop.xlane.xlu0 %1212
      %v1214 = vsel %vm1137, %v1190, 0.0
      %1215 = vadd.xlane.f32.xlu0 %v1214
      %v1216 = vpop.xlane.xlu0 %1215
      %v1217 = vsel %vm1162, %v1192, 0.0
      %1218 = vadd.xlane.f32.xlu0 %v1217
      %v1219 = vpop.xlane.xlu0 %1218
      %v1220 = vrcp.pop %v1195
      %v1221 = vmul.f32 %v1176, %v1220
      %v1222 = vrcp.pop %v1198
      %v1223 = vmul.f32 %v1178, %v1222
      %v1224 = vrcp.pop %v1201
      %v1225 = vmul.f32 %v1180, %v1224
      %v1226 = vrcp.pop %v1204
      %v1227 = vmul.f32 %v1182, %v1226
      %v1228 = vrcp.pop %v1207
      %v1229 = vmul.f32 %v1184, %v1228
      %v1230 = vrcp.pop %v1210
      %v1231 = vmul.f32 %v1186, %v1230
      %v1232 = vrcp.pop %v1213
      %v1233 = vmul.f32 %v1188, %v1232
      %v1234 = vrcp.pop %v1216
      %v1235 = vmul.f32 %v1190, %v1234
      %v1236 = vrcp.pop %v1219
      %v1237 = vmul.f32 %v1192, %v1236
      %1239 = vrot.lane.b32.xlu0 %v1221, 127
      %v1240 = vpop.permute.xlu0 %1239
      %vm1242 = vcmask 516096
      %1243 = vst.msk [vmem:[%s328] sm:$0x1] %vm1242, %v1240
      %1244 = vxpose.xlu0.b32.start [1/16] %v975, 128
      %1245 = vxpose.xlu0.b32.cont [2/16] %v980, 128
      %1246 = vxpose.xlu0.b32.cont [3/16] %v985, 128
      %1247 = vxpose.xlu0.b32.cont [4/16] %v990, 128
      %1248 = vxpose.xlu0.b32.cont [5/16] %v995, 128
      %1249 = vxpose.xlu0.b32.cont [6/16] %v1000, 128
      %1250 = vxpose.xlu0.b32.cont [7/16] %v1005, 128
      %1251 = vxpose.xlu0.b32.cont [8/16] %v1010, 128
      %1252 = vxpose.xlu0.b32.cont [9/16] %v1015, 128
      %1253 = vxpose.xlu0.b32.cont [10/16] 0.0, 128
      %1254 = vxpose.xlu0.b32.cont [11/16] 0.0, 128
      %1255 = vxpose.xlu0.b32.cont [12/16] 0.0, 128
      %1256 = vxpose.xlu0.b32.cont [13/16] 0.0, 128
      %1257 = vxpose.xlu0.b32.cont [14/16] 0.0, 128
      %1258 = vxpose.xlu0.b32.cont [15/16] 0.0, 128
      %1259 = vxpose.xlu0.b32.end [16/16] 0.0, 128
      %v1260 = vpop.trf.xlu0
      %v1261 = vpop.trf.xlu0
      %v1262 = vpop.trf.xlu0
      %v1263 = vpop.trf.xlu0
      %v1264 = vpop.trf.xlu0
      %v1265 = vpop.trf.xlu0
      %v1266 = vpop.trf.xlu0
      %v1267 = vpop.trf.xlu0
      %v1268 = vpop.trf.xlu0
      %v1269 = vpop.trf.xlu0
      %v1270 = vpop.trf.xlu0
      %v1271 = vpop.trf.xlu0
      %v1272 = vpop.trf.xlu0
      %v1273 = vpop.trf.xlu0
      %v1274 = vpop.trf.xlu0
      %v1275 = vpop.trf.xlu0
      %v1277 = vsel %vm1137, %v1260, 0
      %v1280 = vsel %vm1137, %v1261, 0
      %v1283 = vsel %vm1137, %v1262, 0
      %v1286 = vsel %vm1137, %v1263, 0
      %v1289 = vsel %vm1137, %v1264, 0
      %v1292 = vsel %vm1137, %v1265, 0
      %v1295 = vsel %vm1137, %v1266, 0
      %v1298 = vsel %vm1137, %v1267, 0
      %v1301 = vsel %vm1137, %v1268, 0
      %v1304 = vsel %vm1137, %v1269, 0
      %v1307 = vsel %vm1137, %v1270, 0
      %v1310 = vsel %vm1137, %v1271, 0
      %v1313 = vsel %vm1137, %v1272, 0
      %v1316 = vsel %vm1137, %v1273, 0
      %v1319 = vsel %vm1137, %v1274, 0
      %v1322 = vsel %vm1137, %v1275, 0
      %v1324 = vsel %vm1137, %v1221, 0
      %v1327 = vsel %vm1137, %v1223, 0
      %v1330 = vsel %vm1137, %v1225, 0
      %v1333 = vsel %vm1137, %v1227, 0
      %v1336 = vsel %vm1137, %v1229, 0
      %v1339 = vsel %vm1137, %v1231, 0
      %v1342 = vsel %vm1137, %v1233, 0
      %v1345 = vsel %vm1137, %v1235, 0
      %v1348 = vsel %vm1137, %v1237, 0
      %1350 = vmatprep.subr.mxu0 0.0
      %1351 = vmatpush1.xpose.msra.mxu0 %v1324
      %1352 = vmatprep.subr.mxu0 0.0
      %1353 = vmatpush1.xpose.msra.mxu0 %v1327
      %1354 = vmatprep.subr.mxu0 0.0
      %1355 = vmatpush1.xpose.msra.mxu0 %v1330
      %1356 = vmatprep.subr.mxu0 0.0
      %1357 = vmatpush1.xpose.msra.mxu0 %v1333
      %1358 = vmatprep.subr.mxu0 0.0
      %1359 = vmatpush1.xpose.msra.mxu0 %v1336
      %1360 = vmatprep.subr.mxu0 0.0
      %1361 = vmatpush1.xpose.msra.mxu0 %v1339
      %1362 = vmatprep.subr.mxu0 0.0
      %1363 = vmatpush1.xpose.msra.mxu0 %v1342
      %1364 = vmatprep.subr.mxu0 0.0
      %1365 = vmatpush1.xpose.msra.mxu0 %v1345
      %1366 = vmatprep.subr.mxu0 0.0
      %1367 = vmatpush1.xpose.msra.mxu0 %v1348
      %1368 = vmatprep.subr.mxu0 0.0
      %1369 = vmatpush1.xpose.msra.mxu0 0.0
      %1370 = vmatprep.subr.mxu0 0.0
      %1371 = vmatpush1.xpose.msra.mxu0 0.0
      %1372 = vmatprep.subr.mxu0 0.0
      %1373 = vmatpush1.xpose.msra.mxu0 0.0
      %1374 = vmatprep.subr.mxu0 0.0
      %1375 = vmatpush1.xpose.msra.mxu0 0.0
      %1376 = vmatprep.subr.mxu0 0.0
      %1377 = vmatpush1.xpose.msra.mxu0 0.0
      %1378 = vmatprep.subr.mxu0 0.0
      %1379 = vmatpush1.xpose.msra.mxu0 0.0
      %1380 = vmatprep.subr.mxu0 0.0
      %1381 = vmatpush1.xpose.msra.mxu0 0.0
      %1382 = vmatprep.subr.mxu0 0.0
      %1383 = vmatpush1.xpose.msra.mxu0 0.0
      %1384 = vmatprep.subr.mxu0 0.0
      %1385 = vmatpush1.xpose.msra.mxu0 0.0
      %1386 = vmatprep.subr.mxu0 0.0
      %1387 = vmatpush1.xpose.msra.mxu0 0.0
      %1388 = vmatprep.subr.mxu0 0.0
      %1389 = vmatpush1.xpose.msra.mxu0 0.0
      %1390 = vmatprep.subr.mxu0 0.0
      %1391 = vmatpush1.xpose.msra.mxu0 0.0
      %1392 = vmatprep.subr.mxu0 0.0
      %1393 = vmatpush1.xpose.msra.mxu0 0.0
      %1394 = vmatprep.subr.mxu0 0.0
      %1395 = vmatpush1.xpose.msra.mxu0 0.0
      %1396 = vmatprep.subr.mxu0 0.0
      %1397 = vmatpush1.xpose.msra.mxu0 0.0
      %1398 = vmatprep.subr.mxu0 0.0
      %1399 = vmatpush1.xpose.msra.mxu0 0.0
      %1400 = vmatprep.subr.mxu0 0.0
      %1401 = vmatpush1.xpose.msra.mxu0 0.0
      %1402 = vmatprep.subr.mxu0 0.0
      %1403 = vmatpush1.xpose.msra.mxu0 0.0
      %1404 = vmatprep.subr.mxu0 0.0
      %1405 = vmatpush1.xpose.msra.mxu0 0.0
      %1406 = vmatprep.subr.mxu0 0.0
      %1407 = vmatpush1.xpose.msra.mxu0 0.0
      %1408 = vmatprep.subr.mxu0 0.0
      %1409 = vmatpush1.xpose.msra.mxu0 0.0
      %1410 = vmatprep.subr.mxu0 0.0
      %1411 = vmatpush1.xpose.msra.mxu0 0.0
      %1412 = vmatprep.subr.mxu0 0.0
      %1413 = vmatpush1.xpose.msra.mxu0 0.0
      %1414 = vmatprep.mubr.f32.mxu0 0.0
      %1415 = vmatmul.mubr.f32.gmra.mrb[0].mxu0 %v1277
      %v1416 = vpop.f32.mrb[0].mxu0
      %v1417 = vadd.f32 0.0, %v1416
      %v1418 = vpop.f32.mrb[0].mxu0
      %1419 = vmatprep.mubr.f32.mxu0 0.0
      %1420 = vmatmul.mubr.f32.gmra.mrb[0].mxu0 %v1280
      %v1421 = vpop.f32.mrb[0].mxu0
      %v1422 = vadd.f32 0.0, %v1421
      %v1423 = vpop.f32.mrb[0].mxu0
      %1424 = vmatprep.mubr.f32.mxu0 0.0
      %1425 = vmatmul.mubr.f32.gmra.mrb[0].mxu0 %v1283
      %v1426 = vpop.f32.mrb[0].mxu0
      %v1427 = vadd.f32 0.0, %v1426
      %v1428 = vpop.f32.mrb[0].mxu0
      %1429 = vmatprep.mubr.f32.mxu0 0.0
      %1430 = vmatmul.mubr.f32.gmra.mrb[0].mxu0 %v1286
      %v1431 = vpop.f32.mrb[0].mxu0
      %v1432 = vadd.f32 0.0, %v1431
      %v1433 = vpop.f32.mrb[0].mxu0
      %1434 = vmatprep.mubr.f32.mxu0 0.0
      %1435 = vmatmul.mubr.f32.gmra.mrb[0].mxu0 %v1289
      %v1436 = vpop.f32.mrb[0].mxu0
      %v1437 = vadd.f32 0.0, %v1436
      %v1438 = vpop.f32.mrb[0].mxu0
      %1439 = vmatprep.mubr.f32.mxu0 0.0
      %1440 = vmatmul.mubr.f32.gmra.mrb[0].mxu0 %v1292
      %v1441 = vpop.f32.mrb[0].mxu0
      %v1442 = vpop.f32.mrb[0].mxu0
      %1443 = vmatprep.mubr.f32.mxu0 0.0
      %1444 = vmatmul.mubr.f32.gmra.mrb[0].mxu0 %v1295
      %v1445 = vpop.f32.mrb[0].mxu0
      %v1446 = vpop.f32.mrb[0].mxu0
      %1447 = vmatprep.mubr.f32.mxu0 0.0
      %1448 = vmatmul.mubr.f32.gmra.mrb[0].mxu0 %v1298
      %v1449 = vpop.f32.mrb[0].mxu0
      %v1450 = vpop.f32.mrb[0].mxu0
      %1451 = vmatprep.mubr.f32.mxu0 0.0
      %1452 = vmatmul.mubr.f32.gmra.mrb[0].mxu0 %v1301
      %v1453 = vpop.f32.mrb[0].mxu0
      %v1454 = vpop.f32.mrb[0].mxu0
      %1455 = vmatprep.mubr.f32.mxu0 0.0
      %1456 = vmatmul.mubr.f32.gmra.mrb[0].mxu0 %v1304
      %v1457 = vpop.f32.mrb[0].mxu0
      %v1458 = vpop.f32.mrb[0].mxu0
      %1459 = vmatprep.mubr.f32.mxu0 0.0
      %1460 = vmatmul.mubr.f32.gmra.mrb[0].mxu0 %v1307
      %v1461 = vpop.f32.mrb[0].mxu0
      %v1462 = vpop.f32.mrb[0].mxu0
      %1463 = vmatprep.mubr.f32.mxu0 0.0
      %1464 = vmatmul.mubr.f32.gmra.mrb[0].mxu0 %v1310
      %v1465 = vpop.f32.mrb[0].mxu0
      %v1466 = vpop.f32.mrb[0].mxu0
      %1467 = vmatprep.mubr.f32.mxu0 0.0
      %1468 = vmatmul.mubr.f32.gmra.mrb[0].mxu0 %v1313
      %v1469 = vpop.f32.mrb[0].mxu0
      %v1470 = vpop.f32.mrb[0].mxu0
      %1471 = vmatprep.mubr.f32.mxu0 0.0
      %1472 = vmatmul.mubr.f32.gmra.mrb[0].mxu0 %v1316
      %v1473 = vpop.f32.mrb[0].mxu0
      %v1474 = vpop.f32.mrb[0].mxu0
      %1475 = vmatprep.mubr.f32.mxu0 0.0
      %1476 = vmatmul.mubr.f32.gmra.mrb[0].mxu0 %v1319
      %v1477 = vpop.f32.mrb[0].mxu0
      %v1478 = vpop.f32.mrb[0].mxu0
      %1479 = vmatprep.mubr.f32.mxu0 0.0
      %1480 = vmatmul.mubr.f32.gmra.mrb[0].mxu0 %v1322
      %v1481 = vpop.f32.mrb[0].mxu0
      %v1482 = vpop.f32.mrb[0].mxu0
      %1483 = vdwg.mxu0
      %1484 = vst.msk [vmem:[%s325] sm:$0xff] %vm1137, %v1417
      %1485 = vst.msk [vmem:[%s325 + $0x8] sm:$0xff] %vm1137, %v1422
      %1486 = vst.msk [vmem:[%s325 + $0x10] sm:$0xff] %vm1137, %v1427
      %1487 = vst.msk [vmem:[%s325 + $0x18] sm:$0xff] %vm1137, %v1432
      %vm1488 = vcmask 527360
      %1489 = vst.msk [vmem:[%s325 + $0x20] sm:$0xf] %vm1488, %v1437
      %p1490 = scmp.lt.s32.totalorder %s20, 1
      %s1491 = scalar_select %p1490, %s20, 1
      %s1492 = smul.addr %s1491, 5
      %s1493 = smul.addr %s1492, 8
      %s1494 = scalar_lea.vmem %s7, %s1493
      %p1495 = scmp.lt.s32.totalorder %s20, 1
      %s1496 = scalar_select %p1495, %s20, 1
      %s1497 = scalar_lea.vmem %s8, %s1496
      // Predicated region
      $region49: #{vit_forward.2} parent=47 // pred_check
        %p1498 = pneg %p195
      $region50: #{vit_forward.2} parent=47 // pred_check_branch
        %1500 = sbr.rel (%p1498) target = $region52
      $region51: #{vit_forward.2} parent=47 // pred_region
        _
      $region52: #{vit_forward.2} parent=47 // pred_fallthru
        _
      // Predicated region
      $region53: #{vit_forward.2} parent=47 // pred_check
        %p1501 = pneg %p221
      $region54: #{vit_forward.2} parent=47 // pred_check_branch
        %1503 = sbr.rel (%p1501) target = $region56
      $region55: #{vit_forward.2} parent=47 // pred_region
        _
      $region56: #{vit_forward.2} parent=47 // pred_fallthru
        _
    $region48: #{vit_forward.2} parent=5 // pred_fallthru
      _
    %p1504 = scmp.le.s32.totalorder 2, %s15
    // Predicated region
    $region57: #{vit_forward.2} parent=5 // pred_check
      %p1505 = pneg %p1504
    $region58: #{vit_forward.2} parent=5 // pred_check_branch
      %1507 = sbr.rel (%p1505) target = $region60
    $region59: #{vit_forward.2} parent=5 // pred_region
      %s1508 = ssub.s32 %s15, 2
      // Predicated region
      $region61: #{vit_forward.2} parent=59 // pred_check
        %p1509 = pneg %p201
      $region62: #{vit_forward.2} parent=59 // pred_check_branch
        %1511 = sbr.rel (%p1509) target = $region64
      $region63: #{vit_forward.2} parent=59 // pred_region
        %p1512 = scmp.lt.s32.totalorder %s21, 1
        %s1513 = scalar_select %p1512, %s21, 1
        %s1514 = smul.addr %s1513, 5
        %s1515 = smul.addr %s1514, 8
        %s1516 = scalar_lea.vmem %s7, %s1515
      $region64: #{vit_forward.2} parent=59 // pred_fallthru
        _
      // Predicated region
      $region65: #{vit_forward.2} parent=59 // pred_check
        %p1517 = pneg %p227
      $region66: #{vit_forward.2} parent=59 // pred_check_branch
        %1519 = sbr.rel (%p1517) target = $region68
      $region67: #{vit_forward.2} parent=59 // pred_region
        %p1520 = scmp.lt.s32.totalorder %s21, 1
        %s1521 = scalar_select %p1520, %s21, 1
        %s1522 = scalar_lea.vmem %s8, %s1521
      $region68: #{vit_forward.2} parent=59 // pred_fallthru
        _
    $region60: #{vit_forward.2} parent=5 // pred_fallthru
      _
  $region6: #{vit_forward.2} parent=0 // loop_footer
    %s19 = sadd.s32 1, %s15
  $region7: #{vit_forward.2} parent=0 // loop_footer_branch
    %14 = sbr.rel target = $region3
  $region8: #{vit_forward.2} parent=0 // loop_exit
    _

// kernel: vit_forward.3
$region0: #{vit_forward.3}
  #allocation0 [shape = 'u32[]', space=smem, size = 0x4, offset = 0x4, fixed_abs, tag = 'smem constant byte address 0x4 - core index']
  #allocation1 [shape = 'u32[144,128]{1,0:T(1,128)}', space=vmem, size = 0x12000, scoped, tag = 'internal scratch']
  %s0 = inlined_call_operand.vmem [shape: f32[2,65,36], index: 0, kind: input, shape index: {}]
  %s1 = inlined_call_operand.vmem [shape: f32[36,36], index: 1, kind: input, shape index: {}]
  %s2 = inlined_call_operand.vmem [shape: f32[1,36], index: 2, kind: input, shape index: {}]
  %s3 = inlined_call_operand.vmem [shape: f32[1,36], index: 3, kind: input, shape index: {}]
  %s4 = inlined_call_operand.vmem [shape: f32[1,36], index: 4, kind: input, shape index: {}]
  %s5 = inlined_call_operand.vmem [shape: f32[36,144], index: 5, kind: input, shape index: {}]
  %s6 = inlined_call_operand.vmem [shape: f32[1,144], index: 6, kind: input, shape index: {}]
  %s7 = inlined_call_operand.vmem [shape: f32[144,36], index: 7, kind: input, shape index: {}]
  %s8 = inlined_call_operand.vmem [shape: f32[1,36], index: 8, kind: input, shape index: {}]
  %s9 = inlined_call_operand.vmem [shape: f32[1,36], index: 9, kind: input, shape index: {}]
  %s10 = inlined_call_operand.vmem [shape: f32[1,36], index: 10, kind: input, shape index: {}]
  %s11 = inlined_call_operand.vmem [shape: f32[36,256], index: 11, kind: input, shape index: {}]
  %s12 = inlined_call_operand.vmem [shape: f32[1,36], index: 12, kind: input, shape index: {}]
  %s13 = inlined_call_operand.vmem [shape: f32[1,36], index: 13, kind: input, shape index: {}]
  %s14 = inlined_call_operand.vmem [shape: f32[1,36], index: 14, kind: input, shape index: {}]
  %s15 = inlined_call_operand.vmem [shape: f32[36,16], index: 15, kind: input, shape index: {}]
  %s16 = inlined_call_operand.vmem [shape: f32[1,16], index: 16, kind: input, shape index: {}]
  %s17 = inlined_call_operand.vmem [shape: f32[2,1,64], index: 17, kind: output, shape index: {0}]
  %s18 = inlined_call_operand.hbm [shape: f32[2,1,16], index: 18, kind: output, shape index: {1}]
  %19 = xla_tuple %s17, %s18
  %s20 = sld [smem:[#allocation0]]
  $region109: #{vit_forward.3} parent=0
    _
  %s22 = ssub.s32 1, %s20
  %s23 = scalar_select 0, %s22, %s20
  $region1: #{vit_forward.3} parent=0
    #allocation2 [shape = 'u8[1024]{0}', space=vmem, size = 0x400, scoped, tag = 'output window, operand 1']
    #allocation3 [shape = 's32[2]{0}', space=sflag, size = 0x8, scoped, tag = 'scoped memory for vit_forward.3']
    %24 = vsyncpa [#allocation3], 0
    %s25 = scalar_lea.sflag [#allocation3], 1
    %26 = vsyncpa %s25, 0
    loop: start=0, step=1, limit=4
    $region2: #{vit_forward.3} parent=1 // loop_pre_header
      _
    $region3: #{vit_forward.3} parent=1 // loop_header
      %s28 = sphi 0, %s32
      %p29 = scmp.ge.s32.totalorder %s28, 4
      %s38 = sphi 0, %s40
      %s41 = sphi 0, %s38
      %s42 = sphi 0, %s41
      %s58 = sphi 0, %s42
      %s62 = sphi 0, %s62
      %s64 = sphi 0, %s62
      %s65 = sphi 0, %s64
      %s79 = sphi 0, %s65
      %s83 = sphi 0, %s83
      %s85 = sphi 0, %s83
      %s86 = sphi 0, %s85
      %s100 = sphi 0, %s86
      %s104 = sphi 0, %s104
      %s106 = sphi 0, %s104
      %s107 = sphi 0, %s106
      %s121 = sphi 0, %s107
      %s125 = sphi 0, %s125
      %s127 = sphi 0, %s125
      %s128 = sphi 0, %s127
      %s142 = sphi 0, %s128
      %s146 = sphi 0, %s146
      %s148 = sphi 0, %s146
      %s149 = sphi 0, %s148
      %s163 = sphi 0, %s149
      %s167 = sphi 0, %s167
      %s169 = sphi 0, %s167
      %s170 = sphi 0, %s169
      %s184 = sphi 0, %s170
      %s188 = sphi 0, %s188
      %s190 = sphi 0, %s188
      %s191 = sphi 0, %s190
      %s205 = sphi 0, %s191
      %s209 = sphi 0, %s209
      %s211 = sphi 0, %s209
      %s212 = sphi 0, %s211
      %s226 = sphi 0, %s212
      %s230 = sphi 0, %s230
      %s232 = sphi 0, %s230
      %s233 = sphi 0, %s232
      %s247 = sphi 0, %s233
      %s251 = sphi 0, %s251
      %s253 = sphi 0, %s251
      %s254 = sphi 0, %s253
      %s268 = sphi 0, %s254
      %s272 = sphi 0, %s272
      %s274 = sphi 0, %s272
      %s275 = sphi 0, %s274
      %s289 = sphi 0, %s275
      %s293 = sphi 0, %s293
      %s295 = sphi 0, %s293
      %s296 = sphi 0, %s295
      %s310 = sphi 0, %s296
      %s314 = sphi 0, %s314
      %s316 = sphi 0, %s314
      %s317 = sphi 0, %s316
      %s331 = sphi 0, %s317
      %s335 = sphi 0, %s335
      %s337 = sphi 0, %s335
      %s338 = sphi 0, %s337
      %s352 = sphi 0, %s338
      %s356 = sphi 0, %s356
      %s358 = sphi 0, %s356
      %s359 = sphi 0, %s358
      %s373 = sphi 0, %s359
      %s377 = sphi 0, %s377
      %s379 = sphi 0, %s377
      %s380 = sphi 0, %s379
      %s394 = sphi 0, %s380
      %s400 = sphi 0, %s402
      %s403 = sphi 0, %s400
      %s404 = sphi 0, %s403
      %s420 = sphi 0, %s404
      %s426 = sphi 0, %s428
      %s429 = sphi 0, %s426
      %s430 = sphi 0, %s429
      %s446 = sphi 0, %s430
    $region4: #{vit_forward.3} parent=1 // loop_header_branch
      %31 = sbr.rel (%p29) target = $region8
    $region5: #{vit_forward.3} parent=1 // loop_body
      %s33 = ssub.s32 %s28, 1
      %s34 = ssub.s32 %s28, 2
      %s35 = sadd.s32 %s28, 1
      %s36 = ssub.s32 %s28, %s35
      %p37 = scmp.eq.s32.totalorder %s36, 0
      %s39 = sadd.s32 %s38, 1
      %s40 = scalar_select %p37, %s38, %s39
      %p43 = pneg %p37
      %p44 = scmp.eq.s32.totalorder %s28, 1
      %p45 = por %p43, %p44
      %p46 = scmp.ne.s32.totalorder %s38, %s41
      %p47 = scmp.eq.s32.totalorder %s28, 0
      %p48 = por %p46, %p47
      %p49 = scmp.ne.s32.totalorder %s38, %s41
      %p50 = scmp.eq.s32.totalorder %s33, 1
      %p51 = por %p49, %p50
      %p52 = scmp.ne.s32.totalorder %s41, %s42
      %p53 = scmp.eq.s32.totalorder %s33, 0
      %p54 = por %p52, %p53
      %p55 = scmp.ne.s32.totalorder %s41, %s42
      %p56 = scmp.eq.s32.totalorder %s34, 1
      %p57 = por %p55, %p56
      %p59 = scmp.ne.s32.totalorder %s42, %s58
      %p60 = scmp.eq.s32.totalorder %s34, 0
      %p61 = por %p59, %p60
      %s63 = sadd.s32 %s62, 1
      %p66 = scmp.eq.s32.totalorder %s28, 1
      %p67 = scmp.ne.s32.totalorder %s62, %s64
      %p68 = scmp.eq.s32.totalorder %s28, 0
      %p69 = por %p67, %p68
      %p70 = scmp.ne.s32.totalorder %s62, %s64
      %p71 = scmp.eq.s32.totalorder %s33, 1
      %p72 = por %p70, %p71
      %p73 = scmp.ne.s32.totalorder %s64, %s65
      %p74 = scmp.eq.s32.totalorder %s33, 0
      %p75 = por %p73, %p74
      %p76 = scmp.ne.s32.totalorder %s64, %s65
      %p77 = scmp.eq.s32.totalorder %s34, 1
      %p78 = por %p76, %p77
      %p80 = scmp.ne.s32.totalorder %s65, %s79
      %p81 = scmp.eq.s32.totalorder %s34, 0
      %p82 = por %p80, %p81
      %s84 = sadd.s32 %s83, 1
      %p87 = scmp.eq.s32.totalorder %s28, 1
      %p88 = scmp.ne.s32.totalorder %s83, %s85
      %p89 = scmp.eq.s32.totalorder %s28, 0
      %p90 = por %p88, %p89
      %p91 = scmp.ne.s32.totalorder %s83, %s85
      %p92 = scmp.eq.s32.totalorder %s33, 1
      %p93 = por %p91, %p92
      %p94 = scmp.ne.s32.totalorder %s85, %s86
      %p95 = scmp.eq.s32.totalorder %s33, 0
      %p96 = por %p94, %p95
      %p97 = scmp.ne.s32.totalorder %s85, %s86
      %p98 = scmp.eq.s32.totalorder %s34, 1
      %p99 = por %p97, %p98
      %p101 = scmp.ne.s32.totalorder %s86, %s100
      %p102 = scmp.eq.s32.totalorder %s34, 0
      %p103 = por %p101, %p102
      %s105 = sadd.s32 %s104, 1
      %p108 = scmp.eq.s32.totalorder %s28, 1
      %p109 = scmp.ne.s32.totalorder %s104, %s106
      %p110 = scmp.eq.s32.totalorder %s28, 0
      %p111 = por %p109, %p110
      %p112 = scmp.ne.s32.totalorder %s104, %s106
      %p113 = scmp.eq.s32.totalorder %s33, 1
      %p114 = por %p112, %p113
      %p115 = scmp.ne.s32.totalorder %s106, %s107
      %p116 = scmp.eq.s32.totalorder %s33, 0
      %p117 = por %p115, %p116
      %p118 = scmp.ne.s32.totalorder %s106, %s107
      %p119 = scmp.eq.s32.totalorder %s34, 1
      %p120 = por %p118, %p119
      %p122 = scmp.ne.s32.totalorder %s107, %s121
      %p123 = scmp.eq.s32.totalorder %s34, 0
      %p124 = por %p122, %p123
      %s126 = sadd.s32 %s125, 1
      %p129 = scmp.eq.s32.totalorder %s28, 1
      %p130 = scmp.ne.s32.totalorder %s125, %s127
      %p131 = scmp.eq.s32.totalorder %s28, 0
      %p132 = por %p130, %p131
      %p133 = scmp.ne.s32.totalorder %s125, %s127
      %p134 = scmp.eq.s32.totalorder %s33, 1
      %p135 = por %p133, %p134
      %p136 = scmp.ne.s32.totalorder %s127, %s128
      %p137 = scmp.eq.s32.totalorder %s33, 0
      %p138 = por %p136, %p137
      %p139 = scmp.ne.s32.totalorder %s127, %s128
      %p140 = scmp.eq.s32.totalorder %s34, 1
      %p141 = por %p139, %p140
      %p143 = scmp.ne.s32.totalorder %s128, %s142
      %p144 = scmp.eq.s32.totalorder %s34, 0
      %p145 = por %p143, %p144
      %s147 = sadd.s32 %s146, 1
      %p150 = scmp.eq.s32.totalorder %s28, 1
      %p151 = scmp.ne.s32.totalorder %s146, %s148
      %p152 = scmp.eq.s32.totalorder %s28, 0
      %p153 = por %p151, %p152
      %p154 = scmp.ne.s32.totalorder %s146, %s148
      %p155 = scmp.eq.s32.totalorder %s33, 1
      %p156 = por %p154, %p155
      %p157 = scmp.ne.s32.totalorder %s148, %s149
      %p158 = scmp.eq.s32.totalorder %s33, 0
      %p159 = por %p157, %p158
      %p160 = scmp.ne.s32.totalorder %s148, %s149
      %p161 = scmp.eq.s32.totalorder %s34, 1
      %p162 = por %p160, %p161
      %p164 = scmp.ne.s32.totalorder %s149, %s163
      %p165 = scmp.eq.s32.totalorder %s34, 0
      %p166 = por %p164, %p165
      %s168 = sadd.s32 %s167, 1
      %p171 = scmp.eq.s32.totalorder %s28, 1
      %p172 = scmp.ne.s32.totalorder %s167, %s169
      %p173 = scmp.eq.s32.totalorder %s28, 0
      %p174 = por %p172, %p173
      %p175 = scmp.ne.s32.totalorder %s167, %s169
      %p176 = scmp.eq.s32.totalorder %s33, 1
      %p177 = por %p175, %p176
      %p178 = scmp.ne.s32.totalorder %s169, %s170
      %p179 = scmp.eq.s32.totalorder %s33, 0
      %p180 = por %p178, %p179
      %p181 = scmp.ne.s32.totalorder %s169, %s170
      %p182 = scmp.eq.s32.totalorder %s34, 1
      %p183 = por %p181, %p182
      %p185 = scmp.ne.s32.totalorder %s170, %s184
      %p186 = scmp.eq.s32.totalorder %s34, 0
      %p187 = por %p185, %p186
      %s189 = sadd.s32 %s188, 1
      %p192 = scmp.eq.s32.totalorder %s28, 1
      %p193 = scmp.ne.s32.totalorder %s188, %s190
      %p194 = scmp.eq.s32.totalorder %s28, 0
      %p195 = por %p193, %p194
      %p196 = scmp.ne.s32.totalorder %s188, %s190
      %p197 = scmp.eq.s32.totalorder %s33, 1
      %p198 = por %p196, %p197
      %p199 = scmp.ne.s32.totalorder %s190, %s191
      %p200 = scmp.eq.s32.totalorder %s33, 0
      %p201 = por %p199, %p200
      %p202 = scmp.ne.s32.totalorder %s190, %s191
      %p203 = scmp.eq.s32.totalorder %s34, 1
      %p204 = por %p202, %p203
      %p206 = scmp.ne.s32.totalorder %s191, %s205
      %p207 = scmp.eq.s32.totalorder %s34, 0
      %p208 = por %p206, %p207
      %s210 = sadd.s32 %s209, 1
      %p213 = scmp.eq.s32.totalorder %s28, 1
      %p214 = scmp.ne.s32.totalorder %s209, %s211
      %p215 = scmp.eq.s32.totalorder %s28, 0
      %p216 = por %p214, %p215
      %p217 = scmp.ne.s32.totalorder %s209, %s211
      %p218 = scmp.eq.s32.totalorder %s33, 1
      %p219 = por %p217, %p218
      %p220 = scmp.ne.s32.totalorder %s211, %s212
      %p221 = scmp.eq.s32.totalorder %s33, 0
      %p222 = por %p220, %p221
      %p223 = scmp.ne.s32.totalorder %s211, %s212
      %p224 = scmp.eq.s32.totalorder %s34, 1
      %p225 = por %p223, %p224
      %p227 = scmp.ne.s32.totalorder %s212, %s226
      %p228 = scmp.eq.s32.totalorder %s34, 0
      %p229 = por %p227, %p228
      %s231 = sadd.s32 %s230, 1
      %p234 = scmp.eq.s32.totalorder %s28, 1
      %p235 = scmp.ne.s32.totalorder %s230, %s232
      %p236 = scmp.eq.s32.totalorder %s28, 0
      %p237 = por %p235, %p236
      %p238 = scmp.ne.s32.totalorder %s230, %s232
      %p239 = scmp.eq.s32.totalorder %s33, 1
      %p240 = por %p238, %p239
      %p241 = scmp.ne.s32.totalorder %s232, %s233
      %p242 = scmp.eq.s32.totalorder %s33, 0
      %p243 = por %p241, %p242
      %p244 = scmp.ne.s32.totalorder %s232, %s233
      %p245 = scmp.eq.s32.totalorder %s34, 1
      %p246 = por %p244, %p245
      %p248 = scmp.ne.s32.totalorder %s233, %s247
      %p249 = scmp.eq.s32.totalorder %s34, 0
      %p250 = por %p248, %p249
      %s252 = sadd.s32 %s251, 1
      %p255 = scmp.eq.s32.totalorder %s28, 1
      %p256 = scmp.ne.s32.totalorder %s251, %s253
      %p257 = scmp.eq.s32.totalorder %s28, 0
      %p258 = por %p256, %p257
      %p259 = scmp.ne.s32.totalorder %s251, %s253
      %p260 = scmp.eq.s32.totalorder %s33, 1
      %p261 = por %p259, %p260
      %p262 = scmp.ne.s32.totalorder %s253, %s254
      %p263 = scmp.eq.s32.totalorder %s33, 0
      %p264 = por %p262, %p263
      %p265 = scmp.ne.s32.totalorder %s253, %s254
      %p266 = scmp.eq.s32.totalorder %s34, 1
      %p267 = por %p265, %p266
      %p269 = scmp.ne.s32.totalorder %s254, %s268
      %p270 = scmp.eq.s32.totalorder %s34, 0
      %p271 = por %p269, %p270
      %s273 = sadd.s32 %s272, 1
      %p276 = scmp.eq.s32.totalorder %s28, 1
      %p277 = scmp.ne.s32.totalorder %s272, %s274
      %p278 = scmp.eq.s32.totalorder %s28, 0
      %p279 = por %p277, %p278
      %p280 = scmp.ne.s32.totalorder %s272, %s274
      %p281 = scmp.eq.s32.totalorder %s33, 1
      %p282 = por %p280, %p281
      %p283 = scmp.ne.s32.totalorder %s274, %s275
      %p284 = scmp.eq.s32.totalorder %s33, 0
      %p285 = por %p283, %p284
      %p286 = scmp.ne.s32.totalorder %s274, %s275
      %p287 = scmp.eq.s32.totalorder %s34, 1
      %p288 = por %p286, %p287
      %p290 = scmp.ne.s32.totalorder %s275, %s289
      %p291 = scmp.eq.s32.totalorder %s34, 0
      %p292 = por %p290, %p291
      %s294 = sadd.s32 %s293, 1
      %p297 = scmp.eq.s32.totalorder %s28, 1
      %p298 = scmp.ne.s32.totalorder %s293, %s295
      %p299 = scmp.eq.s32.totalorder %s28, 0
      %p300 = por %p298, %p299
      %p301 = scmp.ne.s32.totalorder %s293, %s295
      %p302 = scmp.eq.s32.totalorder %s33, 1
      %p303 = por %p301, %p302
      %p304 = scmp.ne.s32.totalorder %s295, %s296
      %p305 = scmp.eq.s32.totalorder %s33, 0
      %p306 = por %p304, %p305
      %p307 = scmp.ne.s32.totalorder %s295, %s296
      %p308 = scmp.eq.s32.totalorder %s34, 1
      %p309 = por %p307, %p308
      %p311 = scmp.ne.s32.totalorder %s296, %s310
      %p312 = scmp.eq.s32.totalorder %s34, 0
      %p313 = por %p311, %p312
      %s315 = sadd.s32 %s314, 1
      %p318 = scmp.eq.s32.totalorder %s28, 1
      %p319 = scmp.ne.s32.totalorder %s314, %s316
      %p320 = scmp.eq.s32.totalorder %s28, 0
      %p321 = por %p319, %p320
      %p322 = scmp.ne.s32.totalorder %s314, %s316
      %p323 = scmp.eq.s32.totalorder %s33, 1
      %p324 = por %p322, %p323
      %p325 = scmp.ne.s32.totalorder %s316, %s317
      %p326 = scmp.eq.s32.totalorder %s33, 0
      %p327 = por %p325, %p326
      %p328 = scmp.ne.s32.totalorder %s316, %s317
      %p329 = scmp.eq.s32.totalorder %s34, 1
      %p330 = por %p328, %p329
      %p332 = scmp.ne.s32.totalorder %s317, %s331
      %p333 = scmp.eq.s32.totalorder %s34, 0
      %p334 = por %p332, %p333
      %s336 = sadd.s32 %s335, 1
      %p339 = scmp.eq.s32.totalorder %s28, 1
      %p340 = scmp.ne.s32.totalorder %s335, %s337
      %p341 = scmp.eq.s32.totalorder %s28, 0
      %p342 = por %p340, %p341
      %p343 = scmp.ne.s32.totalorder %s335, %s337
      %p344 = scmp.eq.s32.totalorder %s33, 1
      %p345 = por %p343, %p344
      %p346 = scmp.ne.s32.totalorder %s337, %s338
      %p347 = scmp.eq.s32.totalorder %s33, 0
      %p348 = por %p346, %p347
      %p349 = scmp.ne.s32.totalorder %s337, %s338
      %p350 = scmp.eq.s32.totalorder %s34, 1
      %p351 = por %p349, %p350
      %p353 = scmp.ne.s32.totalorder %s338, %s352
      %p354 = scmp.eq.s32.totalorder %s34, 0
      %p355 = por %p353, %p354
      %s357 = sadd.s32 %s356, 1
      %p360 = scmp.eq.s32.totalorder %s28, 1
      %p361 = scmp.ne.s32.totalorder %s356, %s358
      %p362 = scmp.eq.s32.totalorder %s28, 0
      %p363 = por %p361, %p362
      %p364 = scmp.ne.s32.totalorder %s356, %s358
      %p365 = scmp.eq.s32.totalorder %s33, 1
      %p366 = por %p364, %p365
      %p367 = scmp.ne.s32.totalorder %s358, %s359
      %p368 = scmp.eq.s32.totalorder %s33, 0
      %p369 = por %p367, %p368
      %p370 = scmp.ne.s32.totalorder %s358, %s359
      %p371 = scmp.eq.s32.totalorder %s34, 1
      %p372 = por %p370, %p371
      %p374 = scmp.ne.s32.totalorder %s359, %s373
      %p375 = scmp.eq.s32.totalorder %s34, 0
      %p376 = por %p374, %p375
      %s378 = sadd.s32 %s377, 1
      %p381 = scmp.eq.s32.totalorder %s28, 1
      %p382 = scmp.ne.s32.totalorder %s377, %s379
      %p383 = scmp.eq.s32.totalorder %s28, 0
      %p384 = por %p382, %p383
      %p385 = scmp.ne.s32.totalorder %s377, %s379
      %p386 = scmp.eq.s32.totalorder %s33, 1
      %p387 = por %p385, %p386
      %p388 = scmp.ne.s32.totalorder %s379, %s380
      %p389 = scmp.eq.s32.totalorder %s33, 0
      %p390 = por %p388, %p389
      %p391 = scmp.ne.s32.totalorder %s379, %s380
      %p392 = scmp.eq.s32.totalorder %s34, 1
      %p393 = por %p391, %p392
      %p395 = scmp.ne.s32.totalorder %s380, %s394
      %p396 = scmp.eq.s32.totalorder %s34, 0
      %p397 = por %p395, %p396
      %s398 = ssub.s32 %s28, %s35
      %p399 = scmp.eq.s32.totalorder %s398, 0
      %s401 = sadd.s32 %s400, 1
      %s402 = scalar_select %p399, %s400, %s401
      %p405 = pneg %p399
      %p406 = scmp.eq.s32.totalorder %s28, 1
      %p407 = por %p405, %p406
      %p408 = scmp.ne.s32.totalorder %s400, %s403
      %p409 = scmp.eq.s32.totalorder %s28, 0
      %p410 = por %p408, %p409
      %p411 = scmp.ne.s32.totalorder %s400, %s403
      %p412 = scmp.eq.s32.totalorder %s33, 1
      %p413 = por %p411, %p412
      %p414 = scmp.ne.s32.totalorder %s403, %s404
      %p415 = scmp.eq.s32.totalorder %s33, 0
      %p416 = por %p414, %p415
      %p417 = scmp.ne.s32.totalorder %s403, %s404
      %p418 = scmp.eq.s32.totalorder %s34, 1
      %p419 = por %p417, %p418
      %p421 = scmp.ne.s32.totalorder %s404, %s420
      %p422 = scmp.eq.s32.totalorder %s34, 0
      %p423 = por %p421, %p422
      %s424 = ssub.s32 %s28, %s35
      %p425 = scmp.eq.s32.totalorder %s424, 0
      %s427 = sadd.s32 %s426, 1
      %s428 = scalar_select %p425, %s426, %s427
      %p431 = pneg %p425
      %p432 = scmp.eq.s32.totalorder %s28, 1
      %p433 = por %p431, %p432
      %p434 = scmp.ne.s32.totalorder %s426, %s429
      %p435 = scmp.eq.s32.totalorder %s28, 0
      %p436 = por %p434, %p435
      %p437 = scmp.ne.s32.totalorder %s426, %s429
      %p438 = scmp.eq.s32.totalorder %s33, 1
      %p439 = por %p437, %p438
      %p440 = scmp.ne.s32.totalorder %s429, %s430
      %p441 = scmp.eq.s32.totalorder %s33, 0
      %p442 = por %p440, %p441
      %p443 = scmp.ne.s32.totalorder %s429, %s430
      %p444 = scmp.eq.s32.totalorder %s34, 1
      %p445 = por %p443, %p444
      %p447 = scmp.ne.s32.totalorder %s430, %s446
      %p448 = scmp.eq.s32.totalorder %s34, 0
      %p449 = por %p447, %p448
      %p450 = scmp.le.s32.totalorder 1, %s28
      %p451 = scmp.lt.s32.totalorder %s28, 3
      %p452 = pnand %p450, %p451
      %p453 = pneg %p452
      // Predicated region
      $region9: #{vit_forward.3} parent=5 // pred_check
        _
      $region10: #{vit_forward.3} parent=5 // pred_check_branch
        %455 = sbr.rel (%p452) target = $region12
      $region11: #{vit_forward.3} parent=5 // pred_region
        %s456 = ssub.s32 %s28, 1
        // Predicated region
        $region13: #{vit_forward.3} parent=11 // pred_check
          %p457 = pneg %p75
        $region14: #{vit_forward.3} parent=11 // pred_check_branch
          %459 = sbr.rel (%p457) target = $region16
        $region15: #{vit_forward.3} parent=11 // pred_region
          _
        $region16: #{vit_forward.3} parent=11 // pred_fallthru
          _
        // Predicated region
        $region17: #{vit_forward.3} parent=11 // pred_check
          %p460 = pneg %p96
        $region18: #{vit_forward.3} parent=11 // pred_check_branch
          %462 = sbr.rel (%p460) target = $region20
        $region19: #{vit_forward.3} parent=11 // pred_region
          _
        $region20: #{vit_forward.3} parent=11 // pred_fallthru
          _
        // Predicated region
        $region21: #{vit_forward.3} parent=11 // pred_check
          %p463 = pneg %p117
        $region22: #{vit_forward.3} parent=11 // pred_check_branch
          %465 = sbr.rel (%p463) target = $region24
        $region23: #{vit_forward.3} parent=11 // pred_region
          _
        $region24: #{vit_forward.3} parent=11 // pred_fallthru
          _
        // Predicated region
        $region25: #{vit_forward.3} parent=11 // pred_check
          %p466 = pneg %p138
        $region26: #{vit_forward.3} parent=11 // pred_check_branch
          %468 = sbr.rel (%p466) target = $region28
        $region27: #{vit_forward.3} parent=11 // pred_region
          _
        $region28: #{vit_forward.3} parent=11 // pred_fallthru
          _
        // Predicated region
        $region29: #{vit_forward.3} parent=11 // pred_check
          %p469 = pneg %p159
        $region30: #{vit_forward.3} parent=11 // pred_check_branch
          %471 = sbr.rel (%p469) target = $region32
        $region31: #{vit_forward.3} parent=11 // pred_region
          _
        $region32: #{vit_forward.3} parent=11 // pred_fallthru
          _
        // Predicated region
        $region33: #{vit_forward.3} parent=11 // pred_check
          %p472 = pneg %p180
        $region34: #{vit_forward.3} parent=11 // pred_check_branch
          %474 = sbr.rel (%p472) target = $region36
        $region35: #{vit_forward.3} parent=11 // pred_region
          _
        $region36: #{vit_forward.3} parent=11 // pred_fallthru
          _
        // Predicated region
        $region37: #{vit_forward.3} parent=11 // pred_check
          %p475 = pneg %p201
        $region38: #{vit_forward.3} parent=11 // pred_check_branch
          %477 = sbr.rel (%p475) target = $region40
        $region39: #{vit_forward.3} parent=11 // pred_region
          _
        $region40: #{vit_forward.3} parent=11 // pred_fallthru
          _
        // Predicated region
        $region41: #{vit_forward.3} parent=11 // pred_check
          %p478 = pneg %p222
        $region42: #{vit_forward.3} parent=11 // pred_check_branch
          %480 = sbr.rel (%p478) target = $region44
        $region43: #{vit_forward.3} parent=11 // pred_region
          _
        $region44: #{vit_forward.3} parent=11 // pred_fallthru
          _
        // Predicated region
        $region45: #{vit_forward.3} parent=11 // pred_check
          %p481 = pneg %p243
        $region46: #{vit_forward.3} parent=11 // pred_check_branch
          %483 = sbr.rel (%p481) target = $region48
        $region47: #{vit_forward.3} parent=11 // pred_region
          _
        $region48: #{vit_forward.3} parent=11 // pred_fallthru
          _
        // Predicated region
        $region49: #{vit_forward.3} parent=11 // pred_check
          %p484 = pneg %p264
        $region50: #{vit_forward.3} parent=11 // pred_check_branch
          %486 = sbr.rel (%p484) target = $region52
        $region51: #{vit_forward.3} parent=11 // pred_region
          _
        $region52: #{vit_forward.3} parent=11 // pred_fallthru
          _
        // Predicated region
        $region53: #{vit_forward.3} parent=11 // pred_check
          %p487 = pneg %p285
        $region54: #{vit_forward.3} parent=11 // pred_check_branch
          %489 = sbr.rel (%p487) target = $region56
        $region55: #{vit_forward.3} parent=11 // pred_region
          _
        $region56: #{vit_forward.3} parent=11 // pred_fallthru
          _
        // Predicated region
        $region57: #{vit_forward.3} parent=11 // pred_check
          %p490 = pneg %p306
        $region58: #{vit_forward.3} parent=11 // pred_check_branch
          %492 = sbr.rel (%p490) target = $region60
        $region59: #{vit_forward.3} parent=11 // pred_region
          _
        $region60: #{vit_forward.3} parent=11 // pred_fallthru
          _
        // Predicated region
        $region61: #{vit_forward.3} parent=11 // pred_check
          %p493 = pneg %p327
        $region62: #{vit_forward.3} parent=11 // pred_check_branch
          %495 = sbr.rel (%p493) target = $region64
        $region63: #{vit_forward.3} parent=11 // pred_region
          _
        $region64: #{vit_forward.3} parent=11 // pred_fallthru
          _
        // Predicated region
        $region65: #{vit_forward.3} parent=11 // pred_check
          %p496 = pneg %p348
        $region66: #{vit_forward.3} parent=11 // pred_check_branch
          %498 = sbr.rel (%p496) target = $region68
        $region67: #{vit_forward.3} parent=11 // pred_region
          _
        $region68: #{vit_forward.3} parent=11 // pred_fallthru
          _
        // Predicated region
        $region69: #{vit_forward.3} parent=11 // pred_check
          %p499 = pneg %p369
        $region70: #{vit_forward.3} parent=11 // pred_check_branch
          %501 = sbr.rel (%p499) target = $region72
        $region71: #{vit_forward.3} parent=11 // pred_region
          _
        $region72: #{vit_forward.3} parent=11 // pred_fallthru
          _
        // Predicated region
        $region73: #{vit_forward.3} parent=11 // pred_check
          %p502 = pneg %p390
        $region74: #{vit_forward.3} parent=11 // pred_check_branch
          %504 = sbr.rel (%p502) target = $region76
        $region75: #{vit_forward.3} parent=11 // pred_region
          _
        $region76: #{vit_forward.3} parent=11 // pred_fallthru
          _
      $region12: #{vit_forward.3} parent=5 // pred_fallthru
        _
      %p505 = scmp.lt.s32.totalorder %s28, 2
      // Predicated region
      $region77: #{vit_forward.3} parent=5 // pred_check
        %p506 = pneg %p505
      $region78: #{vit_forward.3} parent=5 // pred_check_branch
        %508 = sbr.rel (%p506) target = $region80
      $region79: #{vit_forward.3} parent=5 // pred_region
        // Predicated region
        $region81: #{vit_forward.3} parent=79 // pred_check
          %p509 = pneg %p48
        $region82: #{vit_forward.3} parent=79 // pred_check_branch
          %511 = sbr.rel (%p509) target = $region84
        $region83: #{vit_forward.3} parent=79 // pred_region
          %p512 = scmp.lt.s32.totalorder %s28, 1
          %s513 = scalar_select %p512, %s28, 1
          %s514 = smul.addr %s513, 9
          %s515 = smul.addr %s514, 8
          %s516 = scalar_lea.vmem %s0, %s515
        $region84: #{vit_forward.3} parent=79 // pred_fallthru
          _
      $region80: #{vit_forward.3} parent=5 // pred_fallthru
        _
      %p517 = scmp.le.s32.totalorder 1, %s28
      %p518 = scmp.lt.s32.totalorder %s28, 3
      %p519 = pnand %p517, %p518
      %p520 = pneg %p519
      // Predicated region
      $region85: #{vit_forward.3} parent=5 // pred_check
        _
      $region86: #{vit_forward.3} parent=5 // pred_check_branch
        %522 = sbr.rel (%p519) target = $region88
      $region87: #{vit_forward.3} parent=5 // pred_region
        %s523 = ssub.s32 %s28, 1
        %p524 = scmp.lt.s32.totalorder %s33, 1
        %s525 = scalar_select %p524, %s33, 1
        %s526 = smul.addr %s525, 9
        %s527 = smul.addr %s526, 8
        %s528 = scalar_lea.vmem %s0, %s527
        %p529 = pneg %p54
        %p530 = pneg %p51
        %p531 = pneg %p75
        %p532 = pneg %p72
        %p533 = pneg %p96
        %p534 = pneg %p93
        %p535 = pneg %p117
        %p536 = pneg %p114
        %p537 = pneg %p138
        %p538 = pneg %p135
        %p539 = pneg %p159
        %p540 = pneg %p156
        %p541 = pneg %p180
        %p542 = pneg %p177
        %p543 = pneg %p201
        %p544 = pneg %p198
        %p545 = pneg %p222
        %p546 = pneg %p219
        %p547 = pneg %p243
        %p548 = pneg %p240
        %p549 = pneg %p264
        %p550 = pneg %p261
        %p551 = pneg %p285
        %p552 = pneg %p282
        %p553 = pneg %p306
        %p554 = pneg %p303
        %p555 = pneg %p327
        %p556 = pneg %p324
        %p557 = pneg %p348
        %p558 = pneg %p345
        %p559 = pneg %p369
        %p560 = pneg %p366
        %p561 = pneg %p390
        %p562 = pneg %p387
        %p563 = pneg %p416
        %p564 = pneg %p413
        %p565 = scmp.lt.s32.totalorder %s33, 1
        %s566 = scalar_select %p565, %s33, 1
        %s567 = scalar_lea.vmem %s17, %s566
        %p568 = pneg %p442
        %p569 = pneg %p439
        %s570 = sand.u32 %s429, 1
        %s571 = scalar_lea.sflag [#allocation3], %s570
        %s572 = sand.u32 %s429, 1
        %s573 = scalar_lea.vmem [#allocation2], %s572
        %p574 = scmp.lt.s32.totalorder %s33, 1
        %s575 = scalar_select %p574, %s33, 1
        %s576 = smul.addr %s575, 9
        %s577 = smul.addr %s576, 8
        %s578 = scalar_lea.vmem %s0, %s577
        %p579 = scmp.lt.s32.totalorder %s33, 1
        %s580 = scalar_select %p579, %s33, 1
        %s581 = scalar_lea.vmem %s17, %s580
        %v582 = vld [vmem:[%s578] sm:$0xff]
        %v583 = vld [vmem:[%s578 + $0x8] sm:$0xff]
        %v584 = vld [vmem:[%s578 + $0x10] sm:$0xff]
        %v585 = vld [vmem:[%s578 + $0x18] sm:$0xff]
        %v586 = vld [vmem:[%s578 + $0x20] sm:$0xff]
        %v587 = vld [vmem:[%s578 + $0x28] sm:$0xff]
        %v588 = vld [vmem:[%s578 + $0x30] sm:$0xff]
        %v589 = vld [vmem:[%s578 + $0x38] sm:$0xff]
        %v590 = vld [vmem:[%s578 + $0x40] sm:$0x1]
        %v591 = vld [vmem:[%s1] sm:$0xff]
        %v592 = vld [vmem:[%s1 + $0x8] sm:$0xff]
        %v593 = vld [vmem:[%s1 + $0x10] sm:$0xff]
        %v594 = vld [vmem:[%s1 + $0x18] sm:$0xff]
        %v595 = vld [vmem:[%s1 + $0x20] sm:$0xf]
        %v596 = vld [vmem:[%s2] sm:$0x1]
        %v598 = vlaneseq
        %v599 = vshrl.u32 %v598, 7
        %v600 = vsub.s32 0, %v599
        %v601 = vrot.slane %v596, %v600
        %vm603 = vcmask 293888
        %v605 = vsel %vm603, %v582, 0
        %v608 = vsel %vm603, %v583, 0
        %v611 = vsel %vm603, %v584, 0
        %v614 = vsel %vm603, %v585, 0
        %v617 = vsel %vm603, %v586, 0
        %v620 = vsel %vm603, %v587, 0
        %v623 = vsel %vm603, %v588, 0
        %v626 = vsel %vm603, %v589, 0
        %v629 = vsel %vm603, %v590, 0
        %vm631 = vcmask 1043456
        %v633 = vsel %vm631, %v595, 0
        %635 = vmatprep.subr.mxu0 0.0
        %636 = vmatpush1.msra.mxu0 %v591
        %637 = vmatprep.subr.mxu0 0.0
        %638 = vmatpush1.msra.mxu0 %v592
        %639 = vmatprep.subr.mxu0 0.0
        %640 = vmatpush1.msra.mxu0 %v593
        %641 = vmatprep.subr.mxu0 0.0
        %642 = vmatpush1.msra.mxu0 %v594
        %643 = vmatprep.subr.mxu0 0.0
        %644 = vmatpush1.msra.mxu0 %v633
        %645 = vmatprep.subr.mxu0 0.0
        %646 = vmatpush1.msra.mxu0 0.0
        %647 = vmatprep.subr.mxu0 0.0
        %648 = vmatpush1.msra.mxu0 0.0
        %649 = vmatprep.subr.mxu0 0.0
        %650 = vmatpush1.msra.mxu0 0.0
        %651 = vmatprep.subr.mxu0 0.0
        %652 = vmatpush1.msra.mxu0 0.0
        %653 = vmatprep.subr.mxu0 0.0
        %654 = vmatpush1.msra.mxu0 0.0
        %655 = vmatprep.subr.mxu0 0.0
        %656 = vmatpush1.msra.mxu0 0.0
        %657 = vmatprep.subr.mxu0 0.0
        %658 = vmatpush1.msra.mxu0 0.0
        %659 = vmatprep.subr.mxu0 0.0
        %660 = vmatpush1.msra.mxu0 0.0
        %661 = vmatprep.subr.mxu0 0.0
        %662 = vmatpush1.msra.mxu0 0.0
        %663 = vmatprep.subr.mxu0 0.0
        %664 = vmatpush1.msra.mxu0 0.0
        %665 = vmatprep.subr.mxu0 0.0
        %666 = vmatpush1.msra.mxu0 0.0
        %667 = vmatprep.subr.mxu0 0.0
        %668 = vmatpush1.msra.mxu0 0.0
        %669 = vmatprep.subr.mxu0 0.0
        %670 = vmatpush1.msra.mxu0 0.0
        %671 = vmatprep.subr.mxu0 0.0
        %672 = vmatpush1.msra.mxu0 0.0
        %673 = vmatprep.subr.mxu0 0.0
        %674 = vmatpush1.msra.mxu0 0.0
        %675 = vmatprep.subr.mxu0 0.0
        %676 = vmatpush1.msra.mxu0 0.0
        %677 = vmatprep.subr.mxu0 0.0
        %678 = vmatpush1.msra.mxu0 0.0
        %679 = vmatprep.subr.mxu0 0.0
        %680 = vmatpush1.msra.mxu0 0.0
        %681 = vmatprep.subr.mxu0 0.0
        %682 = vmatpush1.msra.mxu0 0.0
        %683 = vmatprep.subr.mxu0 0.0
        %684 = vmatpush1.msra.mxu0 0.0
        %685 = vmatprep.subr.mxu0 0.0
        %686 = vmatpush1.msra.mxu0 0.0
        %687 = vmatprep.subr.mxu0 0.0
        %688 = vmatpush1.msra.mxu0 0.0
        %689 = vmatprep.subr.mxu0 0.0
        %690 = vmatpush1.msra.mxu0 0.0
        %691 = vmatprep.subr.mxu0 0.0
        %692 = vmatpush1.msra.mxu0 0.0
        %693 = vmatprep.subr.mxu0 0.0
        %694 = vmatpush1.msra.mxu0 0.0
        %695 = vmatprep.subr.mxu0 0.0
        %696 = vmatpush1.msra.mxu0 0.0
        %697 = vmatprep.subr.mxu0 0.0
        %698 = vmatpush1.msra.mxu0 0.0
        %699 = vmatprep.mubr.f32.mxu0 0.0
        %700 = vmatmul.mubr.f32.gmra.mrb[0].mxu0 %v605
        %v701 = vpop.f32.mrb[0].mxu0
        %v702 = vadd.f32 %v601, %v701
        %v703 = vpop.f32.mrb[0].mxu0
        %704 = vmatprep.mubr.f32.mxu0 0.0
        %705 = vmatmul.mubr.f32.gmra.mrb[0].mxu0 %v608
        %v706 = vpop.f32.mrb[0].mxu0
        %v707 = vadd.f32 %v601, %v706
        %v708 = vpop.f32.mrb[0].mxu0
        %709 = vmatprep.mubr.f32.mxu0 0.0
        %710 = vmatmul.mubr.f32.gmra.mrb[0].mxu0 %v611
        %v711 = vpop.f32.mrb[0].mxu0
        %v712 = vadd.f32 %v601, %v711
        %v713 = vpop.f32.mrb[0].mxu0
        %714 = vmatprep.mubr.f32.mxu0 0.0
        %715 = vmatmul.mubr.f32.gmra.mrb[0].mxu0 %v614
        %v716 = vpop.f32.mrb[0].mxu0
        %v717 = vadd.f32 %v601, %v716
        %v718 = vpop.f32.mrb[0].mxu0
        %719 = vmatprep.mubr.f32.mxu0 0.0
        %720 = vmatmul.mubr.f32.gmra.mrb[0].mxu0 %v617
        %v721 = vpop.f32.mrb[0].mxu0
        %v722 = vadd.f32 %v601, %v721
        %v723 = vpop.f32.mrb[0].mxu0
        %724 = vmatprep.mubr.f32.mxu0 0.0
        %725 = vmatmul.mubr.f32.gmra.mrb[0].mxu0 %v620
        %v726 = vpop.f32.mrb[0].mxu0
        %v727 = vadd.f32 %v601, %v726
        %v728 = vpop.f32.mrb[0].mxu0
        %729 = vmatprep.mubr.f32.mxu0 0.0
        %730 = vmatmul.mubr.f32.gmra.mrb[0].mxu0 %v623
        %v731 = vpop.f32.mrb[0].mxu0
        %v732 = vadd.f32 %v601, %v731
        %v733 = vpop.f32.mrb[0].mxu0
        %734 = vmatprep.mubr.f32.mxu0 0.0
        %735 = vmatmul.mubr.f32.gmra.mrb[0].mxu0 %v626
        %v736 = vpop.f32.mrb[0].mxu0
        %v737 = vadd.f32 %v601, %v736
        %v738 = vpop.f32.mrb[0].mxu0
        %739 = vmatprep.mubr.f32.mxu0 0.0
        %740 = vmatmul.mubr.f32.gmra.mrb[0].mxu0 %v629
        %v741 = vpop.f32.mrb[0].mxu0
        %v742 = vadd.f32 %v601, %v741
        %v743 = vpop.f32.mrb[0].mxu0
        %744 = vdwg.mxu0
        %v745 = vadd.f32 %v702, %v702
        %v746 = vadd.f32 %v707, %v707
        %v747 = vadd.f32 %v712, %v712
        %v748 = vadd.f32 %v717, %v717
        %v749 = vadd.f32 %v722, %v722
        %v750 = vadd.f32 %v727, %v727
        %v751 = vadd.f32 %v732, %v732
        %v752 = vadd.f32 %v737, %v737
        %v753 = vadd.f32 %v742, %v742
        %v754 = vld [vmem:[%s3] sm:$0x1]
        %v755 = vld [vmem:[%s4] sm:$0x1]
        %v756 = vsel %vm603, %v745, 0.0
        %757 = vadd.xlane.f32.xlu0 %v756
        %v758 = vpop.xlane.xlu0 %757
        %v759 = vsel %vm603, %v746, 0.0
        %760 = vadd.xlane.f32.xlu0 %v759
        %v761 = vpop.xlane.xlu0 %760
        %v762 = vsel %vm603, %v747, 0.0
        %763 = vadd.xlane.f32.xlu0 %v762
        %v764 = vpop.xlane.xlu0 %763
        %v765 = vsel %vm603, %v748, 0.0
        %766 = vadd.xlane.f32.xlu0 %v765
        %v767 = vpop.xlane.xlu0 %766
        %v768 = vsel %vm603, %v749, 0.0
        %769 = vadd.xlane.f32.xlu0 %v768
        %v770 = vpop.xlane.xlu0 %769
        %v771 = vsel %vm603, %v750, 0.0
        %772 = vadd.xlane.f32.xlu0 %v771
        %v773 = vpop.xlane.xlu0 %772
        %v774 = vsel %vm603, %v751, 0.0
        %775 = vadd.xlane.f32.xlu0 %v774
        %v776 = vpop.xlane.xlu0 %775
        %v777 = vsel %vm603, %v752, 0.0
        %778 = vadd.xlane.f32.xlu0 %v777
        %v779 = vpop.xlane.xlu0 %778
        %vm780 = vcmask 286720
        %v781 = vsel %vm780, %v753, 0.0
        %782 = vadd.xlane.f32.xlu0 %v781
        %v783 = vpop.xlane.xlu0 %782
        %v784 = vrcp.pop 36.0
        %v785 = vmul.f32 %v758, %v784
        %v786 = vmul.f32 %v761, %v784
        %v787 = vmul.f32 %v764, %v784
        %v788 = vmul.f32 %v767, %v784
        %v789 = vmul.f32 %v770, %v784
        %v790 = vmul.f32 %v773, %v784
        %v791 = vmul.f32 %v776, %v784
        %v792 = vmul.f32 %v779, %v784
        %v793 = vmul.f32 %v783, %v784
        %v794 = vsub.f32 %v745, %v785
        %v795 = vsub.f32 %v746, %v786
        %v796 = vsub.f32 %v747, %v787
        %v797 = vsub.f32 %v748, %v788
        %v798 = vsub.f32 %v749, %v789
        %v799 = vsub.f32 %v750, %v790
        %v800 = vsub.f32 %v751, %v791
        %v801 = vsub.f32 %v752, %v792
        %v802 = vsub.f32 %v753, %v793
        %v803 = vmul.f32 %v794, %v794
        %v804 = vmul.f32 %v795, %v795
        %v805 = vmul.f32 %v796, %v796
        %v806 = vmul.f32 %v797, %v797
        %v807 = vmul.f32 %v798, %v798
        %v808 = vmul.f32 %v799, %v799
        %v809 = vmul.f32 %v800, %v800
        %v810 = vmul.f32 %v801, %v801
        %v811 = vmul.f32 %v802, %v802
        %v812 = vsel %vm603, %v803, 0.0
        %813 = vadd.xlane.f32.xlu0 %v812
        %v814 = vpop.xlane.xlu0 %813
        %v815 = vsel %vm603, %v804, 0.0
        %816 = vadd.xlane.f32.xlu0 %v815
        %v817 = vpop.xlane.xlu0 %816
        %v818 = vsel %vm603, %v805, 0.0
        %819 = vadd.xlane.f32.xlu0 %v818
        %v820 = vpop.xlane.xlu0 %819
        %v821 = vsel %vm603, %v806, 0.0
        %822 = vadd.xlane.f32.xlu0 %v821
        %v823 = vpop.xlane.xlu0 %822
        %v824 = vsel %vm603, %v807, 0.0
        %825 = vadd.xlane.f32.xlu0 %v824
        %v826 = vpop.xlane.xlu0 %825
        %v827 = vsel %vm603, %v808, 0.0
        %828 = vadd.xlane.f32.xlu0 %v827
        %v829 = vpop.xlane.xlu0 %828
        %v830 = vsel %vm603, %v809, 0.0
        %831 = vadd.xlane.f32.xlu0 %v830
        %v832 = vpop.xlane.xlu0 %831
        %v833 = vsel %vm603, %v810, 0.0
        %834 = vadd.xlane.f32.xlu0 %v833
        %v835 = vpop.xlane.xlu0 %834
        %v836 = vsel %vm780, %v811, 0.0
        %837 = vadd.xlane.f32.xlu0 %v836
        %v838 = vpop.xlane.xlu0 %837
        %v839 = vmul.f32 %v814, %v784
        %v840 = vmul.f32 %v817, %v784
        %v841 = vmul.f32 %v820, %v784
        %v842 = vmul.f32 %v823, %v784
        %v843 = vmul.f32 %v826, %v784
        %v844 = vmul.f32 %v829, %v784
        %v845 = vmul.f32 %v832, %v784
        %v846 = vmul.f32 %v835, %v784
        %v847 = vmul.f32 %v838, %v784
        %v848 = vadd.f32 %v839, 1e-06
        %v849 = vadd.f32 %v840, 1e-06
        %v850 = vadd.f32 %v841, 1e-06
        %v851 = vadd.f32 %v842, 1e-06
        %v852 = vadd.f32 %v843, 1e-06
        %v853 = vadd.f32 %v844, 1e-06
        %v854 = vadd.f32 %v845, 1e-06
        %v855 = vadd.f32 %v846, 1e-06
        %v856 = vadd.f32 %v847, 1e-06
        %v857 = vrsqrt.pop %v848
        %v858 = vrsqrt.pop %v849
        %v859 = vrsqrt.pop %v850
        %v860 = vrsqrt.pop %v851
        %v861 = vrsqrt.pop %v852
        %v862 = vrsqrt.pop %v853
        %v863 = vrsqrt.pop %v854
        %v864 = vrsqrt.pop %v855
        %v865 = vrsqrt.pop %v856
        %v866 = vmul.f32 %v794, %v857
        %v867 = vmul.f32 %v795, %v858
        %v868 = vmul.f32 %v796, %v859
        %v869 = vmul.f32 %v797, %v860
        %v870 = vmul.f32 %v798, %v861
        %v871 = vmul.f32 %v799, %v862
        %v872 = vmul.f32 %v800, %v863
        %v873 = vmul.f32 %v801, %v864
        %v874 = vmul.f32 %v802, %v865
        %v876 = vlaneseq
        %v877 = vshrl.u32 %v876, 7
        %v878 = vsub.s32 0, %v877
        %v879 = vrot.slane %v754, %v878
        %v881 = vmul.f32 %v866, %v879
        %v882 = vmul.f32 %v867, %v879
        %v883 = vmul.f32 %v868, %v879
        %v884 = vmul.f32 %v869, %v879
        %v885 = vmul.f32 %v870, %v879
        %v886 = vmul.f32 %v871, %v879
        %v887 = vmul.f32 %v872, %v879
        %v888 = vmul.f32 %v873, %v879
        %v889 = vmul.f32 %v874, %v879
        %v891 = vlaneseq
        %v892 = vshrl.u32 %v891, 7
        %v893 = vsub.s32 0, %v892
        %v894 = vrot.slane %v755, %v893
        %v896 = vadd.f32 %v881, %v894
        %v897 = vadd.f32 %v882, %v894
        %v898 = vadd.f32 %v883, %v894
        %v899 = vadd.f32 %v884, %v894
        %v900 = vadd.f32 %v885, %v894
        %v901 = vadd.f32 %v886, %v894
        %v902 = vadd.f32 %v887, %v894
        %v903 = vadd.f32 %v888, %v894
        %v904 = vadd.f32 %v889, %v894
        %v905 = vld [vmem:[%s5] sm:$0xff]
        %v906 = vld [vmem:[%s5 + $0x8] sm:$0xff]
        %v907 = vld [vmem:[%s5 + $0x10] sm:$0xff]
        %v908 = vld [vmem:[%s5 + $0x18] sm:$0xff]
        %v909 = vld [vmem:[%s5 + $0x20] sm:$0xff]
        %v910 = vld [vmem:[%s5 + $0x28] sm:$0xff]
        %v911 = vld [vmem:[%s5 + $0x30] sm:$0xff]
        %v912 = vld [vmem:[%s5 + $0x38] sm:$0xff]
        %v913 = vld [vmem:[%s5 + $0x40] sm:$0xf]
        %v914 = vld [vmem:[%s5 + $0x48] sm:$0xf]
        %v915 = vld [vmem:[%s6] sm:$0x3]
        %v917 = vlaneseq
        %v918 = vshrl.u32 %v917, 7
        %v919 = vsub.s32 0, %v918
        %v920 = vrot.slane %v915, %v919
        %v921 = vlaneseq
        %v922 = vshrl.u32 %v921, 7
        %v923 = vsub.s32 1, %v922
        %v924 = vrot.slane %v915, %v923
        %v928 = vsel %vm603, %v896, 0
        %v931 = vsel %vm603, %v897, 0
        %v934 = vsel %vm603, %v898, 0
        %v937 = vsel %vm603, %v899, 0
        %v940 = vsel %vm603, %v900, 0
        %v943 = vsel %vm603, %v901, 0
        %v946 = vsel %vm603, %v902, 0
        %v949 = vsel %vm603, %v903, 0
        %v952 = vsel %vm603, %v904, 0
        %v955 = vsel %vm631, %v913, 0
        %v958 = vsel %vm631, %v914, 0
        %960 = vmatprep.subr.mxu0 %v906
        %961 = vmatpush1.msra.mxu0 %v905
        %962 = vmatprep.subr.mxu0 %v908
        %963 = vmatpush1.msra.mxu0 %v907
        %964 = vmatprep.subr.mxu0 %v910
        %965 = vmatpush1.msra.mxu0 %v909
        %966 = vmatprep.subr.mxu0 %v912
        %967 = vmatpush1.msra.mxu0 %v911
        %968 = vmatprep.subr.mxu0 %v958
        %969 = vmatpush1.msra.mxu0 %v955
        %970 = vmatprep.subr.mxu0 0.0
        %971 = vmatpush1.msra.mxu0 0.0
        %972 = vmatprep.subr.mxu0 0.0
        %973 = vmatpush1.msra.mxu0 0.0
        %974 = vmatprep.subr.mxu0 0.0
        %975 = vmatpush1.msra.mxu0 0.0
        %976 = vmatprep.subr.mxu0 0.0
        %977 = vmatpush1.msra.mxu0 0.0
        %978 = vmatprep.subr.mxu0 0.0
        %979 = vmatpush1.msra.mxu0 0.0
        %980 = vmatprep.subr.mxu0 0.0
        %981 = vmatpush1.msra.mxu0 0.0
        %982 = vmatprep.subr.mxu0 0.0
        %983 = vmatpush1.msra.mxu0 0.0
        %984 = vmatprep.subr.mxu0 0.0
        %985 = vmatpush1.msra.mxu0 0.0
        %986 = vmatprep.subr.mxu0 0.0
        %987 = vmatpush1.msra.mxu0 0.0
        %988 = vmatprep.subr.mxu0 0.0
        %989 = vmatpush1.msra.mxu0 0.0
        %990 = vmatprep.subr.mxu0 0.0
        %991 = vmatpush1.msra.mxu0 0.0
        %992 = vmatprep.subr.mxu0 0.0
        %993 = vmatpush1.msra.mxu0 0.0
        %994 = vmatprep.subr.mxu0 0.0
        %995 = vmatpush1.msra.mxu0 0.0
        %996 = vmatprep.subr.mxu0 0.0
        %997 = vmatpush1.msra.mxu0 0.0
        %998 = vmatprep.subr.mxu0 0.0
        %999 = vmatpush1.msra.mxu0 0.0
        %1000 = vmatprep.subr.mxu0 0.0
        %1001 = vmatpush1.msra.mxu0 0.0
        %1002 = vmatprep.subr.mxu0 0.0
        %1003 = vmatpush1.msra.mxu0 0.0
        %1004 = vmatprep.subr.mxu0 0.0
        %1005 = vmatpush1.msra.mxu0 0.0
        %1006 = vmatprep.subr.mxu0 0.0
        %1007 = vmatpush1.msra.mxu0 0.0
        %1008 = vmatprep.subr.mxu0 0.0
        %1009 = vmatpush1.msra.mxu0 0.0
        %1010 = vmatprep.subr.mxu0 0.0
        %1011 = vmatpush1.msra.mxu0 0.0
        %1012 = vmatprep.subr.mxu0 0.0
        %1013 = vmatpush1.msra.mxu0 0.0
        %1014 = vmatprep.subr.mxu0 0.0
        %1015 = vmatpush1.msra.mxu0 0.0
        %1016 = vmatprep.subr.mxu0 0.0
        %1017 = vmatpush1.msra.mxu0 0.0
        %1018 = vmatprep.subr.mxu0 0.0
        %1019 = vmatpush1.msra.mxu0 0.0
        %1020 = vmatprep.subr.mxu0 0.0
        %1021 = vmatpush1.msra.mxu0 0.0
        %1022 = vmatprep.subr.mxu0 0.0
        %1023 = vmatpush1.msra.mxu0 0.0
        %1024 = vmatprep.mubr.f32.mxu0 0.0
        %1025 = vmatmul.mubr.f32.gmra.mrb[0].mxu0 %v928
        %v1026 = vpop.f32.mrb[0].mxu0
        %v1027 = vadd.f32 %v920, %v1026
        %v1028 = vpop.f32.mrb[0].mxu0
        %v1029 = vadd.f32 %v924, %v1028
        %1030 = vmatprep.mubr.f32.mxu0 0.0
        %1031 = vmatmul.mubr.f32.gmra.mrb[0].mxu0 %v931
        %v1032 = vpop.f32.mrb[0].mxu0
        %v1033 = vadd.f32 %v920, %v1032
        %v1034 = vpop.f32.mrb[0].mxu0
        %v1035 = vadd.f32 %v924, %v1034
        %1036 = vmatprep.mubr.f32.mxu0 0.0
        %1037 = vmatmul.mubr.f32.gmra.mrb[0].mxu0 %v934
        %v1038 = vpop.f32.mrb[0].mxu0
        %v1039 = vadd.f32 %v920, %v1038
        %v1040 = vpop.f32.mrb[0].mxu0
        %v1041 = vadd.f32 %v924, %v1040
        %1042 = vmatprep.mubr.f32.mxu0 0.0
        %1043 = vmatmul.mubr.f32.gmra.mrb[0].mxu0 %v937
        %v1044 = vpop.f32.mrb[0].mxu0
        %v1045 = vadd.f32 %v920, %v1044
        %v1046 = vpop.f32.mrb[0].mxu0
        %v1047 = vadd.f32 %v924, %v1046
        %1048 = vmatprep.mubr.f32.mxu0 0.0
        %1049 = vmatmul.mubr.f32.gmra.mrb[0].mxu0 %v940
        %v1050 = vpop.f32.mrb[0].mxu0
        %v1051 = vadd.f32 %v920, %v1050
        %v1052 = vpop.f32.mrb[0].mxu0
        %v1053 = vadd.f32 %v924, %v1052
        %1054 = vmatprep.mubr.f32.mxu0 0.0
        %1055 = vmatmul.mubr.f32.gmra.mrb[0].mxu0 %v943
        %v1056 = vpop.f32.mrb[0].mxu0
        %v1057 = vadd.f32 %v920, %v1056
        %v1058 = vpop.f32.mrb[0].mxu0
        %v1059 = vadd.f32 %v924, %v1058
        %1060 = vmatprep.mubr.f32.mxu0 0.0
        %1061 = vmatmul.mubr.f32.gmra.mrb[0].mxu0 %v946
        %v1062 = vpop.f32.mrb[0].mxu0
        %v1063 = vadd.f32 %v920, %v1062
        %v1064 = vpop.f32.mrb[0].mxu0
        %v1065 = vadd.f32 %v924, %v1064
        %1066 = vmatprep.mubr.f32.mxu0 0.0
        %1067 = vmatmul.mubr.f32.gmra.mrb[0].mxu0 %v949
        %v1068 = vpop.f32.mrb[0].mxu0
        %v1069 = vadd.f32 %v920, %v1068
        %v1070 = vpop.f32.mrb[0].mxu0
        %v1071 = vadd.f32 %v924, %v1070
        %1072 = vmatprep.mubr.f32.mxu0 0.0
        %1073 = vmatmul.mubr.f32.gmra.mrb[0].mxu0 %v952
        %v1074 = vpop.f32.mrb[0].mxu0
        %v1075 = vadd.f32 %v920, %v1074
        %v1076 = vpop.f32.mrb[0].mxu0
        %v1077 = vadd.f32 %v924, %v1076
        %1078 = vdwg.mxu0
        %v1079 = vmul.f32 %v1027, 0.5
        %v1080 = vmul.f32 %v1029, 0.5
        %v1081 = vmul.f32 %v1033, 0.5
        %v1082 = vmul.f32 %v1035, 0.5
        %v1083 = vmul.f32 %v1039, 0.5
        %v1084 = vmul.f32 %v1041, 0.5
        %v1085 = vmul.f32 %v1045, 0.5
        %v1086 = vmul.f32 %v1047, 0.5
        %v1087 = vmul.f32 %v1051, 0.5
        %v1088 = vmul.f32 %v1053, 0.5
        %v1089 = vmul.f32 %v1057, 0.5
        %v1090 = vmul.f32 %v1059, 0.5
        %v1091 = vmul.f32 %v1063, 0.5
        %v1092 = vmul.f32 %v1065, 0.5
        %v1093 = vmul.f32 %v1069, 0.5
        %v1094 = vmul.f32 %v1071, 0.5
        %v1095 = vmul.f32 %v1075, 0.5
        %v1096 = vmul.f32 %v1077, 0.5
        %v1097 = vmul.f32 %v1027, 0.70710677
        %v1098 = vmul.f32 %v1029, 0.70710677
        %v1099 = vmul.f32 %v1033, 0.70710677
        %v1100 = vmul.f32 %v1035, 0.70710677
        %v1101 = vmul.f32 %v1039, 0.70710677
        %v1102 = vmul.f32 %v1041, 0.70710677
        %v1103 = vmul.f32 %v1045, 0.70710677
        %v1104 = vmul.f32 %v1047, 0.70710677
        %v1105 = vmul.f32 %v1051, 0.70710677
        %v1106 = vmul.f32 %v1053, 0.70710677
        %v1107 = vmul.f32 %v1057, 0.70710677
        %v1108 = vmul.f32 %v1059, 0.70710677
        %v1109 = vmul.f32 %v1063, 0.70710677
        %v1110 = vmul.f32 %v1065, 0.70710677
        %v1111 = vmul.f32 %v1069, 0.70710677
        %v1112 = vmul.f32 %v1071, 0.70710677
        %v1113 = vmul.f32 %v1075, 0.70710677
        %v1114 = vmul.f32 %v1077, 0.70710677
        %vm1115 = vcmp.lt.f32.partialorder %v1097, 0.0
        %vm1116 = vcmp.lt.f32.partialorder %v1098, 0.0
        %vm1117 = vcmp.lt.f32.partialorder %v1099, 0.0
        %vm1118 = vcmp.lt.f32.partialorder %v1100, 0.0
        %vm1119 = vcmp.lt.f32.partialorder %v1101, 0.0
        %vm1120 = vcmp.lt.f32.partialorder %v1102, 0.0
        %vm1121 = vcmp.lt.f32.partialorder %v1103, 0.0
        %vm1122 = vcmp.lt.f32.partialorder %v1104, 0.0
        %vm1123 = vcmp.lt.f32.partialorder %v1105, 0.0
        %vm1124 = vcmp.lt.f32.partialorder %v1106, 0.0
        %vm1125 = vcmp.lt.f32.partialorder %v1107, 0.0
        %vm1126 = vcmp.lt.f32.partialorder %v1108, 0.0
        %vm1127 = vcmp.lt.f32.partialorder %v1109, 0.0
        %vm1128 = vcmp.lt.f32.partialorder %v1110, 0.0
        %vm1129 = vcmp.lt.f32.partialorder %v1111, 0.0
        %vm1130 = vcmp.lt.f32.partialorder %v1112, 0.0
        %vm1131 = vcmp.lt.f32.partialorder %v1113, 0.0
        %vm1132 = vcmp.lt.f32.partialorder %v1114, 0.0
        %v1133 = vsel %vm1115, -1.0, 1.0
        %v1134 = vsel %vm1116, -1.0, 1.0
        %v1135 = vsel %vm1117, -1.0, 1.0
        %v1136 = vsel %vm1118, -1.0, 1.0
        %v1137 = vsel %vm1119, -1.0, 1.0
        %v1138 = vsel %vm1120, -1.0, 1.0
        %v1139 = vsel %vm1121, -1.0, 1.0
        %v1140 = vsel %vm1122, -1.0, 1.0
        %v1141 = vsel %vm1123, -1.0, 1.0
        %v1142 = vsel %vm1124, -1.0, 1.0
        %v1143 = vsel %vm1125, -1.0, 1.0
        %v1144 = vsel %vm1126, -1.0, 1.0
        %v1145 = vsel %vm1127, -1.0, 1.0
        %v1146 = vsel %vm1128, -1.0, 1.0
        %v1147 = vsel %vm1129, -1.0, 1.0
        %v1148 = vsel %vm1130, -1.0, 1.0
        %v1149 = vsel %vm1131, -1.0, 1.0
        %v1150 = vsel %vm1132, -1.0, 1.0
        %v1151 = vand.u32 2147483647, %v1097
        %v1152 = vand.u32 2147483647, %v1098
        %v1153 = vand.u32 2147483647, %v1099
        %v1154 = vand.u32 2147483647, %v1100
        %v1155 = vand.u32 2147483647, %v1101
        %v1156 = vand.u32 2147483647, %v1102
        %v1157 = vand.u32 2147483647, %v1103
        %v1158 = vand.u32 2147483647, %v1104
        %v1159 = vand.u32 2147483647, %v1105
        %v1160 = vand.u32 2147483647, %v1106
        %v1161 = vand.u32 2147483647, %v1107
        %v1162 = vand.u32 2147483647, %v1108
        %v1163 = vand.u32 2147483647, %v1109
        %v1164 = vand.u32 2147483647, %v1110
        %v1165 = vand.u32 2147483647, %v1111
        %v1166 = vand.u32 2147483647, %v1112
        %v1167 = vand.u32 2147483647, %v1113
        %v1168 = vand.u32 2147483647, %v1114
        %v1169 = vmul.f32 %v1151, 0.3275911
        %v1170 = vmul.f32 %v1152, 0.3275911
        %v1171 = vmul.f32 %v1153, 0.3275911
        %v1172 = vmul.f32 %v1154, 0.3275911
        %v1173 = vmul.f32 %v1155, 0.3275911
        %v1174 = vmul.f32 %v1156, 0.3275911
        %v1175 = vmul.f32 %v1157, 0.3275911
        %v1176 = vmul.f32 %v1158, 0.3275911
        %v1177 = vmul.f32 %v1159, 0.3275911
        %v1178 = vmul.f32 %v1160, 0.3275911
        %v1179 = vmul.f32 %v1161, 0.3275911
        %v1180 = vmul.f32 %v1162, 0.3275911
        %v1181 = vmul.f32 %v1163, 0.3275911
        %v1182 = vmul.f32 %v1164, 0.3275911
        %v1183 = vmul.f32 %v1165, 0.3275911
        %v1184 = vmul.f32 %v1166, 0.3275911
        %v1185 = vmul.f32 %v1167, 0.3275911
        %v1186 = vmul.f32 %v1168, 0.3275911
        %v1187 = vadd.f32 %v1169, 1.0
        %v1188 = vadd.f32 %v1170, 1.0
        %v1189 = vadd.f32 %v1171, 1.0
        %v1190 = vadd.f32 %v1172, 1.0
        %v1191 = vadd.f32 %v1173, 1.0
        %v1192 = vadd.f32 %v1174, 1.0
        %v1193 = vadd.f32 %v1175, 1.0
        %v1194 = vadd.f32 %v1176, 1.0
        %v1195 = vadd.f32 %v1177, 1.0
        %v1196 = vadd.f32 %v1178, 1.0
        %v1197 = vadd.f32 %v1179, 1.0
        %v1198 = vadd.f32 %v1180, 1.0
        %v1199 = vadd.f32 %v1181, 1.0
        %v1200 = vadd.f32 %v1182, 1.0
        %v1201 = vadd.f32 %v1183, 1.0
        %v1202 = vadd.f32 %v1184, 1.0
        %v1203 = vadd.f32 %v1185, 1.0
        %v1204 = vadd.f32 %v1186, 1.0
        %v1205 = vrcp.pop %v1187
        %v1206 = vmul.f32 1.0, %v1205
        %v1207 = vrcp.pop %v1188
        %v1208 = vmul.f32 1.0, %v1207
        %v1209 = vrcp.pop %v1189
        %v1210 = vmul.f32 1.0, %v1209
        %v1211 = vrcp.pop %v1190
        %v1212 = vmul.f32 1.0, %v1211
        %v1213 = vrcp.pop %v1191
        %v1214 = vmul.f32 1.0, %v1213
        %v1215 = vrcp.pop %v1192
        %v1216 = vmul.f32 1.0, %v1215
        %v1217 = vrcp.pop %v1193
        %v1218 = vmul.f32 1.0, %v1217
        %v1219 = vrcp.pop %v1194
        %v1220 = vmul.f32 1.0, %v1219
        %v1221 = vrcp.pop %v1195
        %v1222 = vmul.f32 1.0, %v1221
        %v1223 = vrcp.pop %v1196
        %v1224 = vmul.f32 1.0, %v1223
        %v1225 = vrcp.pop %v1197
        %v1226 = vmul.f32 1.0, %v1225
        %v1227 = vrcp.pop %v1198
        %v1228 = vmul.f32 1.0, %v1227
        %v1229 = vrcp.pop %v1199
        %v1230 = vmul.f32 1.0, %v1229
        %v1231 = vrcp.pop %v1200
        %v1232 = vmul.f32 1.0, %v1231
        %v1233 = vrcp.pop %v1201
        %v1234 = vmul.f32 1.0, %v1233
        %v1235 = vrcp.pop %v1202
        %v1236 = vmul.f32 1.0, %v1235
        %v1237 = vrcp.pop %v1203
        %v1238 = vmul.f32 1.0, %v1237
        %v1239 = vrcp.pop %v1204
        %v1240 = vmul.f32 1.0, %v1239
        %v1241 = vmul.f32 %v1206, 1.0614054
        %v1242 = vmul.f32 %v1208, 1.0614054
        %v1243 = vmul.f32 %v1210, 1.0614054
        %v1244 = vmul.f32 %v1212, 1.0614054
        %v1245 = vmul.f32 %v1214, 1.0614054
        %v1246 = vmul.f32 %v1216, 1.0614054
        %v1247 = vmul.f32 %v1218, 1.0614054
        %v1248 = vmul.f32 %v1220, 1.0614054
        %v1249 = vmul.f32 %v1222, 1.0614054
        %v1250 = vmul.f32 %v1224, 1.0614054
        %v1251 = vmul.f32 %v1226, 1.0614054
        %v1252 = vmul.f32 %v1228, 1.0614054
        %v1253 = vmul.f32 %v1230, 1.0614054
        %v1254 = vmul.f32 %v1232, 1.0614054
        %v1255 = vmul.f32 %v1234, 1.0614054
        %v1256 = vmul.f32 %v1236, 1.0614054
        %v1257 = vmul.f32 %v1238, 1.0614054
        %v1258 = vmul.f32 %v1240, 1.0614054
        %v1259 = vadd.f32 %v1241, -1.4531521
        %v1260 = vadd.f32 %v1242, -1.4531521
        %v1261 = vadd.f32 %v1243, -1.4531521
        %v1262 = vadd.f32 %v1244, -1.4531521
        %v1263 = vadd.f32 %v1245, -1.4531521
        %v1264 = vadd.f32 %v1246, -1.4531521
        %v1265 = vadd.f32 %v1247, -1.4531521
        %v1266 = vadd.f32 %v1248, -1.4531521
        %v1267 = vadd.f32 %v1249, -1.4531521
        %v1268 = vadd.f32 %v1250, -1.4531521
        %v1269 = vadd.f32 %v1251, -1.4531521
        %v1270 = vadd.f32 %v1252, -1.4531521
        %v1271 = vadd.f32 %v1253, -1.4531521
        %v1272 = vadd.f32 %v1254, -1.4531521
        %v1273 = vadd.f32 %v1255, -1.4531521
        %v1274 = vadd.f32 %v1256, -1.4531521
        %v1275 = vadd.f32 %v1257, -1.4531521
        %v1276 = vadd.f32 %v1258, -1.4531521
        %v1277 = vmul.f32 %v1259, %v1206
        %v1278 = vmul.f32 %v1260, %v1208
        %v1279 = vmul.f32 %v1261, %v1210
        %v1280 = vmul.f32 %v1262, %v1212
        %v1281 = vmul.f32 %v1263, %v1214
        %v1282 = vmul.f32 %v1264, %v1216
        %v1283 = vmul.f32 %v1265, %v1218
        %v1284 = vmul.f32 %v1266, %v1220
        %v1285 = vmul.f32 %v1267, %v1222
        %v1286 = vmul.f32 %v1268, %v1224
        %v1287 = vmul.f32 %v1269, %v1226
        %v1288 = vmul.f32 %v1270, %v1228
        %v1289 = vmul.f32 %v1271, %v1230
        %v1290 = vmul.f32 %v1272, %v1232
        %v1291 = vmul.f32 %v1273, %v1234
        %v1292 = vmul.f32 %v1274, %v1236
        %v1293 = vmul.f32 %v1275, %v1238
        %v1294 = vmul.f32 %v1276, %v1240
        %v1295 = vadd.f32 %v1277, 1.4214138
        %v1296 = vadd.f32 %v1278, 1.4214138
        %v1297 = vadd.f32 %v1279, 1.4214138
        %v1298 = vadd.f32 %v1280, 1.4214138
        %v1299 = vadd.f32 %v1281, 1.4214138
        %v1300 = vadd.f32 %v1282, 1.4214138
        %v1301 = vadd.f32 %v1283, 1.4214138
        %v1302 = vadd.f32 %v1284, 1.4214138
        %v1303 = vadd.f32 %v1285, 1.4214138
        %v1304 = vadd.f32 %v1286, 1.4214138
        %v1305 = vadd.f32 %v1287, 1.4214138
        %v1306 = vadd.f32 %v1288, 1.4214138
        %v1307 = vadd.f32 %v1289, 1.4214138
        %v1308 = vadd.f32 %v1290, 1.4214138
        %v1309 = vadd.f32 %v1291, 1.4214138
        %v1310 = vadd.f32 %v1292, 1.4214138
        %v1311 = vadd.f32 %v1293, 1.4214138
        %v1312 = vadd.f32 %v1294, 1.4214138
        %v1313 = vmul.f32 %v1295, %v1206
        %v1314 = vmul.f32 %v1296, %v1208
        %v1315 = vmul.f32 %v1297, %v1210
        %v1316 = vmul.f32 %v1298, %v1212
        %v1317 = vmul.f32 %v1299, %v1214
        %v1318 = vmul.f32 %v1300, %v1216
        %v1319 = vmul.f32 %v1301, %v1218
        %v1320 = vmul.f32 %v1302, %v1220
        %v1321 = vmul.f32 %v1303, %v1222
        %v1322 = vmul.f32 %v1304, %v1224
        %v1323 = vmul.f32 %v1305, %v1226
        %v1324 = vmul.f32 %v1306, %v1228
        %v1325 = vmul.f32 %v1307, %v1230
        %v1326 = vmul.f32 %v1308, %v1232
        %v1327 = vmul.f32 %v1309, %v1234
        %v1328 = vmul.f32 %v1310, %v1236
        %v1329 = vmul.f32 %v1311, %v1238
        %v1330 = vmul.f32 %v1312, %v1240
        %v1331 = vadd.f32 %v1313, -0.28449672
        %v1332 = vadd.f32 %v1314, -0.28449672
        %v1333 = vadd.f32 %v1315, -0.28449672
        %v1334 = vadd.f32 %v1316, -0.28449672
        %v1335 = vadd.f32 %v1317, -0.28449672
        %v1336 = vadd.f32 %v1318, -0.28449672
        %v1337 = vadd.f32 %v1319, -0.28449672
        %v1338 = vadd.f32 %v1320, -0.28449672
        %v1339 = vadd.f32 %v1321, -0.28449672
        %v1340 = vadd.f32 %v1322, -0.28449672
        %v1341 = vadd.f32 %v1323, -0.28449672
        %v1342 = vadd.f32 %v1324, -0.28449672
        %v1343 = vadd.f32 %v1325, -0.28449672
        %v1344 = vadd.f32 %v1326, -0.28449672
        %v1345 = vadd.f32 %v1327, -0.28449672
        %v1346 = vadd.f32 %v1328, -0.28449672
        %v1347 = vadd.f32 %v1329, -0.28449672
        %v1348 = vadd.f32 %v1330, -0.28449672
        %v1349 = vmul.f32 %v1331, %v1206
        %v1350 = vmul.f32 %v1332, %v1208
        %v1351 = vmul.f32 %v1333, %v1210
        %v1352 = vmul.f32 %v1334, %v1212
        %v1353 = vmul.f32 %v1335, %v1214
        %v1354 = vmul.f32 %v1336, %v1216
        %v1355 = vmul.f32 %v1337, %v1218
        %v1356 = vmul.f32 %v1338, %v1220
        %v1357 = vmul.f32 %v1339, %v1222
        %v1358 = vmul.f32 %v1340, %v1224
        %v1359 = vmul.f32 %v1341, %v1226
        %v1360 = vmul.f32 %v1342, %v1228
        %v1361 = vmul.f32 %v1343, %v1230
        %v1362 = vmul.f32 %v1344, %v1232
        %v1363 = vmul.f32 %v1345, %v1234
        %v1364 = vmul.f32 %v1346, %v1236
        %v1365 = vmul.f32 %v1347, %v1238
        %v1366 = vmul.f32 %v1348, %v1240
        %v1367 = vadd.f32 %v1349, 0.2548296
        %v1368 = vadd.f32 %v1350, 0.2548296
        %v1369 = vadd.f32 %v1351, 0.2548296
        %v1370 = vadd.f32 %v1352, 0.2548296
        %v1371 = vadd.f32 %v1353, 0.2548296
        %v1372 = vadd.f32 %v1354, 0.2548296
        %v1373 = vadd.f32 %v1355, 0.2548296
        %v1374 = vadd.f32 %v1356, 0.2548296
        %v1375 = vadd.f32 %v1357, 0.2548296
        %v1376 = vadd.f32 %v1358, 0.2548296
        %v1377 = vadd.f32 %v1359, 0.2548296
        %v1378 = vadd.f32 %v1360, 0.2548296
        %v1379 = vadd.f32 %v1361, 0.2548296
        %v1380 = vadd.f32 %v1362, 0.2548296
        %v1381 = vadd.f32 %v1363, 0.2548296
        %v1382 = vadd.f32 %v1364, 0.2548296
        %v1383 = vadd.f32 %v1365, 0.2548296
        %v1384 = vadd.f32 %v1366, 0.2548296
        %v1385 = vmul.f32 %v1367, %v1206
        %v1386 = vmul.f32 %v1368, %v1208
        %v1387 = vmul.f32 %v1369, %v1210
        %v1388 = vmul.f32 %v1370, %v1212
        %v1389 = vmul.f32 %v1371, %v1214
        %v1390 = vmul.f32 %v1372, %v1216
        %v1391 = vmul.f32 %v1373, %v1218
        %v1392 = vmul.f32 %v1374, %v1220
        %v1393 = vmul.f32 %v1375, %v1222
        %v1394 = vmul.f32 %v1376, %v1224
        %v1395 = vmul.f32 %v1377, %v1226
        %v1396 = vmul.f32 %v1378, %v1228
        %v1397 = vmul.f32 %v1379, %v1230
        %v1398 = vmul.f32 %v1380, %v1232
        %v1399 = vmul.f32 %v1381, %v1234
        %v1400 = vmul.f32 %v1382, %v1236
        %v1401 = vmul.f32 %v1383, %v1238
        %v1402 = vmul.f32 %v1384, %v1240
        %v1403 = vsub.f32 0.0, %v1151
        %v1404 = vsub.f32 0.0, %v1152
        %v1405 = vsub.f32 0.0, %v1153
        %v1406 = vsub.f32 0.0, %v1154
        %v1407 = vsub.f32 0.0, %v1155
        %v1408 = vsub.f32 0.0, %v1156
        %v1409 = vsub.f32 0.0, %v1157
        %v1410 = vsub.f32 0.0, %v1158
        %v1411 = vsub.f32 0.0, %v1159
        %v1412 = vsub.f32 0.0, %v1160
        %v1413 = vsub.f32 0.0, %v1161
        %v1414 = vsub.f32 0.0, %v1162
        %v1415 = vsub.f32 0.0, %v1163
        %v1416 = vsub.f32 0.0, %v1164
        %v1417 = vsub.f32 0.0, %v1165
        %v1418 = vsub.f32 0.0, %v1166
        %v1419 = vsub.f32 0.0, %v1167
        %v1420 = vsub.f32 0.0, %v1168
        %v1421 = vmul.f32 %v1403, %v1151
        %v1422 = vmul.f32 %v1404, %v1152
        %v1423 = vmul.f32 %v1405, %v1153
        %v1424 = vmul.f32 %v1406, %v1154
        %v1425 = vmul.f32 %v1407, %v1155
        %v1426 = vmul.f32 %v1408, %v1156
        %v1427 = vmul.f32 %v1409, %v1157
        %v1428 = vmul.f32 %v1410, %v1158
        %v1429 = vmul.f32 %v1411, %v1159
        %v1430 = vmul.f32 %v1412, %v1160
        %v1431 = vmul.f32 %v1413, %v1161
        %v1432 = vmul.f32 %v1414, %v1162
        %v1433 = vmul.f32 %v1415, %v1163
        %v1434 = vmul.f32 %v1416, %v1164
        %v1435 = vmul.f32 %v1417, %v1165
        %v1436 = vmul.f32 %v1418, %v1166
        %v1437 = vmul.f32 %v1419, %v1167
        %v1438 = vmul.f32 %v1420, %v1168
        %v1439 = vmul.f32 %v1421, 1.442695
        %v1440 = vpow.pop %v1439
        %v1441 = vmul.f32 %v1422, 1.442695
        %v1442 = vpow.pop %v1441
        %v1443 = vmul.f32 %v1423, 1.442695
        %v1444 = vpow.pop %v1443
        %v1445 = vmul.f32 %v1424, 1.442695
        %v1446 = vpow.pop %v1445
        %v1447 = vmul.f32 %v1425, 1.442695
        %v1448 = vpow.pop %v1447
        %v1449 = vmul.f32 %v1426, 1.442695
        %v1450 = vpow.pop %v1449
        %v1451 = vmul.f32 %v1427, 1.442695
        %v1452 = vpow.pop %v1451
        %v1453 = vmul.f32 %v1428, 1.442695
        %v1454 = vpow.pop %v1453
        %v1455 = vmul.f32 %v1429, 1.442695
        %v1456 = vpow.pop %v1455
        %v1457 = vmul.f32 %v1430, 1.442695
        %v1458 = vpow.pop %v1457
        %v1459 = vmul.f32 %v1431, 1.442695
        %v1460 = vpow.pop %v1459
        %v1461 = vmul.f32 %v1432, 1.442695
        %v1462 = vpow.pop %v1461
        %v1463 = vmul.f32 %v1433, 1.442695
        %v1464 = vpow.pop %v1463
        %v1465 = vmul.f32 %v1434, 1.442695
        %v1466 = vpow.pop %v1465
        %v1467 = vmul.f32 %v1435, 1.442695
        %v1468 = vpow.pop %v1467
        %v1469 = vmul.f32 %v1436, 1.442695
        %v1470 = vpow.pop %v1469
        %v1471 = vmul.f32 %v1437, 1.442695
        %v1472 = vpow.pop %v1471
        %v1473 = vmul.f32 %v1438, 1.442695
        %v1474 = vpow.pop %v1473
        %v1475 = vmul.f32 %v1385, %v1440
        %v1476 = vmul.f32 %v1386, %v1442
        %v1477 = vmul.f32 %v1387, %v1444
        %v1478 = vmul.f32 %v1388, %v1446
        %v1479 = vmul.f32 %v1389, %v1448
        %v1480 = vmul.f32 %v1390, %v1450
        %v1481 = vmul.f32 %v1391, %v1452
        %v1482 = vmul.f32 %v1392, %v1454
        %v1483 = vmul.f32 %v1393, %v1456
        %v1484 = vmul.f32 %v1394, %v1458
        %v1485 = vmul.f32 %v1395, %v1460
        %v1486 = vmul.f32 %v1396, %v1462
        %v1487 = vmul.f32 %v1397, %v1464
        %v1488 = vmul.f32 %v1398, %v1466
        %v1489 = vmul.f32 %v1399, %v1468
        %v1490 = vmul.f32 %v1400, %v1470
        %v1491 = vmul.f32 %v1401, %v1472
        %v1492 = vmul.f32 %v1402, %v1474
        %v1493 = vsub.f32 1.0, %v1475
        %v1494 = vsub.f32 1.0, %v1476
        %v1495 = vsub.f32 1.0, %v1477
        %v1496 = vsub.f32 1.0, %v1478
        %v1497 = vsub.f32 1.0, %v1479
        %v1498 = vsub.f32 1.0, %v1480
        %v1499 = vsub.f32 1.0, %v1481
        %v1500 = vsub.f32 1.0, %v1482
        %v1501 = vsub.f32 1.0, %v1483
        %v1502 = vsub.f32 1.0, %v1484
        %v1503 = vsub.f32 1.0, %v1485
        %v1504 = vsub.f32 1.0, %v1486
        %v1505 = vsub.f32 1.0, %v1487
        %v1506 = vsub.f32 1.0, %v1488
        %v1507 = vsub.f32 1.0, %v1489
        %v1508 = vsub.f32 1.0, %v1490
        %v1509 = vsub.f32 1.0, %v1491
        %v1510 = vsub.f32 1.0, %v1492
        %v1511 = vmul.f32 %v1133, %v1493
        %v1512 = vmul.f32 %v1134, %v1494
        %v1513 = vmul.f32 %v1135, %v1495
        %v1514 = vmul.f32 %v1136, %v1496
        %v1515 = vmul.f32 %v1137, %v1497
        %v1516 = vmul.f32 %v1138, %v1498
        %v1517 = vmul.f32 %v1139, %v1499
        %v1518 = vmul.f32 %v1140, %v1500
        %v1519 = vmul.f32 %v1141, %v1501
        %v1520 = vmul.f32 %v1142, %v1502
        %v1521 = vmul.f32 %v1143, %v1503
        %v1522 = vmul.f32 %v1144, %v1504
        %v1523 = vmul.f32 %v1145, %v1505
        %v1524 = vmul.f32 %v1146, %v1506
        %v1525 = vmul.f32 %v1147, %v1507
        %v1526 = vmul.f32 %v1148, %v1508
        %v1527 = vmul.f32 %v1149, %v1509
        %v1528 = vmul.f32 %v1150, %v1510
        %v1529 = vadd.f32 %v1511, 1.0
        %v1530 = vadd.f32 %v1512, 1.0
        %v1531 = vadd.f32 %v1513, 1.0
        %v1532 = vadd.f32 %v1514, 1.0
        %v1533 = vadd.f32 %v1515, 1.0
        %v1534 = vadd.f32 %v1516, 1.0
        %v1535 = vadd.f32 %v1517, 1.0
        %v1536 = vadd.f32 %v1518, 1.0
        %v1537 = vadd.f32 %v1519, 1.0
        %v1538 = vadd.f32 %v1520, 1.0
        %v1539 = vadd.f32 %v1521, 1.0
        %v1540 = vadd.f32 %v1522, 1.0
        %v1541 = vadd.f32 %v1523, 1.0
        %v1542 = vadd.f32 %v1524, 1.0
        %v1543 = vadd.f32 %v1525, 1.0
        %v1544 = vadd.f32 %v1526, 1.0
        %v1545 = vadd.f32 %v1527, 1.0
        %v1546 = vadd.f32 %v1528, 1.0
        %v1547 = vmul.f32 %v1079, %v1529
        %v1548 = vmul.f32 %v1080, %v1530
        %v1549 = vmul.f32 %v1081, %v1531
        %v1550 = vmul.f32 %v1082, %v1532
        %v1551 = vmul.f32 %v1083, %v1533
        %v1552 = vmul.f32 %v1084, %v1534
        %v1553 = vmul.f32 %v1085, %v1535
        %v1554 = vmul.f32 %v1086, %v1536
        %v1555 = vmul.f32 %v1087, %v1537
        %v1556 = vmul.f32 %v1088, %v1538
        %v1557 = vmul.f32 %v1089, %v1539
        %v1558 = vmul.f32 %v1090, %v1540
        %v1559 = vmul.f32 %v1091, %v1541
        %v1560 = vmul.f32 %v1092, %v1542
        %v1561 = vmul.f32 %v1093, %v1543
        %v1562 = vmul.f32 %v1094, %v1544
        %v1563 = vmul.f32 %v1095, %v1545
        %v1564 = vmul.f32 %v1096, %v1546
        %v1565 = vld [vmem:[%s7] sm:$0xff]
        %v1566 = vld [vmem:[%s7 + $0x8] sm:$0xff]
        %v1567 = vld [vmem:[%s7 + $0x10] sm:$0xff]
        %v1568 = vld [vmem:[%s7 + $0x18] sm:$0xff]
        %v1569 = vld [vmem:[%s7 + $0x20] sm:$0xff]
        %v1570 = vld [vmem:[%s7 + $0x28] sm:$0xff]
        %v1571 = vld [vmem:[%s7 + $0x30] sm:$0xff]
        %v1572 = vld [vmem:[%s7 + $0x38] sm:$0xff]
        %v1573 = vld [vmem:[%s7 + $0x40] sm:$0xff]
        %v1574 = vld [vmem:[%s7 + $0x48] sm:$0xff]
        %v1575 = vld [vmem:[%s7 + $0x50] sm:$0xff]
        %v1576 = vld [vmem:[%s7 + $0x58] sm:$0xff]
        %v1577 = vld [vmem:[%s7 + $0x60] sm:$0xff]
        %v1578 = vld [vmem:[%s7 + $0x68] sm:$0xff]
        %v1579 = vld [vmem:[%s7 + $0x70] sm:$0xff]
        %v1580 = vld [vmem:[%s7 + $0x78] sm:$0xff]
        %v1581 = vld [vmem:[%s7 + $0x80] sm:$0xff]
        %v1582 = vld [vmem:[%s7 + $0x88] sm:$0xff]
        %v1583 = vld [vmem:[%s8] sm:$0x1]
        %v1585 = vlaneseq
        %v1586 = vshrl.u32 %v1585, 7
        %v1587 = vsub.s32 0, %v1586
        %v1588 = vrot.slane %v1583, %v1587
        %vm1590 = vcmask 130048
        %v1592 = vsel %vm1590, %v1548, 0
        %v1595 = vsel %vm1590, %v1550, 0
        %v1598 = vsel %vm1590, %v1552, 0
        %v1601 = vsel %vm1590, %v1554, 0
        %v1604 = vsel %vm1590, %v1556, 0
        %v1607 = vsel %vm1590, %v1558, 0
        %v1610 = vsel %vm1590, %v1560, 0
        %v1613 = vsel %vm1590, %v1562, 0
        %v1616 = vsel %vm1590, %v1564, 0
        %1618 = vmatprep.subr.mxu0 0.0
        %1619 = vmatpush1.msra.mxu0 %v1565
        %1620 = vmatprep.subr.mxu0 0.0
        %1621 = vmatpush1.msra.mxu0 %v1566
        %1622 = vmatprep.subr.mxu0 0.0
        %1623 = vmatpush1.msra.mxu0 %v1567
        %1624 = vmatprep.subr.mxu0 0.0
        %1625 = vmatpush1.msra.mxu0 %v1568
        %1626 = vmatprep.subr.mxu0 0.0
        %1627 = vmatpush1.msra.mxu0 %v1569
        %1628 = vmatprep.subr.mxu0 0.0
        %1629 = vmatpush1.msra.mxu0 %v1570
        %1630 = vmatprep.subr.mxu0 0.0
        %1631 = vmatpush1.msra.mxu0 %v1571
        %1632 = vmatprep.subr.mxu0 0.0
        %1633 = vmatpush1.msra.mxu0 %v1572
        %1634 = vmatprep.subr.mxu0 0.0
        %1635 = vmatpush1.msra.mxu0 %v1573
        %1636 = vmatprep.subr.mxu0 0.0
        %1637 = vmatpush1.msra.mxu0 %v1574
        %1638 = vmatprep.subr.mxu0 0.0
        %1639 = vmatpush1.msra.mxu0 %v1575
        %1640 = vmatprep.subr.mxu0 0.0
        %1641 = vmatpush1.msra.mxu0 %v1576
        %1642 = vmatprep.subr.mxu0 0.0
        %1643 = vmatpush1.msra.mxu0 %v1577
        %1644 = vmatprep.subr.mxu0 0.0
        %1645 = vmatpush1.msra.mxu0 %v1578
        %1646 = vmatprep.subr.mxu0 0.0
        %1647 = vmatpush1.msra.mxu0 %v1579
        %1648 = vmatprep.subr.mxu0 0.0
        %1649 = vmatpush1.msra.mxu0 %v1580
        %1650 = vmatprep.subr.mxu0 0.0
        %1651 = vmatpush1.msra.mxu0 %v1581
        %1652 = vmatprep.subr.mxu0 0.0
        %1653 = vmatpush1.msra.mxu0 %v1582
        %1654 = vmatprep.subr.mxu0 0.0
        %1655 = vmatpush1.msra.mxu0 0.0
        %1656 = vmatprep.subr.mxu0 0.0
        %1657 = vmatpush1.msra.mxu0 0.0
        %1658 = vmatprep.subr.mxu0 0.0
        %1659 = vmatpush1.msra.mxu0 0.0
        %1660 = vmatprep.subr.mxu0 0.0
        %1661 = vmatpush1.msra.mxu0 0.0
        %1662 = vmatprep.subr.mxu0 0.0
        %1663 = vmatpush1.msra.mxu0 0.0
        %1664 = vmatprep.subr.mxu0 0.0
        %1665 = vmatpush1.msra.mxu0 0.0
        %1666 = vmatprep.subr.mxu0 0.0
        %1667 = vmatpush1.msra.mxu0 0.0
        %1668 = vmatprep.subr.mxu0 0.0
        %1669 = vmatpush1.msra.mxu0 0.0
        %1670 = vmatprep.subr.mxu0 0.0
        %1671 = vmatpush1.msra.mxu0 0.0
        %1672 = vmatprep.subr.mxu0 0.0
        %1673 = vmatpush1.msra.mxu0 0.0
        %1674 = vmatprep.subr.mxu0 0.0
        %1675 = vmatpush1.msra.mxu0 0.0
        %1676 = vmatprep.subr.mxu0 0.0
        %1677 = vmatpush1.msra.mxu0 0.0
        %1678 = vmatprep.subr.mxu0 0.0
        %1679 = vmatpush1.msra.mxu0 0.0
        %1680 = vmatprep.subr.mxu0 0.0
        %1681 = vmatpush1.msra.mxu0 0.0
        %1682 = vmatprep.mubr.f32.mxu0 %v1592
        %1683 = vmatmul.mubr.f32.gmra.mrb[0].mxu0 %v1547
        %v1684 = vpop.f32.mrb[0].mxu0
        %v1685 = vadd.f32 %v1588, %v1684
        %v1686 = vpop.f32.mrb[0].mxu0
        %1687 = vmatprep.mubr.f32.mxu0 %v1595
        %1688 = vmatmul.mubr.f32.gmra.mrb[0].mxu0 %v1549
        %v1689 = vpop.f32.mrb[0].mxu0
        %v1690 = vadd.f32 %v1588, %v1689
        %v1691 = vpop.f32.mrb[0].mxu0
        %1692 = vmatprep.mubr.f32.mxu0 %v1598
        %1693 = vmatmul.mubr.f32.gmra.mrb[0].mxu0 %v1551
        %v1694 = vpop.f32.mrb[0].mxu0
        %v1695 = vadd.f32 %v1588, %v1694
        %v1696 = vpop.f32.mrb[0].mxu0
        %1697 = vmatprep.mubr.f32.mxu0 %v1601
        %1698 = vmatmul.mubr.f32.gmra.mrb[0].mxu0 %v1553
        %v1699 = vpop.f32.mrb[0].mxu0
        %v1700 = vadd.f32 %v1588, %v1699
        %v1701 = vpop.f32.mrb[0].mxu0
        %1702 = vmatprep.mubr.f32.mxu0 %v1604
        %1703 = vmatmul.mubr.f32.gmra.mrb[0].mxu0 %v1555
        %v1704 = vpop.f32.mrb[0].mxu0
        %v1705 = vadd.f32 %v1588, %v1704
        %v1706 = vpop.f32.mrb[0].mxu0
        %1707 = vmatprep.mubr.f32.mxu0 %v1607
        %1708 = vmatmul.mubr.f32.gmra.mrb[0].mxu0 %v1557
        %v1709 = vpop.f32.mrb[0].mxu0
        %v1710 = vadd.f32 %v1588, %v1709
        %v1711 = vpop.f32.mrb[0].mxu0
        %1712 = vmatprep.mubr.f32.mxu0 %v1610
        %1713 = vmatmul.mubr.f32.gmra.mrb[0].mxu0 %v1559
        %v1714 = vpop.f32.mrb[0].mxu0
        %v1715 = vadd.f32 %v1588, %v1714
        %v1716 = vpop.f32.mrb[0].mxu0
        %1717 = vmatprep.mubr.f32.mxu0 %v1613
        %1718 = vmatmul.mubr.f32.gmra.mrb[0].mxu0 %v1561
        %v1719 = vpop.f32.mrb[0].mxu0
        %v1720 = vadd.f32 %v1588, %v1719
        %v1721 = vpop.f32.mrb[0].mxu0
        %1722 = vmatprep.mubr.f32.mxu0 %v1616
        %1723 = vmatmul.mubr.f32.gmra.mrb[0].mxu0 %v1563
        %v1724 = vpop.f32.mrb[0].mxu0
        %v1725 = vadd.f32 %v1588, %v1724
        %v1726 = vpop.f32.mrb[0].mxu0
        %1727 = vdwg.mxu0
        %v1728 = vadd.f32 %v745, %v1685
        %v1729 = vadd.f32 %v746, %v1690
        %v1730 = vadd.f32 %v747, %v1695
        %v1731 = vadd.f32 %v748, %v1700
        %v1732 = vadd.f32 %v749, %v1705
        %v1733 = vadd.f32 %v750, %v1710
        %v1734 = vadd.f32 %v751, %v1715
        %v1735 = vadd.f32 %v752, %v1720
        %v1736 = vadd.f32 %v753, %v1725
        %v1737 = vld [vmem:[%s9] sm:$0x1]
        %v1738 = vld [vmem:[%s10] sm:$0x1]
        %v1739 = vsel %vm603, %v1728, 0.0
        %1740 = vadd.xlane.f32.xlu0 %v1739
        %v1741 = vpop.xlane.xlu0 %1740
        %v1742 = vsel %vm603, %v1729, 0.0
        %1743 = vadd.xlane.f32.xlu0 %v1742
        %v1744 = vpop.xlane.xlu0 %1743
        %v1745 = vsel %vm603, %v1730, 0.0
        %1746 = vadd.xlane.f32.xlu0 %v1745
        %v1747 = vpop.xlane.xlu0 %1746
        %v1748 = vsel %vm603, %v1731, 0.0
        %1749 = vadd.xlane.f32.xlu0 %v1748
        %v1750 = vpop.xlane.xlu0 %1749
        %v1751 = vsel %vm603, %v1732, 0.0
        %1752 = vadd.xlane.f32.xlu0 %v1751
        %v1753 = vpop.xlane.xlu0 %1752
        %v1754 = vsel %vm603, %v1733, 0.0
        %1755 = vadd.xlane.f32.xlu0 %v1754
        %v1756 = vpop.xlane.xlu0 %1755
        %v1757 = vsel %vm603, %v1734, 0.0
        %1758 = vadd.xlane.f32.xlu0 %v1757
        %v1759 = vpop.xlane.xlu0 %1758
        %v1760 = vsel %vm603, %v1735, 0.0
        %1761 = vadd.xlane.f32.xlu0 %v1760
        %v1762 = vpop.xlane.xlu0 %1761
        %v1763 = vsel %vm780, %v1736, 0.0
        %1764 = vadd.xlane.f32.xlu0 %v1763
        %v1765 = vpop.xlane.xlu0 %1764
        %v1766 = vmul.f32 %v1741, %v784
        %v1767 = vmul.f32 %v1744, %v784
        %v1768 = vmul.f32 %v1747, %v784
        %v1769 = vmul.f32 %v1750, %v784
        %v1770 = vmul.f32 %v1753, %v784
        %v1771 = vmul.f32 %v1756, %v784
        %v1772 = vmul.f32 %v1759, %v784
        %v1773 = vmul.f32 %v1762, %v784
        %v1774 = vmul.f32 %v1765, %v784
        %v1775 = vsub.f32 %v1728, %v1766
        %v1776 = vsub.f32 %v1729, %v1767
        %v1777 = vsub.f32 %v1730, %v1768
        %v1778 = vsub.f32 %v1731, %v1769
        %v1779 = vsub.f32 %v1732, %v1770
        %v1780 = vsub.f32 %v1733, %v1771
        %v1781 = vsub.f32 %v1734, %v1772
        %v1782 = vsub.f32 %v1735, %v1773
        %v1783 = vsub.f32 %v1736, %v1774
        %v1784 = vmul.f32 %v1775, %v1775
        %v1785 = vmul.f32 %v1776, %v1776
        %v1786 = vmul.f32 %v1777, %v1777
        %v1787 = vmul.f32 %v1778, %v1778
        %v1788 = vmul.f32 %v1779, %v1779
        %v1789 = vmul.f32 %v1780, %v1780
        %v1790 = vmul.f32 %v1781, %v1781
        %v1791 = vmul.f32 %v1782, %v1782
        %v1792 = vmul.f32 %v1783, %v1783
        %v1793 = vsel %vm603, %v1784, 0.0
        %1794 = vadd.xlane.f32.xlu0 %v1793
        %v1795 = vpop.xlane.xlu0 %1794
        %v1796 = vsel %vm603, %v1785, 0.0
        %1797 = vadd.xlane.f32.xlu0 %v1796
        %v1798 = vpop.xlane.xlu0 %1797
        %v1799 = vsel %vm603, %v1786, 0.0
        %1800 = vadd.xlane.f32.xlu0 %v1799
        %v1801 = vpop.xlane.xlu0 %1800
        %v1802 = vsel %vm603, %v1787, 0.0
        %1803 = vadd.xlane.f32.xlu0 %v1802
        %v1804 = vpop.xlane.xlu0 %1803
        %v1805 = vsel %vm603, %v1788, 0.0
        %1806 = vadd.xlane.f32.xlu0 %v1805
        %v1807 = vpop.xlane.xlu0 %1806
        %v1808 = vsel %vm603, %v1789, 0.0
        %1809 = vadd.xlane.f32.xlu0 %v1808
        %v1810 = vpop.xlane.xlu0 %1809
        %v1811 = vsel %vm603, %v1790, 0.0
        %1812 = vadd.xlane.f32.xlu0 %v1811
        %v1813 = vpop.xlane.xlu0 %1812
        %v1814 = vsel %vm603, %v1791, 0.0
        %1815 = vadd.xlane.f32.xlu0 %v1814
        %v1816 = vpop.xlane.xlu0 %1815
        %v1817 = vsel %vm780, %v1792, 0.0
        %1818 = vadd.xlane.f32.xlu0 %v1817
        %v1819 = vpop.xlane.xlu0 %1818
        %v1820 = vmul.f32 %v1795, %v784
        %v1821 = vmul.f32 %v1798, %v784
        %v1822 = vmul.f32 %v1801, %v784
        %v1823 = vmul.f32 %v1804, %v784
        %v1824 = vmul.f32 %v1807, %v784
        %v1825 = vmul.f32 %v1810, %v784
        %v1826 = vmul.f32 %v1813, %v784
        %v1827 = vmul.f32 %v1816, %v784
        %v1828 = vmul.f32 %v1819, %v784
        %v1829 = vadd.f32 %v1820, 1e-06
        %v1830 = vadd.f32 %v1821, 1e-06
        %v1831 = vadd.f32 %v1822, 1e-06
        %v1832 = vadd.f32 %v1823, 1e-06
        %v1833 = vadd.f32 %v1824, 1e-06
        %v1834 = vadd.f32 %v1825, 1e-06
        %v1835 = vadd.f32 %v1826, 1e-06
        %v1836 = vadd.f32 %v1827, 1e-06
        %v1837 = vadd.f32 %v1828, 1e-06
        %v1838 = vrsqrt.pop %v1829
        %v1839 = vrsqrt.pop %v1830
        %v1840 = vrsqrt.pop %v1831
        %v1841 = vrsqrt.pop %v1832
        %v1842 = vrsqrt.pop %v1833
        %v1843 = vrsqrt.pop %v1834
        %v1844 = vrsqrt.pop %v1835
        %v1845 = vrsqrt.pop %v1836
        %v1846 = vrsqrt.pop %v1837
        %v1847 = vmul.f32 %v1775, %v1838
        %v1848 = vmul.f32 %v1776, %v1839
        %v1849 = vmul.f32 %v1777, %v1840
        %v1850 = vmul.f32 %v1778, %v1841
        %v1851 = vmul.f32 %v1779, %v1842
        %v1852 = vmul.f32 %v1780, %v1843
        %v1853 = vmul.f32 %v1781, %v1844
        %v1854 = vmul.f32 %v1782, %v1845
        %v1855 = vmul.f32 %v1783, %v1846
        %v1857 = vlaneseq
        %v1858 = vshrl.u32 %v1857, 7
        %v1859 = vsub.s32 0, %v1858
        %v1860 = vrot.slane %v1737, %v1859
        %v1862 = vmul.f32 %v1847, %v1860
        %v1863 = vmul.f32 %v1848, %v1860
        %v1864 = vmul.f32 %v1849, %v1860
        %v1865 = vmul.f32 %v1850, %v1860
        %v1866 = vmul.f32 %v1851, %v1860
        %v1867 = vmul.f32 %v1852, %v1860
        %v1868 = vmul.f32 %v1853, %v1860
        %v1869 = vmul.f32 %v1854, %v1860
        %v1870 = vmul.f32 %v1855, %v1860
        %v1872 = vlaneseq
        %v1873 = vshrl.u32 %v1872, 7
        %v1874 = vsub.s32 0, %v1873
        %v1875 = vrot.slane %v1738, %v1874
        %v1877 = vadd.f32 %v1862, %v1875
        %v1878 = vadd.f32 %v1863, %v1875
        %v1879 = vadd.f32 %v1864, %v1875
        %v1880 = vadd.f32 %v1865, %v1875
        %v1881 = vadd.f32 %v1866, %v1875
        %v1882 = vadd.f32 %v1867, %v1875
        %v1883 = vadd.f32 %v1868, %v1875
        %v1884 = vadd.f32 %v1869, %v1875
        %v1885 = vadd.f32 %v1870, %v1875
        %v1886 = vld [vmem:[%s11] sm:$0xff]
        %v1887 = vld [vmem:[%s11 + $0x8] sm:$0xff]
        %v1888 = vld [vmem:[%s11 + $0x10] sm:$0xff]
        %v1889 = vld [vmem:[%s11 + $0x18] sm:$0xff]
        %v1890 = vld [vmem:[%s11 + $0x20] sm:$0xff]
        %v1891 = vld [vmem:[%s11 + $0x28] sm:$0xff]
        %v1892 = vld [vmem:[%s11 + $0x30] sm:$0xff]
        %v1893 = vld [vmem:[%s11 + $0x38] sm:$0xff]
        %v1894 = vld [vmem:[%s11 + $0x40] sm:$0xf]
        %v1895 = vld [vmem:[%s11 + $0x48] sm:$0xf]
        %v1897 = vsel %vm603, %v1877, 0
        %v1900 = vsel %vm603, %v1878, 0
        %v1903 = vsel %vm603, %v1879, 0
        %v1906 = vsel %vm603, %v1880, 0
        %v1909 = vsel %vm603, %v1881, 0
        %v1912 = vsel %vm603, %v1882, 0
        %v1915 = vsel %vm603, %v1883, 0
        %v1918 = vsel %vm603, %v1884, 0
        %v1921 = vsel %vm603, %v1885, 0
        %v1924 = vsel %vm631, %v1894, 0
        %v1927 = vsel %vm631, %v1895, 0
        %1929 = vmatprep.subr.mxu0 %v1887
        %1930 = vmatpush1.msra.mxu0 %v1886
        %1931 = vmatprep.subr.mxu0 %v1889
        %1932 = vmatpush1.msra.mxu0 %v1888
        %1933 = vmatprep.subr.mxu0 %v1891
        %1934 = vmatpush1.msra.mxu0 %v1890
        %1935 = vmatprep.subr.mxu0 %v1893
        %1936 = vmatpush1.msra.mxu0 %v1892
        %1937 = vmatprep.subr.mxu0 %v1927
        %1938 = vmatpush1.msra.mxu0 %v1924
        %1939 = vmatprep.subr.mxu0 0.0
        %1940 = vmatpush1.msra.mxu0 0.0
        %1941 = vmatprep.subr.mxu0 0.0
        %1942 = vmatpush1.msra.mxu0 0.0
        %1943 = vmatprep.subr.mxu0 0.0
        %1944 = vmatpush1.msra.mxu0 0.0
        %1945 = vmatprep.subr.mxu0 0.0
        %1946 = vmatpush1.msra.mxu0 0.0
        %1947 = vmatprep.subr.mxu0 0.0
        %1948 = vmatpush1.msra.mxu0 0.0
        %1949 = vmatprep.subr.mxu0 0.0
        %1950 = vmatpush1.msra.mxu0 0.0
        %1951 = vmatprep.subr.mxu0 0.0
        %1952 = vmatpush1.msra.mxu0 0.0
        %1953 = vmatprep.subr.mxu0 0.0
        %1954 = vmatpush1.msra.mxu0 0.0
        %1955 = vmatprep.subr.mxu0 0.0
        %1956 = vmatpush1.msra.mxu0 0.0
        %1957 = vmatprep.subr.mxu0 0.0
        %1958 = vmatpush1.msra.mxu0 0.0
        %1959 = vmatprep.subr.mxu0 0.0
        %1960 = vmatpush1.msra.mxu0 0.0
        %1961 = vmatprep.subr.mxu0 0.0
        %1962 = vmatpush1.msra.mxu0 0.0
        %1963 = vmatprep.subr.mxu0 0.0
        %1964 = vmatpush1.msra.mxu0 0.0
        %1965 = vmatprep.subr.mxu0 0.0
        %1966 = vmatpush1.msra.mxu0 0.0
        %1967 = vmatprep.subr.mxu0 0.0
        %1968 = vmatpush1.msra.mxu0 0.0
        %1969 = vmatprep.subr.mxu0 0.0
        %1970 = vmatpush1.msra.mxu0 0.0
        %1971 = vmatprep.subr.mxu0 0.0
        %1972 = vmatpush1.msra.mxu0 0.0
        %1973 = vmatprep.subr.mxu0 0.0
        %1974 = vmatpush1.msra.mxu0 0.0
        %1975 = vmatprep.subr.mxu0 0.0
        %1976 = vmatpush1.msra.mxu0 0.0
        %1977 = vmatprep.subr.mxu0 0.0
        %1978 = vmatpush1.msra.mxu0 0.0
        %1979 = vmatprep.subr.mxu0 0.0
        %1980 = vmatpush1.msra.mxu0 0.0
        %1981 = vmatprep.subr.mxu0 0.0
        %1982 = vmatpush1.msra.mxu0 0.0
        %1983 = vmatprep.subr.mxu0 0.0
        %1984 = vmatpush1.msra.mxu0 0.0
        %1985 = vmatprep.subr.mxu0 0.0
        %1986 = vmatpush1.msra.mxu0 0.0
        %1987 = vmatprep.subr.mxu0 0.0
        %1988 = vmatpush1.msra.mxu0 0.0
        %1989 = vmatprep.subr.mxu0 0.0
        %1990 = vmatpush1.msra.mxu0 0.0
        %1991 = vmatprep.subr.mxu0 0.0
        %1992 = vmatpush1.msra.mxu0 0.0
        %1993 = vmatprep.mubr.f32.mxu0 0.0
        %1994 = vmatmul.mubr.f32.gmra.mrb[0].mxu0 %v1897
        %v1995 = vpop.f32.mrb[0].mxu0
        %v1996 = vadd.f32 0.0, %v1995
        %v1997 = vpop.f32.mrb[0].mxu0
        %v1998 = vadd.f32 0.0, %v1997
        %1999 = vmatprep.mubr.f32.mxu0 0.0
        %2000 = vmatmul.mubr.f32.gmra.mrb[0].mxu0 %v1900
        %v2001 = vpop.f32.mrb[0].mxu0
        %v2002 = vadd.f32 0.0, %v2001
        %v2003 = vpop.f32.mrb[0].mxu0
        %v2004 = vadd.f32 0.0, %v2003
        %2005 = vmatprep.mubr.f32.mxu0 0.0
        %2006 = vmatmul.mubr.f32.gmra.mrb[0].mxu0 %v1903
        %v2007 = vpop.f32.mrb[0].mxu0
        %v2008 = vadd.f32 0.0, %v2007
        %v2009 = vpop.f32.mrb[0].mxu0
        %v2010 = vadd.f32 0.0, %v2009
        %2011 = vmatprep.mubr.f32.mxu0 0.0
        %2012 = vmatmul.mubr.f32.gmra.mrb[0].mxu0 %v1906
        %v2013 = vpop.f32.mrb[0].mxu0
        %v2014 = vadd.f32 0.0, %v2013
        %v2015 = vpop.f32.mrb[0].mxu0
        %v2016 = vadd.f32 0.0, %v2015
        %2017 = vmatprep.mubr.f32.mxu0 0.0
        %2018 = vmatmul.mubr.f32.gmra.mrb[0].mxu0 %v1909
        %v2019 = vpop.f32.mrb[0].mxu0
        %v2020 = vadd.f32 0.0, %v2019
        %v2021 = vpop.f32.mrb[0].mxu0
        %v2022 = vadd.f32 0.0, %v2021
        %2023 = vmatprep.mubr.f32.mxu0 0.0
        %2024 = vmatmul.mubr.f32.gmra.mrb[0].mxu0 %v1912
        %v2025 = vpop.f32.mrb[0].mxu0
        %v2026 = vadd.f32 0.0, %v2025
        %v2027 = vpop.f32.mrb[0].mxu0
        %v2028 = vadd.f32 0.0, %v2027
        %2029 = vmatprep.mubr.f32.mxu0 0.0
        %2030 = vmatmul.mubr.f32.gmra.mrb[0].mxu0 %v1915
        %v2031 = vpop.f32.mrb[0].mxu0
        %v2032 = vadd.f32 0.0, %v2031
        %v2033 = vpop.f32.mrb[0].mxu0
        %v2034 = vadd.f32 0.0, %v2033
        %2035 = vmatprep.mubr.f32.mxu0 0.0
        %2036 = vmatmul.mubr.f32.gmra.mrb[0].mxu0 %v1918
        %v2037 = vpop.f32.mrb[0].mxu0
        %v2038 = vadd.f32 0.0, %v2037
        %v2039 = vpop.f32.mrb[0].mxu0
        %v2040 = vadd.f32 0.0, %v2039
        %2041 = vmatprep.mubr.f32.mxu0 0.0
        %2042 = vmatmul.mubr.f32.gmra.mrb[0].mxu0 %v1921
        %v2043 = vpop.f32.mrb[0].mxu0
        %v2044 = vadd.f32 0.0, %v2043
        %v2045 = vpop.f32.mrb[0].mxu0
        %v2046 = vadd.f32 0.0, %v2045
        %2047 = vdwg.mxu0
        %2048 = vmatprep.subr.mxu0 0.0
        %2049 = vmatpush1.xpose.msra.mxu0 %v1998
        %2050 = vmatprep.subr.mxu0 0.0
        %2051 = vmatpush1.xpose.msra.mxu0 %v2004
        %2052 = vmatprep.subr.mxu0 0.0
        %2053 = vmatpush1.xpose.msra.mxu0 %v2010
        %2054 = vmatprep.subr.mxu0 0.0
        %2055 = vmatpush1.xpose.msra.mxu0 %v2016
        %2056 = vmatprep.subr.mxu0 0.0
        %2057 = vmatpush1.xpose.msra.mxu0 %v2022
        %2058 = vmatprep.subr.mxu0 0.0
        %2059 = vmatpush1.xpose.msra.mxu0 %v2028
        %2060 = vmatprep.subr.mxu0 0.0
        %2061 = vmatpush1.xpose.msra.mxu0 %v2034
        %2062 = vmatprep.subr.mxu0 0.0
        %2063 = vmatpush1.xpose.msra.mxu0 %v2040
        %2064 = vmatprep.subr.mxu0 0.0
        %2065 = vmatpush1.xpose.msra.mxu0 %v2046
        %2066 = vmatprep.subr.mxu0 0.0
        %2067 = vmatpush1.xpose.msra.mxu0 0.0
        %2068 = vmatprep.subr.mxu0 0.0
        %2069 = vmatpush1.xpose.msra.mxu0 0.0
        %2070 = vmatprep.subr.mxu0 0.0
        %2071 = vmatpush1.xpose.msra.mxu0 0.0
        %2072 = vmatprep.subr.mxu0 0.0
        %2073 = vmatpush1.xpose.msra.mxu0 0.0
        %2074 = vmatprep.subr.mxu0 0.0
        %2075 = vmatpush1.xpose.msra.mxu0 0.0
        %2076 = vmatprep.subr.mxu0 0.0
        %2077 = vmatpush1.xpose.msra.mxu0 0.0
        %2078 = vmatprep.subr.mxu0 0.0
        %2079 = vmatpush1.xpose.msra.mxu0 0.0
        %2080 = vmatprep.subr.mxu0 0.0
        %2081 = vmatpush1.xpose.msra.mxu0 0.0
        %2082 = vmatprep.subr.mxu0 0.0
        %2083 = vmatpush1.xpose.msra.mxu0 0.0
        %2084 = vmatprep.subr.mxu0 0.0
        %2085 = vmatpush1.xpose.msra.mxu0 0.0
        %2086 = vmatprep.subr.mxu0 0.0
        %2087 = vmatpush1.xpose.msra.mxu0 0.0
        %2088 = vmatprep.subr.mxu0 0.0
        %2089 = vmatpush1.xpose.msra.mxu0 0.0
        %2090 = vmatprep.subr.mxu0 0.0
        %2091 = vmatpush1.xpose.msra.mxu0 0.0
        %2092 = vmatprep.subr.mxu0 0.0
        %2093 = vmatpush1.xpose.msra.mxu0 0.0
        %2094 = vmatprep.subr.mxu0 0.0
        %2095 = vmatpush1.xpose.msra.mxu0 0.0
        %2096 = vmatprep.subr.mxu0 0.0
        %2097 = vmatpush1.xpose.msra.mxu0 0.0
        %2098 = vmatprep.subr.mxu0 0.0
        %2099 = vmatpush1.xpose.msra.mxu0 0.0
        %2100 = vmatprep.subr.mxu0 0.0
        %2101 = vmatpush1.xpose.msra.mxu0 0.0
        %2102 = vmatprep.subr.mxu0 0.0
        %2103 = vmatpush1.xpose.msra.mxu0 0.0
        %2104 = vmatprep.subr.mxu0 0.0
        %2105 = vmatpush1.xpose.msra.mxu0 0.0
        %2106 = vmatprep.subr.mxu0 0.0
        %2107 = vmatpush1.xpose.msra.mxu0 0.0
        %2108 = vmatprep.subr.mxu0 0.0
        %2109 = vmatpush1.xpose.msra.mxu0 0.0
        %2110 = vmatprep.subr.mxu0 0.0
        %2111 = vmatpush1.xpose.msra.mxu0 0.0
        %2112 = vmatprep.mubr.f32.mxu0 0.0
        %2113 = vmatmul.mubr.f32.gmra.mrb[0].mxu0 %v1996
        %v2114 = vpop.f32.mrb[0].mxu0
        %v2115 = vadd.f32 0.0, %v2114
        %v2116 = vpop.f32.mrb[0].mxu0
        %2117 = vmatprep.mubr.f32.mxu0 0.0
        %2118 = vmatmul.mubr.f32.gmra.mrb[0].mxu0 %v2002
        %v2119 = vpop.f32.mrb[0].mxu0
        %v2120 = vadd.f32 0.0, %v2119
        %v2121 = vpop.f32.mrb[0].mxu0
        %2122 = vmatprep.mubr.f32.mxu0 0.0
        %2123 = vmatmul.mubr.f32.gmra.mrb[0].mxu0 %v2008
        %v2124 = vpop.f32.mrb[0].mxu0
        %v2125 = vadd.f32 0.0, %v2124
        %v2126 = vpop.f32.mrb[0].mxu0
        %2127 = vmatprep.mubr.f32.mxu0 0.0
        %2128 = vmatmul.mubr.f32.gmra.mrb[0].mxu0 %v2014
        %v2129 = vpop.f32.mrb[0].mxu0
        %v2130 = vadd.f32 0.0, %v2129
        %v2131 = vpop.f32.mrb[0].mxu0
        %2132 = vmatprep.mubr.f32.mxu0 0.0
        %2133 = vmatmul.mubr.f32.gmra.mrb[0].mxu0 %v2020
        %v2134 = vpop.f32.mrb[0].mxu0
        %v2135 = vadd.f32 0.0, %v2134
        %v2136 = vpop.f32.mrb[0].mxu0
        %2137 = vmatprep.mubr.f32.mxu0 0.0
        %2138 = vmatmul.mubr.f32.gmra.mrb[0].mxu0 %v2026
        %v2139 = vpop.f32.mrb[0].mxu0
        %v2140 = vadd.f32 0.0, %v2139
        %v2141 = vpop.f32.mrb[0].mxu0
        %2142 = vmatprep.mubr.f32.mxu0 0.0
        %2143 = vmatmul.mubr.f32.gmra.mrb[0].mxu0 %v2032
        %v2144 = vpop.f32.mrb[0].mxu0
        %v2145 = vadd.f32 0.0, %v2144
        %v2146 = vpop.f32.mrb[0].mxu0
        %2147 = vmatprep.mubr.f32.mxu0 0.0
        %2148 = vmatmul.mubr.f32.gmra.mrb[0].mxu0 %v2038
        %v2149 = vpop.f32.mrb[0].mxu0
        %v2150 = vadd.f32 0.0, %v2149
        %v2151 = vpop.f32.mrb[0].mxu0
        %2152 = vmatprep.mubr.f32.mxu0 0.0
        %2153 = vmatmul.mubr.f32.gmra.mrb[0].mxu0 %v2044
        %v2154 = vpop.f32.mrb[0].mxu0
        %v2155 = vadd.f32 0.0, %v2154
        %v2156 = vpop.f32.mrb[0].mxu0
        %2157 = vdwg.mxu0
        %v2158 = vmul.f32 %v2115, 0.16666667
        %v2159 = vmul.f32 %v2120, 0.16666667
        %v2160 = vmul.f32 %v2125, 0.16666667
        %v2161 = vmul.f32 %v2130, 0.16666667
        %v2162 = vmul.f32 %v2135, 0.16666667
        %v2163 = vmul.f32 %v2140, 0.16666667
        %v2164 = vmul.f32 %v2145, 0.16666667
        %v2165 = vmul.f32 %v2150, 0.16666667
        %v2166 = vmul.f32 %v2155, 0.16666667
        %vm2167 = vcmask 531456
        %v2168 = vsel %vm2167, %v2158, -inf
        %2169 = vmax.xlane.f32.xlu0 %v2168
        %v2170 = vpop.xlane.xlu0 %2169
        %v2171 = vsel %vm2167, %v2159, -inf
        %2172 = vmax.xlane.f32.xlu0 %v2171
        %v2173 = vpop.xlane.xlu0 %2172
        %v2174 = vsel %vm2167, %v2160, -inf
        %2175 = vmax.xlane.f32.xlu0 %v2174
        %v2176 = vpop.xlane.xlu0 %2175
        %v2177 = vsel %vm2167, %v2161, -inf
        %2178 = vmax.xlane.f32.xlu0 %v2177
        %v2179 = vpop.xlane.xlu0 %2178
        %v2180 = vsel %vm2167, %v2162, -inf
        %2181 = vmax.xlane.f32.xlu0 %v2180
        %v2182 = vpop.xlane.xlu0 %2181
        %v2183 = vsel %vm2167, %v2163, -inf
        %2184 = vmax.xlane.f32.xlu0 %v2183
        %v2185 = vpop.xlane.xlu0 %2184
        %v2186 = vsel %vm2167, %v2164, -inf
        %2187 = vmax.xlane.f32.xlu0 %v2186
        %v2188 = vpop.xlane.xlu0 %2187
        %v2189 = vsel %vm2167, %v2165, -inf
        %2190 = vmax.xlane.f32.xlu0 %v2189
        %v2191 = vpop.xlane.xlu0 %2190
        %vm2192 = vcmask 524288
        %v2193 = vsel %vm2192, %v2166, -inf
        %2194 = vmax.xlane.f32.xlu0 %v2193
        %v2195 = vpop.xlane.xlu0 %2194
        %v2196 = vsub.f32 %v2158, %v2170
        %v2197 = vsub.f32 %v2159, %v2173
        %v2198 = vsub.f32 %v2160, %v2176
        %v2199 = vsub.f32 %v2161, %v2179
        %v2200 = vsub.f32 %v2162, %v2182
        %v2201 = vsub.f32 %v2163, %v2185
        %v2202 = vsub.f32 %v2164, %v2188
        %v2203 = vsub.f32 %v2165, %v2191
        %v2204 = vsub.f32 %v2166, %v2195
        %v2205 = vmul.f32 %v2196, 1.442695
        %v2206 = vpow.pop %v2205
        %v2207 = vmul.f32 %v2197, 1.442695
        %v2208 = vpow.pop %v2207
        %v2209 = vmul.f32 %v2198, 1.442695
        %v2210 = vpow.pop %v2209
        %v2211 = vmul.f32 %v2199, 1.442695
        %v2212 = vpow.pop %v2211
        %v2213 = vmul.f32 %v2200, 1.442695
        %v2214 = vpow.pop %v2213
        %v2215 = vmul.f32 %v2201, 1.442695
        %v2216 = vpow.pop %v2215
        %v2217 = vmul.f32 %v2202, 1.442695
        %v2218 = vpow.pop %v2217
        %v2219 = vmul.f32 %v2203, 1.442695
        %v2220 = vpow.pop %v2219
        %v2221 = vmul.f32 %v2204, 1.442695
        %v2222 = vpow.pop %v2221
        %v2223 = vsel %vm2167, %v2206, 0.0
        %2224 = vadd.xlane.f32.xlu0 %v2223
        %v2225 = vpop.xlane.xlu0 %2224
        %v2226 = vsel %vm2167, %v2208, 0.0
        %2227 = vadd.xlane.f32.xlu0 %v2226
        %v2228 = vpop.xlane.xlu0 %2227
        %v2229 = vsel %vm2167, %v2210, 0.0
        %2230 = vadd.xlane.f32.xlu0 %v2229
        %v2231 = vpop.xlane.xlu0 %2230
        %v2232 = vsel %vm2167, %v2212, 0.0
        %2233 = vadd.xlane.f32.xlu0 %v2232
        %v2234 = vpop.xlane.xlu0 %2233
        %v2235 = vsel %vm2167, %v2214, 0.0
        %2236 = vadd.xlane.f32.xlu0 %v2235
        %v2237 = vpop.xlane.xlu0 %2236
        %v2238 = vsel %vm2167, %v2216, 0.0
        %2239 = vadd.xlane.f32.xlu0 %v2238
        %v2240 = vpop.xlane.xlu0 %2239
        %v2241 = vsel %vm2167, %v2218, 0.0
        %2242 = vadd.xlane.f32.xlu0 %v2241
        %v2243 = vpop.xlane.xlu0 %2242
        %v2244 = vsel %vm2167, %v2220, 0.0
        %2245 = vadd.xlane.f32.xlu0 %v2244
        %v2246 = vpop.xlane.xlu0 %2245
        %v2247 = vsel %vm2192, %v2222, 0.0
        %2248 = vadd.xlane.f32.xlu0 %v2247
        %v2249 = vpop.xlane.xlu0 %2248
        %v2250 = vrcp.pop %v2225
        %v2251 = vmul.f32 %v2206, %v2250
        %v2252 = vrcp.pop %v2228
        %v2253 = vmul.f32 %v2208, %v2252
        %v2254 = vrcp.pop %v2231
        %v2255 = vmul.f32 %v2210, %v2254
        %v2256 = vrcp.pop %v2234
        %v2257 = vmul.f32 %v2212, %v2256
        %v2258 = vrcp.pop %v2237
        %v2259 = vmul.f32 %v2214, %v2258
        %v2260 = vrcp.pop %v2240
        %v2261 = vmul.f32 %v2216, %v2260
        %v2262 = vrcp.pop %v2243
        %v2263 = vmul.f32 %v2218, %v2262
        %v2264 = vrcp.pop %v2246
        %v2265 = vmul.f32 %v2220, %v2264
        %v2266 = vrcp.pop %v2249
        %v2267 = vmul.f32 %v2222, %v2266
        %2269 = vrot.lane.b32.xlu0 %v2251, 127
        %v2270 = vpop.permute.xlu0 %2269
        %vm2272 = vcmask 516096
        %2273 = vst.msk [vmem:[%s581] sm:$0x1] %vm2272, %v2270
        %v2274 = vld [vmem:[%s12] sm:$0x1]
        %v2276 = vsel %vm603, %v2274, 0
        %2278 = vmatprep.subr.mxu0 0.0
        %2279 = vmatpush1.xpose.msra.mxu0 %v1897
        %2280 = vmatprep.subr.mxu0 0.0
        %2281 = vmatpush1.xpose.msra.mxu0 %v1900
        %2282 = vmatprep.subr.mxu0 0.0
        %2283 = vmatpush1.xpose.msra.mxu0 %v1903
        %2284 = vmatprep.subr.mxu0 0.0
        %2285 = vmatpush1.xpose.msra.mxu0 %v1906
        %2286 = vmatprep.subr.mxu0 0.0
        %2287 = vmatpush1.xpose.msra.mxu0 %v1909
        %2288 = vmatprep.subr.mxu0 0.0
        %2289 = vmatpush1.xpose.msra.mxu0 %v1912
        %2290 = vmatprep.subr.mxu0 0.0
        %2291 = vmatpush1.xpose.msra.mxu0 %v1915
        %2292 = vmatprep.subr.mxu0 0.0
        %2293 = vmatpush1.xpose.msra.mxu0 %v1918
        %2294 = vmatprep.subr.mxu0 0.0
        %2295 = vmatpush1.xpose.msra.mxu0 %v1921
        %2296 = vmatprep.subr.mxu0 0.0
        %2297 = vmatpush1.xpose.msra.mxu0 0.0
        %2298 = vmatprep.subr.mxu0 0.0
        %2299 = vmatpush1.xpose.msra.mxu0 0.0
        %2300 = vmatprep.subr.mxu0 0.0
        %2301 = vmatpush1.xpose.msra.mxu0 0.0
        %2302 = vmatprep.subr.mxu0 0.0
        %2303 = vmatpush1.xpose.msra.mxu0 0.0
        %2304 = vmatprep.subr.mxu0 0.0
        %2305 = vmatpush1.xpose.msra.mxu0 0.0
        %2306 = vmatprep.subr.mxu0 0.0
        %2307 = vmatpush1.xpose.msra.mxu0 0.0
        %2308 = vmatprep.subr.mxu0 0.0
        %2309 = vmatpush1.xpose.msra.mxu0 0.0
        %2310 = vmatprep.subr.mxu0 0.0
        %2311 = vmatpush1.xpose.msra.mxu0 0.0
        %2312 = vmatprep.subr.mxu0 0.0
        %2313 = vmatpush1.xpose.msra.mxu0 0.0
        %2314 = vmatprep.subr.mxu0 0.0
        %2315 = vmatpush1.xpose.msra.mxu0 0.0
        %2316 = vmatprep.subr.mxu0 0.0
        %2317 = vmatpush1.xpose.msra.mxu0 0.0
        %2318 = vmatprep.subr.mxu0 0.0
        %2319 = vmatpush1.xpose.msra.mxu0 0.0
        %2320 = vmatprep.subr.mxu0 0.0
        %2321 = vmatpush1.xpose.msra.mxu0 0.0
        %2322 = vmatprep.subr.mxu0 0.0
        %2323 = vmatpush1.xpose.msra.mxu0 0.0
        %2324 = vmatprep.subr.mxu0 0.0
        %2325 = vmatpush1.xpose.msra.mxu0 0.0
        %2326 = vmatprep.subr.mxu0 0.0
        %2327 = vmatpush1.xpose.msra.mxu0 0.0
        %2328 = vmatprep.subr.mxu0 0.0
        %2329 = vmatpush1.xpose.msra.mxu0 0.0
        %2330 = vmatprep.subr.mxu0 0.0
        %2331 = vmatpush1.xpose.msra.mxu0 0.0
        %2332 = vmatprep.subr.mxu0 0.0
        %2333 = vmatpush1.xpose.msra.mxu0 0.0
        %2334 = vmatprep.subr.mxu0 0.0
        %2335 = vmatpush1.xpose.msra.mxu0 0.0
        %2336 = vmatprep.subr.mxu0 0.0
        %2337 = vmatpush1.xpose.msra.mxu0 0.0
        %2338 = vmatprep.subr.mxu0 0.0
        %2339 = vmatpush1.xpose.msra.mxu0 0.0
        %2340 = vmatprep.subr.mxu0 0.0
        %2341 = vmatpush1.xpose.msra.mxu0 0.0
        %2342 = vmatprep.mubr.f32.mxu0 0.0
        %2343 = vmatmul.mubr.f32.gmra.mrb[0].mxu0 %v2276
        %v2344 = vpop.f32.mrb[0].mxu0
        %v2345 = vadd.f32 0.0, %v2344
        %v2346 = vpop.f32.mrb[0].mxu0
        %2347 = vdwg.mxu0
        %v2349 = vsel %vm2167, %v2345, 0
        %v2351 = vsel %vm2167, %v2251, 0
        %v2354 = vsel %vm2167, %v2253, 0
        %v2357 = vsel %vm2167, %v2255, 0
        %v2360 = vsel %vm2167, %v2257, 0
        %v2363 = vsel %vm2167, %v2259, 0
        %v2366 = vsel %vm2167, %v2261, 0
        %v2369 = vsel %vm2167, %v2263, 0
        %v2372 = vsel %vm2167, %v2265, 0
        %v2375 = vsel %vm2167, %v2267, 0
        %2377 = vmatprep.subr.mxu0 0.0
        %2378 = vmatpush1.xpose.msra.mxu0 %v2351
        %2379 = vmatprep.subr.mxu0 0.0
        %2380 = vmatpush1.xpose.msra.mxu0 %v2354
        %2381 = vmatprep.subr.mxu0 0.0
        %2382 = vmatpush1.xpose.msra.mxu0 %v2357
        %2383 = vmatprep.subr.mxu0 0.0
        %2384 = vmatpush1.xpose.msra.mxu0 %v2360
        %2385 = vmatprep.subr.mxu0 0.0
        %2386 = vmatpush1.xpose.msra.mxu0 %v2363
        %2387 = vmatprep.subr.mxu0 0.0
        %2388 = vmatpush1.xpose.msra.mxu0 %v2366
        %2389 = vmatprep.subr.mxu0 0.0
        %2390 = vmatpush1.xpose.msra.mxu0 %v2369
        %2391 = vmatprep.subr.mxu0 0.0
        %2392 = vmatpush1.xpose.msra.mxu0 %v2372
        %2393 = vmatprep.subr.mxu0 0.0
        %2394 = vmatpush1.xpose.msra.mxu0 %v2375
        %2395 = vmatprep.subr.mxu0 0.0
        %2396 = vmatpush1.xpose.msra.mxu0 0.0
        %2397 = vmatprep.subr.mxu0 0.0
        %2398 = vmatpush1.xpose.msra.mxu0 0.0
        %2399 = vmatprep.subr.mxu0 0.0
        %2400 = vmatpush1.xpose.msra.mxu0 0.0
        %2401 = vmatprep.subr.mxu0 0.0
        %2402 = vmatpush1.xpose.msra.mxu0 0.0
        %2403 = vmatprep.subr.mxu0 0.0
        %2404 = vmatpush1.xpose.msra.mxu0 0.0
        %2405 = vmatprep.subr.mxu0 0.0
        %2406 = vmatpush1.xpose.msra.mxu0 0.0
        %2407 = vmatprep.subr.mxu0 0.0
        %2408 = vmatpush1.xpose.msra.mxu0 0.0
        %2409 = vmatprep.subr.mxu0 0.0
        %2410 = vmatpush1.xpose.msra.mxu0 0.0
        %2411 = vmatprep.subr.mxu0 0.0
        %2412 = vmatpush1.xpose.msra.mxu0 0.0
        %2413 = vmatprep.subr.mxu0 0.0
        %2414 = vmatpush1.xpose.msra.mxu0 0.0
        %2415 = vmatprep.subr.mxu0 0.0
        %2416 = vmatpush1.xpose.msra.mxu0 0.0
        %2417 = vmatprep.subr.mxu0 0.0
        %2418 = vmatpush1.xpose.msra.mxu0 0.0
        %2419 = vmatprep.subr.mxu0 0.0
        %2420 = vmatpush1.xpose.msra.mxu0 0.0
        %2421 = vmatprep.subr.mxu0 0.0
        %2422 = vmatpush1.xpose.msra.mxu0 0.0
        %2423 = vmatprep.subr.mxu0 0.0
        %2424 = vmatpush1.xpose.msra.mxu0 0.0
        %2425 = vmatprep.subr.mxu0 0.0
        %2426 = vmatpush1.xpose.msra.mxu0 0.0
        %2427 = vmatprep.subr.mxu0 0.0
        %2428 = vmatpush1.xpose.msra.mxu0 0.0
        %2429 = vmatprep.subr.mxu0 0.0
        %2430 = vmatpush1.xpose.msra.mxu0 0.0
        %2431 = vmatprep.subr.mxu0 0.0
        %2432 = vmatpush1.xpose.msra.mxu0 0.0
        %2433 = vmatprep.subr.mxu0 0.0
        %2434 = vmatpush1.xpose.msra.mxu0 0.0
        %2435 = vmatprep.subr.mxu0 0.0
        %2436 = vmatpush1.xpose.msra.mxu0 0.0
        %2437 = vmatprep.subr.mxu0 0.0
        %2438 = vmatpush1.xpose.msra.mxu0 0.0
        %2439 = vmatprep.subr.mxu0 0.0
        %2440 = vmatpush1.xpose.msra.mxu0 0.0
        %2441 = vmatprep.mubr.f32.mxu0 0.0
        %2442 = vmatmul.mubr.f32.gmra.mrb[0].mxu0 %v2349
        %v2443 = vpop.f32.mrb[0].mxu0
        %v2444 = vadd.f32 0.0, %v2443
        %v2445 = vpop.f32.mrb[0].mxu0
        %2446 = vdwg.mxu0
        %v2447 = vld [vmem:[%s1] sm:$0xff]
        %v2448 = vld [vmem:[%s1 + $0x8] sm:$0xff]
        %v2449 = vld [vmem:[%s1 + $0x10] sm:$0xff]
        %v2450 = vld [vmem:[%s1 + $0x18] sm:$0xff]
        %v2451 = vld [vmem:[%s1 + $0x20] sm:$0xf]
        %v2452 = vld [vmem:[%s2] sm:$0x1]
        %v2454 = vsel %vm603, %v2444, 0
        %v2457 = vsel %vm631, %v2451, 0
        %2459 = vmatprep.subr.mxu0 0.0
        %2460 = vmatpush1.msra.mxu0 %v2447
        %2461 = vmatprep.subr.mxu0 0.0
        %2462 = vmatpush1.msra.mxu0 %v2448
        %2463 = vmatprep.subr.mxu0 0.0
        %2464 = vmatpush1.msra.mxu0 %v2449
        %2465 = vmatprep.subr.mxu0 0.0
        %2466 = vmatpush1.msra.mxu0 %v2450
        %2467 = vmatprep.subr.mxu0 0.0
        %2468 = vmatpush1.msra.mxu0 %v2457
        %2469 = vmatprep.subr.mxu0 0.0
        %2470 = vmatpush1.msra.mxu0 0.0
        %2471 = vmatprep.subr.mxu0 0.0
        %2472 = vmatpush1.msra.mxu0 0.0
        %2473 = vmatprep.subr.mxu0 0.0
        %2474 = vmatpush1.msra.mxu0 0.0
        %2475 = vmatprep.subr.mxu0 0.0
        %2476 = vmatpush1.msra.mxu0 0.0
        %2477 = vmatprep.subr.mxu0 0.0
        %2478 = vmatpush1.msra.mxu0 0.0
        %2479 = vmatprep.subr.mxu0 0.0
        %2480 = vmatpush1.msra.mxu0 0.0
        %2481 = vmatprep.subr.mxu0 0.0
        %2482 = vmatpush1.msra.mxu0 0.0
        %2483 = vmatprep.subr.mxu0 0.0
        %2484 = vmatpush1.msra.mxu0 0.0
        %2485 = vmatprep.subr.mxu0 0.0
        %2486 = vmatpush1.msra.mxu0 0.0
        %2487 = vmatprep.subr.mxu0 0.0
        %2488 = vmatpush1.msra.mxu0 0.0
        %2489 = vmatprep.subr.mxu0 0.0
        %2490 = vmatpush1.msra.mxu0 0.0
        %2491 = vmatprep.subr.mxu0 0.0
        %2492 = vmatpush1.msra.mxu0 0.0
        %2493 = vmatprep.subr.mxu0 0.0
        %2494 = vmatpush1.msra.mxu0 0.0
        %2495 = vmatprep.subr.mxu0 0.0
        %2496 = vmatpush1.msra.mxu0 0.0
        %2497 = vmatprep.subr.mxu0 0.0
        %2498 = vmatpush1.msra.mxu0 0.0
        %2499 = vmatprep.subr.mxu0 0.0
        %2500 = vmatpush1.msra.mxu0 0.0
        %2501 = vmatprep.subr.mxu0 0.0
        %2502 = vmatpush1.msra.mxu0 0.0
        %2503 = vmatprep.subr.mxu0 0.0
        %2504 = vmatpush1.msra.mxu0 0.0
        %2505 = vmatprep.subr.mxu0 0.0
        %2506 = vmatpush1.msra.mxu0 0.0
        %2507 = vmatprep.subr.mxu0 0.0
        %2508 = vmatpush1.msra.mxu0 0.0
        %2509 = vmatprep.subr.mxu0 0.0
        %2510 = vmatpush1.msra.mxu0 0.0
        %2511 = vmatprep.subr.mxu0 0.0
        %2512 = vmatpush1.msra.mxu0 0.0
        %2513 = vmatprep.subr.mxu0 0.0
        %2514 = vmatpush1.msra.mxu0 0.0
        %2515 = vmatprep.subr.mxu0 0.0
        %2516 = vmatpush1.msra.mxu0 0.0
        %2517 = vmatprep.subr.mxu0 0.0
        %2518 = vmatpush1.msra.mxu0 0.0
        %2519 = vmatprep.subr.mxu0 0.0
        %2520 = vmatpush1.msra.mxu0 0.0
        %2521 = vmatprep.subr.mxu0 0.0
        %2522 = vmatpush1.msra.mxu0 0.0
        %2523 = vmatprep.mubr.f32.mxu0 0.0
        %2524 = vmatmul.mubr.f32.gmra.mrb[0].mxu0 %v2454
        %v2525 = vpop.f32.mrb[0].mxu0
        %v2526 = vadd.f32 %v2452, %v2525
        %v2527 = vpop.f32.mrb[0].mxu0
        %2528 = vdwg.mxu0
        %v2529 = vadd.f32 %v2526, %v2526
        %v2530 = vld [vmem:[%s3] sm:$0x1]
        %v2531 = vld [vmem:[%s4] sm:$0x1]
        %v2532 = vsel %vm780, %v2529, 0.0
        %2533 = vadd.xlane.f32.xlu0 %v2532
        %v2534 = vpop.xlane.xlu0 %2533
        %v2535 = vmul.f32 %v2534, %v784
        %v2536 = vsub.f32 %v2529, %v2535
        %v2537 = vmul.f32 %v2536, %v2536
        %v2538 = vsel %vm780, %v2537, 0.0
        %2539 = vadd.xlane.f32.xlu0 %v2538
        %v2540 = vpop.xlane.xlu0 %2539
        %v2541 = vmul.f32 %v2540, %v784
        %v2542 = vadd.f32 %v2541, 1e-06
        %v2543 = vrsqrt.pop %v2542
        %v2544 = vmul.f32 %v2536, %v2543
        %v2545 = vmul.f32 %v2544, %v2530
        %v2546 = vadd.f32 %v2545, %v2531
        %v2547 = vld [vmem:[%s5] sm:$0xff]
        %v2548 = vld [vmem:[%s5 + $0x8] sm:$0xff]
        %v2549 = vld [vmem:[%s5 + $0x10] sm:$0xff]
        %v2550 = vld [vmem:[%s5 + $0x18] sm:$0xff]
        %v2551 = vld [vmem:[%s5 + $0x20] sm:$0xff]
        %v2552 = vld [vmem:[%s5 + $0x28] sm:$0xff]
        %v2553 = vld [vmem:[%s5 + $0x30] sm:$0xff]
        %v2554 = vld [vmem:[%s5 + $0x38] sm:$0xff]
        %v2555 = vld [vmem:[%s5 + $0x40] sm:$0xf]
        %v2556 = vld [vmem:[%s5 + $0x48] sm:$0xf]
        %v2557 = vld [vmem:[%s6] sm:$0x3]
        %v2559 = vlaneseq
        %v2560 = vshrl.u32 %v2559, 7
        %v2561 = vsub.s32 0, %v2560
        %v2562 = vrot.slane %v2557, %v2561
        %v2563 = vlaneseq
        %v2564 = vshrl.u32 %v2563, 7
        %v2565 = vsub.s32 1, %v2564
        %v2566 = vrot.slane %v2557, %v2565
        %v2570 = vsel %vm603, %v2546, 0
        %v2573 = vsel %vm631, %v2555, 0
        %v2576 = vsel %vm631, %v2556, 0
        %2578 = vmatprep.subr.mxu0 %v2548
        %2579 = vmatpush1.msra.mxu0 %v2547
        %2580 = vmatprep.subr.mxu0 %v2550
        %2581 = vmatpush1.msra.mxu0 %v2549
        %2582 = vmatprep.subr.mxu0 %v2552
        %2583 = vmatpush1.msra.mxu0 %v2551
        %2584 = vmatprep.subr.mxu0 %v2554
        %2585 = vmatpush1.msra.mxu0 %v2553
        %2586 = vmatprep.subr.mxu0 %v2576
        %2587 = vmatpush1.msra.mxu0 %v2573
        %2588 = vmatprep.subr.mxu0 0.0
        %2589 = vmatpush1.msra.mxu0 0.0
        %2590 = vmatprep.subr.mxu0 0.0
        %2591 = vmatpush1.msra.mxu0 0.0
        %2592 = vmatprep.subr.mxu0 0.0
        %2593 = vmatpush1.msra.mxu0 0.0
        %2594 = vmatprep.subr.mxu0 0.0
        %2595 = vmatpush1.msra.mxu0 0.0
        %2596 = vmatprep.subr.mxu0 0.0
        %2597 = vmatpush1.msra.mxu0 0.0
        %2598 = vmatprep.subr.mxu0 0.0
        %2599 = vmatpush1.msra.mxu0 0.0
        %2600 = vmatprep.subr.mxu0 0.0
        %2601 = vmatpush1.msra.mxu0 0.0
        %2602 = vmatprep.subr.mxu0 0.0
        %2603 = vmatpush1.msra.mxu0 0.0
        %2604 = vmatprep.subr.mxu0 0.0
        %2605 = vmatpush1.msra.mxu0 0.0
        %2606 = vmatprep.subr.mxu0 0.0
        %2607 = vmatpush1.msra.mxu0 0.0
        %2608 = vmatprep.subr.mxu0 0.0
        %2609 = vmatpush1.msra.mxu0 0.0
        %2610 = vmatprep.subr.mxu0 0.0
        %2611 = vmatpush1.msra.mxu0 0.0
        %2612 = vmatprep.subr.mxu0 0.0
        %2613 = vmatpush1.msra.mxu0 0.0
        %2614 = vmatprep.subr.mxu0 0.0
        %2615 = vmatpush1.msra.mxu0 0.0
        %2616 = vmatprep.subr.mxu0 0.0
        %2617 = vmatpush1.msra.mxu0 0.0
        %2618 = vmatprep.subr.mxu0 0.0
        %2619 = vmatpush1.msra.mxu0 0.0
        %2620 = vmatprep.subr.mxu0 0.0
        %2621 = vmatpush1.msra.mxu0 0.0
        %2622 = vmatprep.subr.mxu0 0.0
        %2623 = vmatpush1.msra.mxu0 0.0
        %2624 = vmatprep.subr.mxu0 0.0
        %2625 = vmatpush1.msra.mxu0 0.0
        %2626 = vmatprep.subr.mxu0 0.0
        %2627 = vmatpush1.msra.mxu0 0.0
        %2628 = vmatprep.subr.mxu0 0.0
        %2629 = vmatpush1.msra.mxu0 0.0
        %2630 = vmatprep.subr.mxu0 0.0
        %2631 = vmatpush1.msra.mxu0 0.0
        %2632 = vmatprep.subr.mxu0 0.0
        %2633 = vmatpush1.msra.mxu0 0.0
        %2634 = vmatprep.subr.mxu0 0.0
        %2635 = vmatpush1.msra.mxu0 0.0
        %2636 = vmatprep.subr.mxu0 0.0
        %2637 = vmatpush1.msra.mxu0 0.0
        %2638 = vmatprep.subr.mxu0 0.0
        %2639 = vmatpush1.msra.mxu0 0.0
        %2640 = vmatprep.subr.mxu0 0.0
        %2641 = vmatpush1.msra.mxu0 0.0
        %2642 = vmatprep.mubr.f32.mxu0 0.0
        %2643 = vmatmul.mubr.f32.gmra.mrb[0].mxu0 %v2570
        %v2644 = vpop.f32.mrb[0].mxu0
        %v2645 = vadd.f32 %v2562, %v2644
        %v2646 = vpop.f32.mrb[0].mxu0
        %v2647 = vadd.f32 %v2566, %v2646
        %2648 = vdwg.mxu0
        %v2649 = vmul.f32 %v2645, 0.5
        %v2650 = vmul.f32 %v2647, 0.5
        %v2651 = vmul.f32 %v2645, 0.70710677
        %v2652 = vmul.f32 %v2647, 0.70710677
        %vm2653 = vcmp.lt.f32.partialorder %v2651, 0.0
        %vm2654 = vcmp.lt.f32.partialorder %v2652, 0.0
        %v2655 = vsel %vm2653, -1.0, 1.0
        %v2656 = vsel %vm2654, -1.0, 1.0
        %v2657 = vand.u32 2147483647, %v2651
        %v2658 = vand.u32 2147483647, %v2652
        %v2659 = vmul.f32 %v2657, 0.3275911
        %v2660 = vmul.f32 %v2658, 0.3275911
        %v2661 = vadd.f32 %v2659, 1.0
        %v2662 = vadd.f32 %v2660, 1.0
        %v2663 = vrcp.pop %v2661
        %v2664 = vmul.f32 1.0, %v2663
        %v2665 = vrcp.pop %v2662
        %v2666 = vmul.f32 1.0, %v2665
        %v2667 = vmul.f32 %v2664, 1.0614054
        %v2668 = vmul.f32 %v2666, 1.0614054
        %v2669 = vadd.f32 %v2667, -1.4531521
        %v2670 = vadd.f32 %v2668, -1.4531521
        %v2671 = vmul.f32 %v2669, %v2664
        %v2672 = vmul.f32 %v2670, %v2666
        %v2673 = vadd.f32 %v2671, 1.4214138
        %v2674 = vadd.f32 %v2672, 1.4214138
        %v2675 = vmul.f32 %v2673, %v2664
        %v2676 = vmul.f32 %v2674, %v2666
        %v2677 = vadd.f32 %v2675, -0.28449672
        %v2678 = vadd.f32 %v2676, -0.28449672
        %v2679 = vmul.f32 %v2677, %v2664
        %v2680 = vmul.f32 %v2678, %v2666
        %v2681 = vadd.f32 %v2679, 0.2548296
        %v2682 = vadd.f32 %v2680, 0.2548296
        %v2683 = vmul.f32 %v2681, %v2664
        %v2684 = vmul.f32 %v2682, %v2666
        %v2685 = vsub.f32 0.0, %v2657
        %v2686 = vsub.f32 0.0, %v2658
        %v2687 = vmul.f32 %v2685, %v2657
        %v2688 = vmul.f32 %v2686, %v2658
        %v2689 = vmul.f32 %v2687, 1.442695
        %v2690 = vpow.pop %v2689
        %v2691 = vmul.f32 %v2688, 1.442695
        %v2692 = vpow.pop %v2691
        %v2693 = vmul.f32 %v2683, %v2690
        %v2694 = vmul.f32 %v2684, %v2692
        %v2695 = vsub.f32 1.0, %v2693
        %v2696 = vsub.f32 1.0, %v2694
        %v2697 = vmul.f32 %v2655, %v2695
        %v2698 = vmul.f32 %v2656, %v2696
        %v2699 = vadd.f32 %v2697, 1.0
        %v2700 = vadd.f32 %v2698, 1.0
        %v2701 = vmul.f32 %v2649, %v2699
        %v2702 = vmul.f32 %v2650, %v2700
        %v2703 = vld [vmem:[%s7] sm:$0xff]
        %v2704 = vld [vmem:[%s7 + $0x8] sm:$0xff]
        %v2705 = vld [vmem:[%s7 + $0x10] sm:$0xff]
        %v2706 = vld [vmem:[%s7 + $0x18] sm:$0xff]
        %v2707 = vld [vmem:[%s7 + $0x20] sm:$0xff]
        %v2708 = vld [vmem:[%s7 + $0x28] sm:$0xff]
        %v2709 = vld [vmem:[%s7 + $0x30] sm:$0xff]
        %v2710 = vld [vmem:[%s7 + $0x38] sm:$0xff]
        %v2711 = vld [vmem:[%s7 + $0x40] sm:$0xff]
        %v2712 = vld [vmem:[%s7 + $0x48] sm:$0xff]
        %v2713 = vld [vmem:[%s7 + $0x50] sm:$0xff]
        %v2714 = vld [vmem:[%s7 + $0x58] sm:$0xff]
        %v2715 = vld [vmem:[%s7 + $0x60] sm:$0xff]
        %v2716 = vld [vmem:[%s7 + $0x68] sm:$0xff]
        %v2717 = vld [vmem:[%s7 + $0x70] sm:$0xff]
        %v2718 = vld [vmem:[%s7 + $0x78] sm:$0xff]
        %v2719 = vld [vmem:[%s7 + $0x80] sm:$0xff]
        %v2720 = vld [vmem:[%s7 + $0x88] sm:$0xff]
        %v2721 = vld [vmem:[%s8] sm:$0x1]
        %v2723 = vsel %vm1590, %v2702, 0
        %2725 = vmatprep.subr.mxu0 0.0
        %2726 = vmatpush1.msra.mxu0 %v2703
        %2727 = vmatprep.subr.mxu0 0.0
        %2728 = vmatpush1.msra.mxu0 %v2704
        %2729 = vmatprep.subr.mxu0 0.0
        %2730 = vmatpush1.msra.mxu0 %v2705
        %2731 = vmatprep.subr.mxu0 0.0
        %2732 = vmatpush1.msra.mxu0 %v2706
        %2733 = vmatprep.subr.mxu0 0.0
        %2734 = vmatpush1.msra.mxu0 %v2707
        %2735 = vmatprep.subr.mxu0 0.0
        %2736 = vmatpush1.msra.mxu0 %v2708
        %2737 = vmatprep.subr.mxu0 0.0
        %2738 = vmatpush1.msra.mxu0 %v2709
        %2739 = vmatprep.subr.mxu0 0.0
        %2740 = vmatpush1.msra.mxu0 %v2710
        %2741 = vmatprep.subr.mxu0 0.0
        %2742 = vmatpush1.msra.mxu0 %v2711
        %2743 = vmatprep.subr.mxu0 0.0
        %2744 = vmatpush1.msra.mxu0 %v2712
        %2745 = vmatprep.subr.mxu0 0.0
        %2746 = vmatpush1.msra.mxu0 %v2713
        %2747 = vmatprep.subr.mxu0 0.0
        %2748 = vmatpush1.msra.mxu0 %v2714
        %2749 = vmatprep.subr.mxu0 0.0
        %2750 = vmatpush1.msra.mxu0 %v2715
        %2751 = vmatprep.subr.mxu0 0.0
        %2752 = vmatpush1.msra.mxu0 %v2716
        %2753 = vmatprep.subr.mxu0 0.0
        %2754 = vmatpush1.msra.mxu0 %v2717
        %2755 = vmatprep.subr.mxu0 0.0
        %2756 = vmatpush1.msra.mxu0 %v2718
        %2757 = vmatprep.subr.mxu0 0.0
        %2758 = vmatpush1.msra.mxu0 %v2719
        %2759 = vmatprep.subr.mxu0 0.0
        %2760 = vmatpush1.msra.mxu0 %v2720
        %2761 = vmatprep.subr.mxu0 0.0
        %2762 = vmatpush1.msra.mxu0 0.0
        %2763 = vmatprep.subr.mxu0 0.0
        %2764 = vmatpush1.msra.mxu0 0.0
        %2765 = vmatprep.subr.mxu0 0.0
        %2766 = vmatpush1.msra.mxu0 0.0
        %2767 = vmatprep.subr.mxu0 0.0
        %2768 = vmatpush1.msra.mxu0 0.0
        %2769 = vmatprep.subr.mxu0 0.0
        %2770 = vmatpush1.msra.mxu0 0.0
        %2771 = vmatprep.subr.mxu0 0.0
        %2772 = vmatpush1.msra.mxu0 0.0
        %2773 = vmatprep.subr.mxu0 0.0
        %2774 = vmatpush1.msra.mxu0 0.0
        %2775 = vmatprep.subr.mxu0 0.0
        %2776 = vmatpush1.msra.mxu0 0.0
        %2777 = vmatprep.subr.mxu0 0.0
        %2778 = vmatpush1.msra.mxu0 0.0
        %2779 = vmatprep.subr.mxu0 0.0
        %2780 = vmatpush1.msra.mxu0 0.0
        %2781 = vmatprep.subr.mxu0 0.0
        %2782 = vmatpush1.msra.mxu0 0.0
        %2783 = vmatprep.subr.mxu0 0.0
        %2784 = vmatpush1.msra.mxu0 0.0
        %2785 = vmatprep.subr.mxu0 0.0
        %2786 = vmatpush1.msra.mxu0 0.0
        %2787 = vmatprep.subr.mxu0 0.0
        %2788 = vmatpush1.msra.mxu0 0.0
        %2789 = vmatprep.mubr.f32.mxu0 %v2723
        %2790 = vmatmul.mubr.f32.gmra.mrb[0].mxu0 %v2701
        %v2791 = vpop.f32.mrb[0].mxu0
        %v2792 = vadd.f32 %v2721, %v2791
        %v2793 = vpop.f32.mrb[0].mxu0
        %2794 = vdwg.mxu0
        %v2795 = vadd.f32 %v2529, %v2792
        %v2796 = vld [vmem:[%s13] sm:$0x1]
        %v2797 = vld [vmem:[%s14] sm:$0x1]
        %v2798 = vsel %vm780, %v2795, 0.0
        %2799 = vadd.xlane.f32.xlu0 %v2798
        %v2800 = vpop.xlane.xlu0 %2799
        %v2801 = vmul.f32 %v2800, %v784
        %v2802 = vsub.f32 %v2795, %v2801
        %v2803 = vmul.f32 %v2802, %v2802
        %v2804 = vsel %vm780, %v2803, 0.0
        %2805 = vadd.xlane.f32.xlu0 %v2804
        %v2806 = vpop.xlane.xlu0 %2805
        %v2807 = vmul.f32 %v2806, %v784
        %v2808 = vadd.f32 %v2807, 1e-06
        %v2809 = vrsqrt.pop %v2808
        %v2810 = vmul.f32 %v2802, %v2809
        %v2811 = vmul.f32 %v2810, %v2796
        %v2812 = vadd.f32 %v2811, %v2797
        %v2813 = vld [vmem:[%s15] sm:$0xff]
        %v2814 = vld [vmem:[%s15 + $0x8] sm:$0xff]
        %v2815 = vld [vmem:[%s15 + $0x10] sm:$0xff]
        %v2816 = vld [vmem:[%s15 + $0x18] sm:$0xff]
        %v2817 = vld [vmem:[%s15 + $0x20] sm:$0xf]
        %v2818 = vld [vmem:[%s16] sm:$0x1]
        %v2820 = vsel %vm603, %v2812, 0
        %v2823 = vsel %vm631, %v2817, 0
        %2825 = vmatprep.subr.mxu0 0.0
        %2826 = vmatpush1.msra.mxu0 %v2813
        %2827 = vmatprep.subr.mxu0 0.0
        %2828 = vmatpush1.msra.mxu0 %v2814
        %2829 = vmatprep.subr.mxu0 0.0
        %2830 = vmatpush1.msra.mxu0 %v2815
        %2831 = vmatprep.subr.mxu0 0.0
        %2832 = vmatpush1.msra.mxu0 %v2816
        %2833 = vmatprep.subr.mxu0 0.0
        %2834 = vmatpush1.msra.mxu0 %v2823
        %2835 = vmatprep.subr.mxu0 0.0
        %2836 = vmatpush1.msra.mxu0 0.0
        %2837 = vmatprep.subr.mxu0 0.0
        %2838 = vmatpush1.msra.mxu0 0.0
        %2839 = vmatprep.subr.mxu0 0.0
        %2840 = vmatpush1.msra.mxu0 0.0
        %2841 = vmatprep.subr.mxu0 0.0
        %2842 = vmatpush1.msra.mxu0 0.0
        %2843 = vmatprep.subr.mxu0 0.0
        %2844 = vmatpush1.msra.mxu0 0.0
        %2845 = vmatprep.subr.mxu0 0.0
        %2846 = vmatpush1.msra.mxu0 0.0
        %2847 = vmatprep.subr.mxu0 0.0
        %2848 = vmatpush1.msra.mxu0 0.0
        %2849 = vmatprep.subr.mxu0 0.0
        %2850 = vmatpush1.msra.mxu0 0.0
        %2851 = vmatprep.subr.mxu0 0.0
        %2852 = vmatpush1.msra.mxu0 0.0
        %2853 = vmatprep.subr.mxu0 0.0
        %2854 = vmatpush1.msra.mxu0 0.0
        %2855 = vmatprep.subr.mxu0 0.0
        %2856 = vmatpush1.msra.mxu0 0.0
        %2857 = vmatprep.subr.mxu0 0.0
        %2858 = vmatpush1.msra.mxu0 0.0
        %2859 = vmatprep.subr.mxu0 0.0
        %2860 = vmatpush1.msra.mxu0 0.0
        %2861 = vmatprep.subr.mxu0 0.0
        %2862 = vmatpush1.msra.mxu0 0.0
        %2863 = vmatprep.subr.mxu0 0.0
        %2864 = vmatpush1.msra.mxu0 0.0
        %2865 = vmatprep.subr.mxu0 0.0
        %2866 = vmatpush1.msra.mxu0 0.0
        %2867 = vmatprep.subr.mxu0 0.0
        %2868 = vmatpush1.msra.mxu0 0.0
        %2869 = vmatprep.subr.mxu0 0.0
        %2870 = vmatpush1.msra.mxu0 0.0
        %2871 = vmatprep.subr.mxu0 0.0
        %2872 = vmatpush1.msra.mxu0 0.0
        %2873 = vmatprep.subr.mxu0 0.0
        %2874 = vmatpush1.msra.mxu0 0.0
        %2875 = vmatprep.subr.mxu0 0.0
        %2876 = vmatpush1.msra.mxu0 0.0
        %2877 = vmatprep.subr.mxu0 0.0
        %2878 = vmatpush1.msra.mxu0 0.0
        %2879 = vmatprep.subr.mxu0 0.0
        %2880 = vmatpush1.msra.mxu0 0.0
        %2881 = vmatprep.subr.mxu0 0.0
        %2882 = vmatpush1.msra.mxu0 0.0
        %2883 = vmatprep.subr.mxu0 0.0
        %2884 = vmatpush1.msra.mxu0 0.0
        %2885 = vmatprep.subr.mxu0 0.0
        %2886 = vmatpush1.msra.mxu0 0.0
        %2887 = vmatprep.subr.mxu0 0.0
        %2888 = vmatpush1.msra.mxu0 0.0
        %2889 = vmatprep.mubr.f32.mxu0 0.0
        %2890 = vmatmul.mubr.f32.gmra.mrb[0].mxu0 %v2820
        %v2891 = vpop.f32.mrb[0].mxu0
        %v2892 = vadd.f32 %v2818, %v2891
        %v2893 = vpop.f32.mrb[0].mxu0
        %2894 = vdwg.mxu0
        %v2895 = vtanh.pop %v2892
        %vm2896 = vcmask 122880
        %2897 = vst.msk [vmem:[%s573] sm:$0x1] %vm2896, %v2895
        %p2898 = scmp.lt.s32.totalorder %s33, 1
        %s2899 = scalar_select %p2898, %s33, 1
        %s2900 = scalar_lea.vmem %s17, %s2899
        %s2901 = sand.u32 %s429, 1
        %s2902 = scalar_lea.sflag [#allocation3], %s2901
        %s2903 = sand.u32 %s429, 1
        %s2904 = scalar_lea.vmem [#allocation2], %s2903
        // Predicated region
        $region89: #{vit_forward.3} parent=87 // pred_check
          %p2905 = pneg %p413
        $region90: #{vit_forward.3} parent=87 // pred_check_branch
          %2907 = sbr.rel (%p2905) target = $region92
        $region91: #{vit_forward.3} parent=87 // pred_region
          _
        $region92: #{vit_forward.3} parent=87 // pred_fallthru
          _
        // Predicated region
        $region93: #{vit_forward.3} parent=87 // pred_check
          %p2908 = pneg %p439
        $region94: #{vit_forward.3} parent=87 // pred_check_branch
          %2910 = sbr.rel (%p2908) target = $region96
        $region95: #{vit_forward.3} parent=87 // pred_region
          %s2912 = ssub.s32 16, 16
          %2913 = vsyncadd %s2902, %s2912
          %s2914 = smul.addr %s33, 16
          %s2915 = scalar_lea.hbm %s18, %s2914
          %s2917 = sshll.u32 %s2904, 4
          %s2918 = int_to_ptr.vmem [resolvable:$true] %s2917
          %2920 = dma.vmem_to_hbm [thread:$0]  %s2918, 16, %s2915, %s2902
        $region96: #{vit_forward.3} parent=87 // pred_fallthru
          _
      $region88: #{vit_forward.3} parent=5 // pred_fallthru
        _
      %p2921 = scmp.le.s32.totalorder 2, %s28
      // Predicated region
      $region97: #{vit_forward.3} parent=5 // pred_check
        %p2922 = pneg %p2921
      $region98: #{vit_forward.3} parent=5 // pred_check_branch
        %2924 = sbr.rel (%p2922) target = $region100
      $region99: #{vit_forward.3} parent=5 // pred_region
        %s2925 = ssub.s32 %s28, 2
        // Predicated region
        $region101: #{vit_forward.3} parent=99 // pred_check
          %p2926 = pneg %p419
        $region102: #{vit_forward.3} parent=99 // pred_check_branch
          %2928 = sbr.rel (%p2926) target = $region104
        $region103: #{vit_forward.3} parent=99 // pred_region
          %p2929 = scmp.lt.s32.totalorder %s34, 1
          %s2930 = scalar_select %p2929, %s34, 1
          %s2931 = scalar_lea.vmem %s17, %s2930
        $region104: #{vit_forward.3} parent=99 // pred_fallthru
          _
        // Predicated region
        $region105: #{vit_forward.3} parent=99 // pred_check
          %p2932 = pneg %p445
        $region106: #{vit_forward.3} parent=99 // pred_check_branch
          %2934 = sbr.rel (%p2932) target = $region108
        $region107: #{vit_forward.3} parent=99 // pred_region
          %s2935 = sand.u32 %s430, 1
          %s2936 = scalar_lea.sflag [#allocation3], %s2935
          %s2937 = sand.u32 %s430, 1
          %s2938 = scalar_lea.vmem [#allocation2], %s2937
          %2939 = dma.done %s2936, 16
        $region108: #{vit_forward.3} parent=99 // pred_fallthru
          _
      $region100: #{vit_forward.3} parent=5 // pred_fallthru
        _
    $region6: #{vit_forward.3} parent=1 // loop_footer
      %s32 = sadd.s32 1, %s28
    $region7: #{vit_forward.3} parent=1 // loop_footer_branch
      %27 = sbr.rel target = $region3
    $region8: #{vit_forward.3} parent=1 // loop_exit
      _
    %2940 = vsyncpa [#allocation3], 1
    %s2941 = scalar_lea.sflag [#allocation3], 1
    %2942 = vsyncpa %s2941, 1

</llo_original>
